<compile_context>
chip_gen: v7x
topology: tpu7x:2x2x1
jax: 0.10.0
libtpu: 0.0.40
codegen_flags: <defaults>
</compile_context>

<pallas_src>
import jax
import jax.numpy as jnp
from jax.experimental import pallas as pl
from jax.experimental.pallas import tpu as pltpu

# (out_channels, in_channels, kernel, stride) -- static net structure.
CONV_CFG = (
    (32, 4, 8, 4),
    (64, 32, 4, 2),
    (64, 64, 3, 1),
)


def _out_size(n, k, s):
    return (n - k) // s + 1


def init_params(key):
    """Deterministic PyTorch-style init. Returns [(w_oihw, b), ...] arrays only
    (strides / kernel sizes are static and live in CONV_CFG)."""
    params = []
    for i, (oc, ic, k, _) in enumerate(CONV_CFG):
        wkey, bkey = jax.random.split(jax.random.fold_in(key, i))
        fan_in = ic * k * k
        bound = 1.0 / float(fan_in) ** 0.5
        w = jax.random.uniform(wkey, (oc, ic, k, k), jnp.float32, -bound, bound)
        b = jax.random.uniform(bkey, (oc,), jnp.float32, -bound, bound)
        params.append((w, b))
    return params


def _build_banded_weight(w_oihw, stride, in_w):
    """Per-kernel-row banded weight matrices.

    Returns T of shape (KH, IW*C, OW*OC) with
        T[di, iw*C + c, ow*OC + oc] = W[oc, c, di, iw - ow*stride]
    when 0 <= iw - ow*stride < KW, else 0.  Then, for input activation A in
    the (IH, IW*C) layout, the conv layer is
        out(OH, OW*OC) = sum_di  A[rows di, di+s, ...] @ T[di].
    """
    oc, ic, kh, kw = w_oihw.shape
    ow = _out_size(in_w, kw, stride)
    w_t = jnp.transpose(w_oihw, (2, 3, 1, 0))                        # (KH, KW, C, OC)
    dj = jnp.arange(in_w)[:, None] - jnp.arange(ow)[None, :] * stride  # (IW, OW)
    valid = (dj >= 0) & (dj < kw)
    dj_c = jnp.clip(dj, 0, kw - 1)
    t = w_t[:, dj_c]                                                 # (KH, IW, OW, C, OC)
    t = jnp.where(valid[None, :, :, None, None], t, 0.0)
    t = jnp.transpose(t, (0, 1, 3, 2, 4))                            # (KH, IW, C, OW, OC)
    return t.reshape(kh, in_w * ic, ow * oc).astype(jnp.bfloat16)


def make_cnn_forward(params, obs_shape):
    """Build a jitted fused forward pass for a fixed (N, C, H, W) input shape."""
    n, c, h, w = obs_shape

    # One-time weight preprocessing (outside the per-step jit).
    mats, biases, metas = [], [], []
    ch, cw, cc = h, w, c
    for (weight, bias), (oc, ic, k, s) in zip(params, CONV_CFG):
        assert ic == cc
        oh, ow = _out_size(ch, k, s), _out_size(cw, k, s)
        assert oh >= 1 and ow >= 1, "input spatial size too small for conv stack"
        mats.append(_build_banded_weight(weight, s, cw))
        biases.append(jnp.tile(bias, ow).reshape(1, ow * oc).astype(jnp.float32))
        metas.append(dict(kh=k, stride=s, ih=ch, iwc=cw * cc,
                          oh=oh, ow=ow, oc=oc, owoc=ow * oc))
        ch, cw, cc = oh, ow, oc

    m0, mL = metas[0], metas[-1]

    # ---------------- fused kernel: one image per grid step ----------------
    def kernel(x_ref, t1_ref, b1_ref, t2_ref, b2_ref, t3_ref, b3_ref, o_ref):
        t_refs = (t1_ref, t2_ref, t3_ref)
        b_refs = (b1_ref, b2_ref, b3_ref)
        a = x_ref[0].astype(jnp.bfloat16)          # (IH, IW*C) layer-1 input
        act = None
        for li, meta in enumerate(metas):
            kh, s, oh = meta["kh"], meta["stride"], meta["oh"]
            t_ref, b_ref = t_refs[li], b_refs[li]
            acc = jnp.zeros((oh, meta["owoc"]), jnp.float32)
            for di in range(kh):
                if oh == 1:
                    rows = a[di:di + 1, :]
                else:
                    # Static row slices (stride s) concatenated -> (OH, IW*C).
                    rows = jnp.concatenate(
                        [a[di + r * s: di + r * s + 1, :] for r in range(oh)],
                        axis=0)
                acc = acc + jnp.dot(rows, t_ref[di],
                                    preferred_element_type=jnp.float32)
            act = jnp.maximum(acc + b_ref[...], 0.0)   # f32 bias + ReLU
            a = act.astype(jnp.bfloat16)               # bf16 operand for next MXU pass
        o_ref[0] = act.astype(o_ref.dtype)

    # BlockSpecs: input/output tiled over batch; weights/biases resident.
    in_specs = [pl.BlockSpec((1, m0["ih"], m0["iwc"]), lambda i: (i, 0, 0))]
    for t_mat, b_row in zip(mats, biases):
        in_specs.append(pl.BlockSpec(t_mat.shape, lambda i: (0, 0, 0)))
        in_specs.append(pl.BlockSpec(b_row.shape, lambda i: (0, 0)))
    out_spec = pl.BlockSpec((1, mL["oh"], mL["owoc"]), lambda i: (i, 0, 0))

    flops = 2 * n * sum(m["kh"] * m["oh"] * m["iwc"] * m["owoc"] for m in metas)
    bytes_accessed = (n * m0["ih"] * m0["iwc"] * 4
                      + sum(int(t.size) * 2 for t in mats)
                      + sum(int(b.size) * 4 for b in biases)
                      + n * mL["oh"] * mL["owoc"] * 4)

    fused = pl.pallas_call(
        kernel,
        out_shape=jax.ShapeDtypeStruct((n, mL["oh"], mL["owoc"]), jnp.float32),
        grid=(n,),
        in_specs=in_specs,
        out_specs=out_spec,
        compiler_params=pltpu.CompilerParams(
            dimension_semantics=("parallel",)),
        cost_estimate=pl.CostEstimate(
            flops=flops, transcendentals=0, bytes_accessed=bytes_accessed),
    )

    @jax.jit
    def forward(obs_nchw):
        # NCHW -> (N, H, W*C): the 2-D activation layout used inside the kernel.
        x = jnp.transpose(obs_nchw, (0, 2, 3, 1)).reshape(n, m0["ih"], m0["iwc"])
        out = fused(x.astype(jnp.float32),
                    mats[0], biases[0], mats[1], biases[1], mats[2], biases[2])
        # torch.nn.Flatten flattens in NCHW order.
        out = out.reshape(n, mL["oh"], mL["ow"], mL["oc"])
        out = jnp.transpose(out, (0, 3, 1, 2)).reshape(n, -1)
        return out

    return forward


# Pure-JAX reference for verification (f32 throughout).
def cnn_forward_ref(obs_nchw, params):
    x = obs_nchw
    for (w, b), (_, _, _, s) in zip(params, CONV_CFG):
        x = jax.lax.conv_general_dilated(
            x, w, (s, s), "VALID",
            dimension_numbers=("NCHW", "OIHW", "NCHW"))
        x = jnp.maximum(x + b[None, :, None, None], 0.0)
    return x.reshape(x.shape[0], -1)


if __name__ == "__main__":
    key = jax.random.PRNGKey(0)
    pkey, xkey = jax.random.split(key)
    params = init_params(pkey)

    # batch=2, channels=4, spatial=36: the conv stack maps 36 -> 8 -> 3 -> 1.
    obs = jax.random.normal(xkey, (2, 4, 36, 36), jnp.float32)

    forward = make_cnn_forward(params, obs.shape)
    out = jax.block_until_ready(forward(obs))

    ref = cnn_forward_ref(obs, params)
    assert out.shape == ref.shape, (out.shape, ref.shape)
    # bf16 MXU operands with f32 accumulation -> loosened tolerance vs f32 ref.
    assert jnp.allclose(out, ref, atol=3e-2, rtol=3e-2), float(
        jnp.max(jnp.abs(out - ref)))
    print("KERNEL_OK")
</pallas_src>

<mosaic_0001>
module attributes {stable_mosaic.version = 11 : i64} {
  func.func @kernel(%arg0: i32, %arg1: memref<1x36x144xf32, #tpu.memory_space<vmem>>, %arg2: memref<8x144x256xbf16, #tpu.memory_space<vmem>>, %arg3: memref<1x256xf32, #tpu.memory_space<vmem>>, %arg4: memref<4x256x192xbf16, #tpu.memory_space<vmem>>, %arg5: memref<1x192xf32, #tpu.memory_space<vmem>>, %arg6: memref<3x192x64xbf16, #tpu.memory_space<vmem>>, %arg7: memref<1x64xf32, #tpu.memory_space<vmem>>, %arg8: memref<1x1x64xf32, #tpu.memory_space<vmem>>) attributes {dimension_semantics = [#tpu.dimension_semantics<parallel>], iteration_bounds = array<i64: 2>, scalar_prefetch = 0 : i64, scratch_operands = 0 : i64, tpu.core_type = #tpu.core_type<tc>, window_params = [{transform_indices = @transform_0, window_bounds = array<i64: 1, 36, 144>}, {pipeline_mode = #tpu.pipeline_mode<synchronous>, transform_indices = @transform_1, window_bounds = array<i64: 8, 144, 256>}, {pipeline_mode = #tpu.pipeline_mode<synchronous>, transform_indices = @transform_2, window_bounds = array<i64: 1, 256>}, {pipeline_mode = #tpu.pipeline_mode<synchronous>, transform_indices = @transform_3, window_bounds = array<i64: 4, 256, 192>}, {pipeline_mode = #tpu.pipeline_mode<synchronous>, transform_indices = @transform_4, window_bounds = array<i64: 1, 192>}, {pipeline_mode = #tpu.pipeline_mode<synchronous>, transform_indices = @transform_5, window_bounds = array<i64: 3, 192, 64>}, {pipeline_mode = #tpu.pipeline_mode<synchronous>, transform_indices = @transform_6, window_bounds = array<i64: 1, 64>}, {transform_indices = @transform_7, window_bounds = array<i64: 1, 1, 64>}]} {
    %c0 = arith.constant 0 : index
    %c0_0 = arith.constant 0 : index
    %c0_1 = arith.constant 0 : index
    %0 = vector.load %arg1[%c0, %c0_0, %c0_1] : memref<1x36x144xf32, #tpu.memory_space<vmem>>, vector<1x36x144xf32>
    %1 = vector.shape_cast %0 : vector<1x36x144xf32> to vector<36x144xf32>
    %2 = arith.truncf %1 : vector<36x144xf32> to vector<36x144xbf16>
    %cst = arith.constant 0.000000e+00 : f32
    %3 = vector.broadcast %cst : f32 to vector<8x256xf32>
    %4 = vector.extract_strided_slice %2 {offsets = [0, 0], sizes = [1, 144], strides = [1, 1]} : vector<36x144xbf16> to vector<1x144xbf16>
    %5 = vector.extract_strided_slice %2 {offsets = [4, 0], sizes = [1, 144], strides = [1, 1]} : vector<36x144xbf16> to vector<1x144xbf16>
    %6 = vector.extract_strided_slice %2 {offsets = [8, 0], sizes = [1, 144], strides = [1, 1]} : vector<36x144xbf16> to vector<1x144xbf16>
    %7 = vector.extract_strided_slice %2 {offsets = [12, 0], sizes = [1, 144], strides = [1, 1]} : vector<36x144xbf16> to vector<1x144xbf16>
    %8 = vector.extract_strided_slice %2 {offsets = [16, 0], sizes = [1, 144], strides = [1, 1]} : vector<36x144xbf16> to vector<1x144xbf16>
    %9 = vector.extract_strided_slice %2 {offsets = [20, 0], sizes = [1, 144], strides = [1, 1]} : vector<36x144xbf16> to vector<1x144xbf16>
    %10 = vector.extract_strided_slice %2 {offsets = [24, 0], sizes = [1, 144], strides = [1, 1]} : vector<36x144xbf16> to vector<1x144xbf16>
    %11 = vector.extract_strided_slice %2 {offsets = [28, 0], sizes = [1, 144], strides = [1, 1]} : vector<36x144xbf16> to vector<1x144xbf16>
    %12 = tpu.concatenate %4, %5, %6, %7, %8, %9, %10, %11 in 0 : vector<1x144xbf16>, vector<1x144xbf16>, vector<1x144xbf16>, vector<1x144xbf16>, vector<1x144xbf16>, vector<1x144xbf16>, vector<1x144xbf16>, vector<1x144xbf16> -> vector<8x144xbf16>
    %c0_2 = arith.constant 0 : index
    %c0_3 = arith.constant 0 : index
    %c0_4 = arith.constant 0 : index
    %13 = vector.load %arg2[%c0_2, %c0_3, %c0_4] : memref<8x144x256xbf16, #tpu.memory_space<vmem>>, vector<1x144x256xbf16>
    %14 = vector.shape_cast %13 : vector<1x144x256xbf16> to vector<144x256xbf16>
    %cst_5 = arith.constant dense<0.000000e+00> : vector<8x256xf32>
    %15 = tpu.matmul %12, %14, %cst_5 {dimension_numbers = #tpu.dot_dimension_numbers<[1], [0], [0], [1], [0, 0, 1, 1], [], []>} : vector<8x144xbf16>, vector<144x256xbf16>, vector<8x256xf32> -> vector<8x256xf32>
    %16 = arith.addf %3, %15 : vector<8x256xf32>
    %17 = vector.extract_strided_slice %2 {offsets = [1, 0], sizes = [1, 144], strides = [1, 1]} : vector<36x144xbf16> to vector<1x144xbf16>
    %18 = vector.extract_strided_slice %2 {offsets = [5, 0], sizes = [1, 144], strides = [1, 1]} : vector<36x144xbf16> to vector<1x144xbf16>
    %19 = vector.extract_strided_slice %2 {offsets = [9, 0], sizes = [1, 144], strides = [1, 1]} : vector<36x144xbf16> to vector<1x144xbf16>
    %20 = vector.extract_strided_slice %2 {offsets = [13, 0], sizes = [1, 144], strides = [1, 1]} : vector<36x144xbf16> to vector<1x144xbf16>
    %21 = vector.extract_strided_slice %2 {offsets = [17, 0], sizes = [1, 144], strides = [1, 1]} : vector<36x144xbf16> to vector<1x144xbf16>
    %22 = vector.extract_strided_slice %2 {offsets = [21, 0], sizes = [1, 144], strides = [1, 1]} : vector<36x144xbf16> to vector<1x144xbf16>
    %23 = vector.extract_strided_slice %2 {offsets = [25, 0], sizes = [1, 144], strides = [1, 1]} : vector<36x144xbf16> to vector<1x144xbf16>
    %24 = vector.extract_strided_slice %2 {offsets = [29, 0], sizes = [1, 144], strides = [1, 1]} : vector<36x144xbf16> to vector<1x144xbf16>
    %25 = tpu.concatenate %17, %18, %19, %20, %21, %22, %23, %24 in 0 : vector<1x144xbf16>, vector<1x144xbf16>, vector<1x144xbf16>, vector<1x144xbf16>, vector<1x144xbf16>, vector<1x144xbf16>, vector<1x144xbf16>, vector<1x144xbf16> -> vector<8x144xbf16>
    %c1 = arith.constant 1 : index
    %c0_6 = arith.constant 0 : index
    %c0_7 = arith.constant 0 : index
    %26 = vector.load %arg2[%c1, %c0_6, %c0_7] : memref<8x144x256xbf16, #tpu.memory_space<vmem>>, vector<1x144x256xbf16>
    %27 = vector.shape_cast %26 : vector<1x144x256xbf16> to vector<144x256xbf16>
    %cst_8 = arith.constant dense<0.000000e+00> : vector<8x256xf32>
    %28 = tpu.matmul %25, %27, %cst_8 {dimension_numbers = #tpu.dot_dimension_numbers<[1], [0], [0], [1], [0, 0, 1, 1], [], []>} : vector<8x144xbf16>, vector<144x256xbf16>, vector<8x256xf32> -> vector<8x256xf32>
    %29 = arith.addf %16, %28 : vector<8x256xf32>
    %30 = vector.extract_strided_slice %2 {offsets = [2, 0], sizes = [1, 144], strides = [1, 1]} : vector<36x144xbf16> to vector<1x144xbf16>
    %31 = vector.extract_strided_slice %2 {offsets = [6, 0], sizes = [1, 144], strides = [1, 1]} : vector<36x144xbf16> to vector<1x144xbf16>
    %32 = vector.extract_strided_slice %2 {offsets = [10, 0], sizes = [1, 144], strides = [1, 1]} : vector<36x144xbf16> to vector<1x144xbf16>
    %33 = vector.extract_strided_slice %2 {offsets = [14, 0], sizes = [1, 144], strides = [1, 1]} : vector<36x144xbf16> to vector<1x144xbf16>
    %34 = vector.extract_strided_slice %2 {offsets = [18, 0], sizes = [1, 144], strides = [1, 1]} : vector<36x144xbf16> to vector<1x144xbf16>
    %35 = vector.extract_strided_slice %2 {offsets = [22, 0], sizes = [1, 144], strides = [1, 1]} : vector<36x144xbf16> to vector<1x144xbf16>
    %36 = vector.extract_strided_slice %2 {offsets = [26, 0], sizes = [1, 144], strides = [1, 1]} : vector<36x144xbf16> to vector<1x144xbf16>
    %37 = vector.extract_strided_slice %2 {offsets = [30, 0], sizes = [1, 144], strides = [1, 1]} : vector<36x144xbf16> to vector<1x144xbf16>
    %38 = tpu.concatenate %30, %31, %32, %33, %34, %35, %36, %37 in 0 : vector<1x144xbf16>, vector<1x144xbf16>, vector<1x144xbf16>, vector<1x144xbf16>, vector<1x144xbf16>, vector<1x144xbf16>, vector<1x144xbf16>, vector<1x144xbf16> -> vector<8x144xbf16>
    %c2 = arith.constant 2 : index
    %c0_9 = arith.constant 0 : index
    %c0_10 = arith.constant 0 : index
    %39 = vector.load %arg2[%c2, %c0_9, %c0_10] : memref<8x144x256xbf16, #tpu.memory_space<vmem>>, vector<1x144x256xbf16>
    %40 = vector.shape_cast %39 : vector<1x144x256xbf16> to vector<144x256xbf16>
    %cst_11 = arith.constant dense<0.000000e+00> : vector<8x256xf32>
    %41 = tpu.matmul %38, %40, %cst_11 {dimension_numbers = #tpu.dot_dimension_numbers<[1], [0], [0], [1], [0, 0, 1, 1], [], []>} : vector<8x144xbf16>, vector<144x256xbf16>, vector<8x256xf32> -> vector<8x256xf32>
    %42 = arith.addf %29, %41 : vector<8x256xf32>
    %43 = vector.extract_strided_slice %2 {offsets = [3, 0], sizes = [1, 144], strides = [1, 1]} : vector<36x144xbf16> to vector<1x144xbf16>
    %44 = vector.extract_strided_slice %2 {offsets = [7, 0], sizes = [1, 144], strides = [1, 1]} : vector<36x144xbf16> to vector<1x144xbf16>
    %45 = vector.extract_strided_slice %2 {offsets = [11, 0], sizes = [1, 144], strides = [1, 1]} : vector<36x144xbf16> to vector<1x144xbf16>
    %46 = vector.extract_strided_slice %2 {offsets = [15, 0], sizes = [1, 144], strides = [1, 1]} : vector<36x144xbf16> to vector<1x144xbf16>
    %47 = vector.extract_strided_slice %2 {offsets = [19, 0], sizes = [1, 144], strides = [1, 1]} : vector<36x144xbf16> to vector<1x144xbf16>
    %48 = vector.extract_strided_slice %2 {offsets = [23, 0], sizes = [1, 144], strides = [1, 1]} : vector<36x144xbf16> to vector<1x144xbf16>
    %49 = vector.extract_strided_slice %2 {offsets = [27, 0], sizes = [1, 144], strides = [1, 1]} : vector<36x144xbf16> to vector<1x144xbf16>
    %50 = vector.extract_strided_slice %2 {offsets = [31, 0], sizes = [1, 144], strides = [1, 1]} : vector<36x144xbf16> to vector<1x144xbf16>
    %51 = tpu.concatenate %43, %44, %45, %46, %47, %48, %49, %50 in 0 : vector<1x144xbf16>, vector<1x144xbf16>, vector<1x144xbf16>, vector<1x144xbf16>, vector<1x144xbf16>, vector<1x144xbf16>, vector<1x144xbf16>, vector<1x144xbf16> -> vector<8x144xbf16>
    %c3 = arith.constant 3 : index
    %c0_12 = arith.constant 0 : index
    %c0_13 = arith.constant 0 : index
    %52 = vector.load %arg2[%c3, %c0_12, %c0_13] : memref<8x144x256xbf16, #tpu.memory_space<vmem>>, vector<1x144x256xbf16>
    %53 = vector.shape_cast %52 : vector<1x144x256xbf16> to vector<144x256xbf16>
    %cst_14 = arith.constant dense<0.000000e+00> : vector<8x256xf32>
    %54 = tpu.matmul %51, %53, %cst_14 {dimension_numbers = #tpu.dot_dimension_numbers<[1], [0], [0], [1], [0, 0, 1, 1], [], []>} : vector<8x144xbf16>, vector<144x256xbf16>, vector<8x256xf32> -> vector<8x256xf32>
    %55 = arith.addf %42, %54 : vector<8x256xf32>
    %56 = vector.extract_strided_slice %2 {offsets = [4, 0], sizes = [1, 144], strides = [1, 1]} : vector<36x144xbf16> to vector<1x144xbf16>
    %57 = vector.extract_strided_slice %2 {offsets = [8, 0], sizes = [1, 144], strides = [1, 1]} : vector<36x144xbf16> to vector<1x144xbf16>
    %58 = vector.extract_strided_slice %2 {offsets = [12, 0], sizes = [1, 144], strides = [1, 1]} : vector<36x144xbf16> to vector<1x144xbf16>
    %59 = vector.extract_strided_slice %2 {offsets = [16, 0], sizes = [1, 144], strides = [1, 1]} : vector<36x144xbf16> to vector<1x144xbf16>
    %60 = vector.extract_strided_slice %2 {offsets = [20, 0], sizes = [1, 144], strides = [1, 1]} : vector<36x144xbf16> to vector<1x144xbf16>
    %61 = vector.extract_strided_slice %2 {offsets = [24, 0], sizes = [1, 144], strides = [1, 1]} : vector<36x144xbf16> to vector<1x144xbf16>
    %62 = vector.extract_strided_slice %2 {offsets = [28, 0], sizes = [1, 144], strides = [1, 1]} : vector<36x144xbf16> to vector<1x144xbf16>
    %63 = vector.extract_strided_slice %2 {offsets = [32, 0], sizes = [1, 144], strides = [1, 1]} : vector<36x144xbf16> to vector<1x144xbf16>
    %64 = tpu.concatenate %56, %57, %58, %59, %60, %61, %62, %63 in 0 : vector<1x144xbf16>, vector<1x144xbf16>, vector<1x144xbf16>, vector<1x144xbf16>, vector<1x144xbf16>, vector<1x144xbf16>, vector<1x144xbf16>, vector<1x144xbf16> -> vector<8x144xbf16>
    %c4 = arith.constant 4 : index
    %c0_15 = arith.constant 0 : index
    %c0_16 = arith.constant 0 : index
    %65 = vector.load %arg2[%c4, %c0_15, %c0_16] : memref<8x144x256xbf16, #tpu.memory_space<vmem>>, vector<1x144x256xbf16>
    %66 = vector.shape_cast %65 : vector<1x144x256xbf16> to vector<144x256xbf16>
    %cst_17 = arith.constant dense<0.000000e+00> : vector<8x256xf32>
    %67 = tpu.matmul %64, %66, %cst_17 {dimension_numbers = #tpu.dot_dimension_numbers<[1], [0], [0], [1], [0, 0, 1, 1], [], []>} : vector<8x144xbf16>, vector<144x256xbf16>, vector<8x256xf32> -> vector<8x256xf32>
    %68 = arith.addf %55, %67 : vector<8x256xf32>
    %69 = vector.extract_strided_slice %2 {offsets = [5, 0], sizes = [1, 144], strides = [1, 1]} : vector<36x144xbf16> to vector<1x144xbf16>
    %70 = vector.extract_strided_slice %2 {offsets = [9, 0], sizes = [1, 144], strides = [1, 1]} : vector<36x144xbf16> to vector<1x144xbf16>
    %71 = vector.extract_strided_slice %2 {offsets = [13, 0], sizes = [1, 144], strides = [1, 1]} : vector<36x144xbf16> to vector<1x144xbf16>
    %72 = vector.extract_strided_slice %2 {offsets = [17, 0], sizes = [1, 144], strides = [1, 1]} : vector<36x144xbf16> to vector<1x144xbf16>
    %73 = vector.extract_strided_slice %2 {offsets = [21, 0], sizes = [1, 144], strides = [1, 1]} : vector<36x144xbf16> to vector<1x144xbf16>
    %74 = vector.extract_strided_slice %2 {offsets = [25, 0], sizes = [1, 144], strides = [1, 1]} : vector<36x144xbf16> to vector<1x144xbf16>
    %75 = vector.extract_strided_slice %2 {offsets = [29, 0], sizes = [1, 144], strides = [1, 1]} : vector<36x144xbf16> to vector<1x144xbf16>
    %76 = vector.extract_strided_slice %2 {offsets = [33, 0], sizes = [1, 144], strides = [1, 1]} : vector<36x144xbf16> to vector<1x144xbf16>
    %77 = tpu.concatenate %69, %70, %71, %72, %73, %74, %75, %76 in 0 : vector<1x144xbf16>, vector<1x144xbf16>, vector<1x144xbf16>, vector<1x144xbf16>, vector<1x144xbf16>, vector<1x144xbf16>, vector<1x144xbf16>, vector<1x144xbf16> -> vector<8x144xbf16>
    %c5 = arith.constant 5 : index
    %c0_18 = arith.constant 0 : index
    %c0_19 = arith.constant 0 : index
    %78 = vector.load %arg2[%c5, %c0_18, %c0_19] : memref<8x144x256xbf16, #tpu.memory_space<vmem>>, vector<1x144x256xbf16>
    %79 = vector.shape_cast %78 : vector<1x144x256xbf16> to vector<144x256xbf16>
    %cst_20 = arith.constant dense<0.000000e+00> : vector<8x256xf32>
    %80 = tpu.matmul %77, %79, %cst_20 {dimension_numbers = #tpu.dot_dimension_numbers<[1], [0], [0], [1], [0, 0, 1, 1], [], []>} : vector<8x144xbf16>, vector<144x256xbf16>, vector<8x256xf32> -> vector<8x256xf32>
    %81 = arith.addf %68, %80 : vector<8x256xf32>
    %82 = vector.extract_strided_slice %2 {offsets = [6, 0], sizes = [1, 144], strides = [1, 1]} : vector<36x144xbf16> to vector<1x144xbf16>
    %83 = vector.extract_strided_slice %2 {offsets = [10, 0], sizes = [1, 144], strides = [1, 1]} : vector<36x144xbf16> to vector<1x144xbf16>
    %84 = vector.extract_strided_slice %2 {offsets = [14, 0], sizes = [1, 144], strides = [1, 1]} : vector<36x144xbf16> to vector<1x144xbf16>
    %85 = vector.extract_strided_slice %2 {offsets = [18, 0], sizes = [1, 144], strides = [1, 1]} : vector<36x144xbf16> to vector<1x144xbf16>
    %86 = vector.extract_strided_slice %2 {offsets = [22, 0], sizes = [1, 144], strides = [1, 1]} : vector<36x144xbf16> to vector<1x144xbf16>
    %87 = vector.extract_strided_slice %2 {offsets = [26, 0], sizes = [1, 144], strides = [1, 1]} : vector<36x144xbf16> to vector<1x144xbf16>
    %88 = vector.extract_strided_slice %2 {offsets = [30, 0], sizes = [1, 144], strides = [1, 1]} : vector<36x144xbf16> to vector<1x144xbf16>
    %89 = vector.extract_strided_slice %2 {offsets = [34, 0], sizes = [1, 144], strides = [1, 1]} : vector<36x144xbf16> to vector<1x144xbf16>
    %90 = tpu.concatenate %82, %83, %84, %85, %86, %87, %88, %89 in 0 : vector<1x144xbf16>, vector<1x144xbf16>, vector<1x144xbf16>, vector<1x144xbf16>, vector<1x144xbf16>, vector<1x144xbf16>, vector<1x144xbf16>, vector<1x144xbf16> -> vector<8x144xbf16>
    %c6 = arith.constant 6 : index
    %c0_21 = arith.constant 0 : index
    %c0_22 = arith.constant 0 : index
    %91 = vector.load %arg2[%c6, %c0_21, %c0_22] : memref<8x144x256xbf16, #tpu.memory_space<vmem>>, vector<1x144x256xbf16>
    %92 = vector.shape_cast %91 : vector<1x144x256xbf16> to vector<144x256xbf16>
    %cst_23 = arith.constant dense<0.000000e+00> : vector<8x256xf32>
    %93 = tpu.matmul %90, %92, %cst_23 {dimension_numbers = #tpu.dot_dimension_numbers<[1], [0], [0], [1], [0, 0, 1, 1], [], []>} : vector<8x144xbf16>, vector<144x256xbf16>, vector<8x256xf32> -> vector<8x256xf32>
    %94 = arith.addf %81, %93 : vector<8x256xf32>
    %95 = vector.extract_strided_slice %2 {offsets = [7, 0], sizes = [1, 144], strides = [1, 1]} : vector<36x144xbf16> to vector<1x144xbf16>
    %96 = vector.extract_strided_slice %2 {offsets = [11, 0], sizes = [1, 144], strides = [1, 1]} : vector<36x144xbf16> to vector<1x144xbf16>
    %97 = vector.extract_strided_slice %2 {offsets = [15, 0], sizes = [1, 144], strides = [1, 1]} : vector<36x144xbf16> to vector<1x144xbf16>
    %98 = vector.extract_strided_slice %2 {offsets = [19, 0], sizes = [1, 144], strides = [1, 1]} : vector<36x144xbf16> to vector<1x144xbf16>
    %99 = vector.extract_strided_slice %2 {offsets = [23, 0], sizes = [1, 144], strides = [1, 1]} : vector<36x144xbf16> to vector<1x144xbf16>
    %100 = vector.extract_strided_slice %2 {offsets = [27, 0], sizes = [1, 144], strides = [1, 1]} : vector<36x144xbf16> to vector<1x144xbf16>
    %101 = vector.extract_strided_slice %2 {offsets = [31, 0], sizes = [1, 144], strides = [1, 1]} : vector<36x144xbf16> to vector<1x144xbf16>
    %102 = vector.extract_strided_slice %2 {offsets = [35, 0], sizes = [1, 144], strides = [1, 1]} : vector<36x144xbf16> to vector<1x144xbf16>
    %103 = tpu.concatenate %95, %96, %97, %98, %99, %100, %101, %102 in 0 : vector<1x144xbf16>, vector<1x144xbf16>, vector<1x144xbf16>, vector<1x144xbf16>, vector<1x144xbf16>, vector<1x144xbf16>, vector<1x144xbf16>, vector<1x144xbf16> -> vector<8x144xbf16>
    %c7 = arith.constant 7 : index
    %c0_24 = arith.constant 0 : index
    %c0_25 = arith.constant 0 : index
    %104 = vector.load %arg2[%c7, %c0_24, %c0_25] : memref<8x144x256xbf16, #tpu.memory_space<vmem>>, vector<1x144x256xbf16>
    %105 = vector.shape_cast %104 : vector<1x144x256xbf16> to vector<144x256xbf16>
    %cst_26 = arith.constant dense<0.000000e+00> : vector<8x256xf32>
    %106 = tpu.matmul %103, %105, %cst_26 {dimension_numbers = #tpu.dot_dimension_numbers<[1], [0], [0], [1], [0, 0, 1, 1], [], []>} : vector<8x144xbf16>, vector<144x256xbf16>, vector<8x256xf32> -> vector<8x256xf32>
    %107 = arith.addf %94, %106 : vector<8x256xf32>
    %c0_27 = arith.constant 0 : index
    %c0_28 = arith.constant 0 : index
    %108 = vector.load %arg3[%c0_27, %c0_28] : memref<1x256xf32, #tpu.memory_space<vmem>>, vector<1x256xf32>
    %109 = vector.broadcast %108 : vector<1x256xf32> to vector<8x256xf32>
    %110 = arith.addf %107, %109 : vector<8x256xf32>
    %cst_29 = arith.constant 0.000000e+00 : f32
    %111 = vector.broadcast %cst_29 : f32 to vector<8x256xf32>
    %112 = arith.maximumf %110, %111 : vector<8x256xf32>
    %113 = arith.truncf %112 : vector<8x256xf32> to vector<8x256xbf16>
    %cst_30 = arith.constant 0.000000e+00 : f32
    %114 = vector.broadcast %cst_30 : f32 to vector<3x192xf32>
    %115 = vector.extract_strided_slice %113 {offsets = [0, 0], sizes = [1, 256], strides = [1, 1]} : vector<8x256xbf16> to vector<1x256xbf16>
    %116 = vector.extract_strided_slice %113 {offsets = [2, 0], sizes = [1, 256], strides = [1, 1]} : vector<8x256xbf16> to vector<1x256xbf16>
    %117 = vector.extract_strided_slice %113 {offsets = [4, 0], sizes = [1, 256], strides = [1, 1]} : vector<8x256xbf16> to vector<1x256xbf16>
    %118 = tpu.concatenate %115, %116, %117 in 0 : vector<1x256xbf16>, vector<1x256xbf16>, vector<1x256xbf16> -> vector<3x256xbf16>
    %c0_31 = arith.constant 0 : index
    %c0_32 = arith.constant 0 : index
    %c0_33 = arith.constant 0 : index
    %119 = vector.load %arg4[%c0_31, %c0_32, %c0_33] : memref<4x256x192xbf16, #tpu.memory_space<vmem>>, vector<1x256x192xbf16>
    %120 = vector.shape_cast %119 : vector<1x256x192xbf16> to vector<256x192xbf16>
    %cst_34 = arith.constant dense<0.000000e+00> : vector<3x192xf32>
    %121 = tpu.matmul %118, %120, %cst_34 {dimension_numbers = #tpu.dot_dimension_numbers<[1], [0], [0], [1], [0, 0, 1, 1], [], []>} : vector<3x256xbf16>, vector<256x192xbf16>, vector<3x192xf32> -> vector<3x192xf32>
    %122 = arith.addf %114, %121 : vector<3x192xf32>
    %123 = vector.extract_strided_slice %113 {offsets = [1, 0], sizes = [1, 256], strides = [1, 1]} : vector<8x256xbf16> to vector<1x256xbf16>
    %124 = vector.extract_strided_slice %113 {offsets = [3, 0], sizes = [1, 256], strides = [1, 1]} : vector<8x256xbf16> to vector<1x256xbf16>
    %125 = vector.extract_strided_slice %113 {offsets = [5, 0], sizes = [1, 256], strides = [1, 1]} : vector<8x256xbf16> to vector<1x256xbf16>
    %126 = tpu.concatenate %123, %124, %125 in 0 : vector<1x256xbf16>, vector<1x256xbf16>, vector<1x256xbf16> -> vector<3x256xbf16>
    %c1_35 = arith.constant 1 : index
    %c0_36 = arith.constant 0 : index
    %c0_37 = arith.constant 0 : index
    %127 = vector.load %arg4[%c1_35, %c0_36, %c0_37] : memref<4x256x192xbf16, #tpu.memory_space<vmem>>, vector<1x256x192xbf16>
    %128 = vector.shape_cast %127 : vector<1x256x192xbf16> to vector<256x192xbf16>
    %cst_38 = arith.constant dense<0.000000e+00> : vector<3x192xf32>
    %129 = tpu.matmul %126, %128, %cst_38 {dimension_numbers = #tpu.dot_dimension_numbers<[1], [0], [0], [1], [0, 0, 1, 1], [], []>} : vector<3x256xbf16>, vector<256x192xbf16>, vector<3x192xf32> -> vector<3x192xf32>
    %130 = arith.addf %122, %129 : vector<3x192xf32>
    %131 = vector.extract_strided_slice %113 {offsets = [2, 0], sizes = [1, 256], strides = [1, 1]} : vector<8x256xbf16> to vector<1x256xbf16>
    %132 = vector.extract_strided_slice %113 {offsets = [4, 0], sizes = [1, 256], strides = [1, 1]} : vector<8x256xbf16> to vector<1x256xbf16>
    %133 = vector.extract_strided_slice %113 {offsets = [6, 0], sizes = [1, 256], strides = [1, 1]} : vector<8x256xbf16> to vector<1x256xbf16>
    %134 = tpu.concatenate %131, %132, %133 in 0 : vector<1x256xbf16>, vector<1x256xbf16>, vector<1x256xbf16> -> vector<3x256xbf16>
    %c2_39 = arith.constant 2 : index
    %c0_40 = arith.constant 0 : index
    %c0_41 = arith.constant 0 : index
    %135 = vector.load %arg4[%c2_39, %c0_40, %c0_41] : memref<4x256x192xbf16, #tpu.memory_space<vmem>>, vector<1x256x192xbf16>
    %136 = vector.shape_cast %135 : vector<1x256x192xbf16> to vector<256x192xbf16>
    %cst_42 = arith.constant dense<0.000000e+00> : vector<3x192xf32>
    %137 = tpu.matmul %134, %136, %cst_42 {dimension_numbers = #tpu.dot_dimension_numbers<[1], [0], [0], [1], [0, 0, 1, 1], [], []>} : vector<3x256xbf16>, vector<256x192xbf16>, vector<3x192xf32> -> vector<3x192xf32>
    %138 = arith.addf %130, %137 : vector<3x192xf32>
    %139 = vector.extract_strided_slice %113 {offsets = [3, 0], sizes = [1, 256], strides = [1, 1]} : vector<8x256xbf16> to vector<1x256xbf16>
    %140 = vector.extract_strided_slice %113 {offsets = [5, 0], sizes = [1, 256], strides = [1, 1]} : vector<8x256xbf16> to vector<1x256xbf16>
    %141 = vector.extract_strided_slice %113 {offsets = [7, 0], sizes = [1, 256], strides = [1, 1]} : vector<8x256xbf16> to vector<1x256xbf16>
    %142 = tpu.concatenate %139, %140, %141 in 0 : vector<1x256xbf16>, vector<1x256xbf16>, vector<1x256xbf16> -> vector<3x256xbf16>
    %c3_43 = arith.constant 3 : index
    %c0_44 = arith.constant 0 : index
    %c0_45 = arith.constant 0 : index
    %143 = vector.load %arg4[%c3_43, %c0_44, %c0_45] : memref<4x256x192xbf16, #tpu.memory_space<vmem>>, vector<1x256x192xbf16>
    %144 = vector.shape_cast %143 : vector<1x256x192xbf16> to vector<256x192xbf16>
    %cst_46 = arith.constant dense<0.000000e+00> : vector<3x192xf32>
    %145 = tpu.matmul %142, %144, %cst_46 {dimension_numbers = #tpu.dot_dimension_numbers<[1], [0], [0], [1], [0, 0, 1, 1], [], []>} : vector<3x256xbf16>, vector<256x192xbf16>, vector<3x192xf32> -> vector<3x192xf32>
    %146 = arith.addf %138, %145 : vector<3x192xf32>
    %c0_47 = arith.constant 0 : index
    %c0_48 = arith.constant 0 : index
    %147 = vector.load %arg5[%c0_47, %c0_48] : memref<1x192xf32, #tpu.memory_space<vmem>>, vector<1x192xf32>
    %148 = vector.broadcast %147 : vector<1x192xf32> to vector<3x192xf32>
    %149 = arith.addf %146, %148 : vector<3x192xf32>
    %cst_49 = arith.constant 0.000000e+00 : f32
    %150 = vector.broadcast %cst_49 : f32 to vector<3x192xf32>
    %151 = arith.maximumf %149, %150 : vector<3x192xf32>
    %152 = arith.truncf %151 : vector<3x192xf32> to vector<3x192xbf16>
    %cst_50 = arith.constant 0.000000e+00 : f32
    %153 = vector.broadcast %cst_50 : f32 to vector<1x64xf32>
    %154 = vector.extract_strided_slice %152 {offsets = [0, 0], sizes = [1, 192], strides = [1, 1]} : vector<3x192xbf16> to vector<1x192xbf16>
    %c0_51 = arith.constant 0 : index
    %c0_52 = arith.constant 0 : index
    %c0_53 = arith.constant 0 : index
    %155 = vector.load %arg6[%c0_51, %c0_52, %c0_53] : memref<3x192x64xbf16, #tpu.memory_space<vmem>>, vector<1x192x64xbf16>
    %156 = vector.shape_cast %155 : vector<1x192x64xbf16> to vector<192x64xbf16>
    %cst_54 = arith.constant dense<0.000000e+00> : vector<1x64xf32>
    %157 = tpu.matmul %154, %156, %cst_54 {dimension_numbers = #tpu.dot_dimension_numbers<[1], [0], [0], [1], [0, 0, 1, 1], [], []>} : vector<1x192xbf16>, vector<192x64xbf16>, vector<1x64xf32> -> vector<1x64xf32>
    %158 = arith.addf %153, %157 : vector<1x64xf32>
    %159 = vector.extract_strided_slice %152 {offsets = [1, 0], sizes = [1, 192], strides = [1, 1]} : vector<3x192xbf16> to vector<1x192xbf16>
    %c1_55 = arith.constant 1 : index
    %c0_56 = arith.constant 0 : index
    %c0_57 = arith.constant 0 : index
    %160 = vector.load %arg6[%c1_55, %c0_56, %c0_57] : memref<3x192x64xbf16, #tpu.memory_space<vmem>>, vector<1x192x64xbf16>
    %161 = vector.shape_cast %160 : vector<1x192x64xbf16> to vector<192x64xbf16>
    %cst_58 = arith.constant dense<0.000000e+00> : vector<1x64xf32>
    %162 = tpu.matmul %159, %161, %cst_58 {dimension_numbers = #tpu.dot_dimension_numbers<[1], [0], [0], [1], [0, 0, 1, 1], [], []>} : vector<1x192xbf16>, vector<192x64xbf16>, vector<1x64xf32> -> vector<1x64xf32>
    %163 = arith.addf %158, %162 : vector<1x64xf32>
    %164 = vector.extract_strided_slice %152 {offsets = [2, 0], sizes = [1, 192], strides = [1, 1]} : vector<3x192xbf16> to vector<1x192xbf16>
    %c2_59 = arith.constant 2 : index
    %c0_60 = arith.constant 0 : index
    %c0_61 = arith.constant 0 : index
    %165 = vector.load %arg6[%c2_59, %c0_60, %c0_61] : memref<3x192x64xbf16, #tpu.memory_space<vmem>>, vector<1x192x64xbf16>
    %166 = vector.shape_cast %165 : vector<1x192x64xbf16> to vector<192x64xbf16>
    %cst_62 = arith.constant dense<0.000000e+00> : vector<1x64xf32>
    %167 = tpu.matmul %164, %166, %cst_62 {dimension_numbers = #tpu.dot_dimension_numbers<[1], [0], [0], [1], [0, 0, 1, 1], [], []>} : vector<1x192xbf16>, vector<192x64xbf16>, vector<1x64xf32> -> vector<1x64xf32>
    %168 = arith.addf %163, %167 : vector<1x64xf32>
    %c0_63 = arith.constant 0 : index
    %c0_64 = arith.constant 0 : index
    %169 = vector.load %arg7[%c0_63, %c0_64] : memref<1x64xf32, #tpu.memory_space<vmem>>, vector<1x64xf32>
    %170 = arith.addf %168, %169 : vector<1x64xf32>
    %cst_65 = arith.constant 0.000000e+00 : f32
    %171 = vector.broadcast %cst_65 : f32 to vector<1x64xf32>
    %172 = arith.maximumf %170, %171 : vector<1x64xf32>
    %c0_66 = arith.constant 0 : index
    %c0_67 = arith.constant 0 : index
    %c0_68 = arith.constant 0 : index
    %173 = vector.load %arg8[%c0_66, %c0_67, %c0_68] : memref<1x1x64xf32, #tpu.memory_space<vmem>>, vector<1x1x64xf32>
    %174 = vector.shape_cast %173 : vector<1x1x64xf32> to vector<1x64xf32>
    %175 = vector.shape_cast %172 : vector<1x64xf32> to vector<1x1x64xf32>
    tpu.vector_store %arg8[%c0_66, %c0_67, %c0_68], %175 {strides = array<i32>} : memref<1x1x64xf32, #tpu.memory_space<vmem>>, vector<1x1x64xf32>,
    return
  }
  func.func @transform_0(%arg0: i32) -> (i32, i32, i32) {
    %c0_i32 = arith.constant 0 : i32
    %c0_i32_0 = arith.constant 0 : i32
    %c0_i32_1 = arith.constant 0 : i32
    return %arg0, %c0_i32, %c0_i32_0 : i32, i32, i32
  }
  func.func @transform_1(%arg0: i32) -> (i32, i32, i32) {
    %c0_i32 = arith.constant 0 : i32
    %c0_i32_0 = arith.constant 0 : i32
    %c0_i32_1 = arith.constant 0 : i32
    %c0_i32_2 = arith.constant 0 : i32
    return %c0_i32, %c0_i32_0, %c0_i32_1 : i32, i32, i32
  }
  func.func @transform_2(%arg0: i32) -> (i32, i32) {
    %c0_i32 = arith.constant 0 : i32
    %c0_i32_0 = arith.constant 0 : i32
    %c0_i32_1 = arith.constant 0 : i32
    return %c0_i32, %c0_i32_0 : i32, i32
  }
  func.func @transform_3(%arg0: i32) -> (i32, i32, i32) {
    %c0_i32 = arith.constant 0 : i32
    %c0_i32_0 = arith.constant 0 : i32
    %c0_i32_1 = arith.constant 0 : i32
    %c0_i32_2 = arith.constant 0 : i32
    return %c0_i32, %c0_i32_0, %c0_i32_1 : i32, i32, i32
  }
  func.func @transform_4(%arg0: i32) -> (i32, i32) {
    %c0_i32 = arith.constant 0 : i32
    %c0_i32_0 = arith.constant 0 : i32
    %c0_i32_1 = arith.constant 0 : i32
    return %c0_i32, %c0_i32_0 : i32, i32
  }
  func.func @transform_5(%arg0: i32) -> (i32, i32, i32) {
    %c0_i32 = arith.constant 0 : i32
    %c0_i32_0 = arith.constant 0 : i32
    %c0_i32_1 = arith.constant 0 : i32
    %c0_i32_2 = arith.constant 0 : i32
    return %c0_i32, %c0_i32_0, %c0_i32_1 : i32, i32, i32
  }
  func.func @transform_6(%arg0: i32) -> (i32, i32) {
    %c0_i32 = arith.constant 0 : i32
    %c0_i32_0 = arith.constant 0 : i32
    %c0_i32_1 = arith.constant 0 : i32
    return %c0_i32, %c0_i32_0 : i32, i32
  }
  func.func @transform_7(%arg0: i32) -> (i32, i32, i32) {
    %c0_i32 = arith.constant 0 : i32
    %c0_i32_0 = arith.constant 0 : i32
    %c0_i32_1 = arith.constant 0 : i32
    return %arg0, %c0_i32, %c0_i32_0 : i32, i32, i32
  }
}

</mosaic_0001>

<llo_original>
// kernel: forward.1
$region0: #{forward.1}
  #allocation0 [shape = 'u32[]', space=smem, size = 0x4, offset = 0x4, fixed_abs, tag = 'smem constant byte address 0x4 - core index']
  #allocation1 [shape = 'u32[144,128]{1,0:T(1,128)}', space=vmem, size = 0x12000, scoped, tag = 'internal scratch']
  %s0 = inlined_call_operand.vmem [shape: f32[2,36,144], index: 0, kind: input, shape index: {}]
  %s1 = inlined_call_operand.vmem [shape: bf16[8,144,256], index: 1, kind: input, shape index: {}]
  %s2 = inlined_call_operand.vmem [shape: f32[1,256], index: 2, kind: input, shape index: {}]
  %s3 = inlined_call_operand.vmem [shape: bf16[4,256,192], index: 3, kind: input, shape index: {}]
  %s4 = inlined_call_operand.vmem [shape: f32[1,192], index: 4, kind: input, shape index: {}]
  %s5 = inlined_call_operand.vmem [shape: bf16[3,192,64], index: 5, kind: input, shape index: {}]
  %s6 = inlined_call_operand.vmem [shape: f32[1,64], index: 6, kind: input, shape index: {}]
  %s7 = inlined_call_operand.hbm [shape: f32[2,1,64], index: 7, kind: output, shape index: {}]
  %s8 = sld [smem:[#allocation0]]
  $region61: #{forward.1} parent=0
    _
  %s10 = ssub.s32 1, %s8
  %s11 = scalar_select 0, %s10, %s8
  $region1: #{forward.1} parent=0
    #allocation2 [shape = 'u8[1024]{0}', space=vmem, size = 0x400, scoped, tag = 'output window, operand 0']
    #allocation3 [shape = 's32[2]{0}', space=sflag, size = 0x8, scoped, tag = 'scoped memory for forward.1']
    %12 = vsyncpa [#allocation3], 0
    %s13 = scalar_lea.sflag [#allocation3], 1
    %14 = vsyncpa %s13, 0
    loop: start=0, step=1, limit=4
    $region2: #{forward.1} parent=1 // loop_pre_header
      _
    $region3: #{forward.1} parent=1 // loop_header
      %s16 = sphi 0, %s20
      %p17 = scmp.ge.s32.totalorder %s16, 4
      %s26 = sphi 0, %s28
      %s29 = sphi 0, %s26
      %s30 = sphi 0, %s29
      %s46 = sphi 0, %s30
      %s50 = sphi 0, %s50
      %s52 = sphi 0, %s50
      %s53 = sphi 0, %s52
      %s67 = sphi 0, %s53
      %s71 = sphi 0, %s71
      %s73 = sphi 0, %s71
      %s74 = sphi 0, %s73
      %s88 = sphi 0, %s74
      %s92 = sphi 0, %s92
      %s94 = sphi 0, %s92
      %s95 = sphi 0, %s94
      %s109 = sphi 0, %s95
      %s113 = sphi 0, %s113
      %s115 = sphi 0, %s113
      %s116 = sphi 0, %s115
      %s130 = sphi 0, %s116
      %s134 = sphi 0, %s134
      %s136 = sphi 0, %s134
      %s137 = sphi 0, %s136
      %s151 = sphi 0, %s137
      %s155 = sphi 0, %s155
      %s157 = sphi 0, %s155
      %s158 = sphi 0, %s157
      %s172 = sphi 0, %s158
      %s178 = sphi 0, %s180
      %s181 = sphi 0, %s178
      %s182 = sphi 0, %s181
      %s198 = sphi 0, %s182
    $region4: #{forward.1} parent=1 // loop_header_branch
      %19 = sbr.rel (%p17) target = $region8
    $region5: #{forward.1} parent=1 // loop_body
      %s21 = ssub.s32 %s16, 1
      %s22 = ssub.s32 %s16, 2
      %s23 = sadd.s32 %s16, 1
      %s24 = ssub.s32 %s16, %s23
      %p25 = scmp.eq.s32.totalorder %s24, 0
      %s27 = sadd.s32 %s26, 1
      %s28 = scalar_select %p25, %s26, %s27
      %p31 = pneg %p25
      %p32 = scmp.eq.s32.totalorder %s16, 1
      %p33 = por %p31, %p32
      %p34 = scmp.ne.s32.totalorder %s26, %s29
      %p35 = scmp.eq.s32.totalorder %s16, 0
      %p36 = por %p34, %p35
      %p37 = scmp.ne.s32.totalorder %s26, %s29
      %p38 = scmp.eq.s32.totalorder %s21, 1
      %p39 = por %p37, %p38
      %p40 = scmp.ne.s32.totalorder %s29, %s30
      %p41 = scmp.eq.s32.totalorder %s21, 0
      %p42 = por %p40, %p41
      %p43 = scmp.ne.s32.totalorder %s29, %s30
      %p44 = scmp.eq.s32.totalorder %s22, 1
      %p45 = por %p43, %p44
      %p47 = scmp.ne.s32.totalorder %s30, %s46
      %p48 = scmp.eq.s32.totalorder %s22, 0
      %p49 = por %p47, %p48
      %s51 = sadd.s32 %s50, 1
      %p54 = scmp.eq.s32.totalorder %s16, 1
      %p55 = scmp.ne.s32.totalorder %s50, %s52
      %p56 = scmp.eq.s32.totalorder %s16, 0
      %p57 = por %p55, %p56
      %p58 = scmp.ne.s32.totalorder %s50, %s52
      %p59 = scmp.eq.s32.totalorder %s21, 1
      %p60 = por %p58, %p59
      %p61 = scmp.ne.s32.totalorder %s52, %s53
      %p62 = scmp.eq.s32.totalorder %s21, 0
      %p63 = por %p61, %p62
      %p64 = scmp.ne.s32.totalorder %s52, %s53
      %p65 = scmp.eq.s32.totalorder %s22, 1
      %p66 = por %p64, %p65
      %p68 = scmp.ne.s32.totalorder %s53, %s67
      %p69 = scmp.eq.s32.totalorder %s22, 0
      %p70 = por %p68, %p69
      %s72 = sadd.s32 %s71, 1
      %p75 = scmp.eq.s32.totalorder %s16, 1
      %p76 = scmp.ne.s32.totalorder %s71, %s73
      %p77 = scmp.eq.s32.totalorder %s16, 0
      %p78 = por %p76, %p77
      %p79 = scmp.ne.s32.totalorder %s71, %s73
      %p80 = scmp.eq.s32.totalorder %s21, 1
      %p81 = por %p79, %p80
      %p82 = scmp.ne.s32.totalorder %s73, %s74
      %p83 = scmp.eq.s32.totalorder %s21, 0
      %p84 = por %p82, %p83
      %p85 = scmp.ne.s32.totalorder %s73, %s74
      %p86 = scmp.eq.s32.totalorder %s22, 1
      %p87 = por %p85, %p86
      %p89 = scmp.ne.s32.totalorder %s74, %s88
      %p90 = scmp.eq.s32.totalorder %s22, 0
      %p91 = por %p89, %p90
      %s93 = sadd.s32 %s92, 1
      %p96 = scmp.eq.s32.totalorder %s16, 1
      %p97 = scmp.ne.s32.totalorder %s92, %s94
      %p98 = scmp.eq.s32.totalorder %s16, 0
      %p99 = por %p97, %p98
      %p100 = scmp.ne.s32.totalorder %s92, %s94
      %p101 = scmp.eq.s32.totalorder %s21, 1
      %p102 = por %p100, %p101
      %p103 = scmp.ne.s32.totalorder %s94, %s95
      %p104 = scmp.eq.s32.totalorder %s21, 0
      %p105 = por %p103, %p104
      %p106 = scmp.ne.s32.totalorder %s94, %s95
      %p107 = scmp.eq.s32.totalorder %s22, 1
      %p108 = por %p106, %p107
      %p110 = scmp.ne.s32.totalorder %s95, %s109
      %p111 = scmp.eq.s32.totalorder %s22, 0
      %p112 = por %p110, %p111
      %s114 = sadd.s32 %s113, 1
      %p117 = scmp.eq.s32.totalorder %s16, 1
      %p118 = scmp.ne.s32.totalorder %s113, %s115
      %p119 = scmp.eq.s32.totalorder %s16, 0
      %p120 = por %p118, %p119
      %p121 = scmp.ne.s32.totalorder %s113, %s115
      %p122 = scmp.eq.s32.totalorder %s21, 1
      %p123 = por %p121, %p122
      %p124 = scmp.ne.s32.totalorder %s115, %s116
      %p125 = scmp.eq.s32.totalorder %s21, 0
      %p126 = por %p124, %p125
      %p127 = scmp.ne.s32.totalorder %s115, %s116
      %p128 = scmp.eq.s32.totalorder %s22, 1
      %p129 = por %p127, %p128
      %p131 = scmp.ne.s32.totalorder %s116, %s130
      %p132 = scmp.eq.s32.totalorder %s22, 0
      %p133 = por %p131, %p132
      %s135 = sadd.s32 %s134, 1
      %p138 = scmp.eq.s32.totalorder %s16, 1
      %p139 = scmp.ne.s32.totalorder %s134, %s136
      %p140 = scmp.eq.s32.totalorder %s16, 0
      %p141 = por %p139, %p140
      %p142 = scmp.ne.s32.totalorder %s134, %s136
      %p143 = scmp.eq.s32.totalorder %s21, 1
      %p144 = por %p142, %p143
      %p145 = scmp.ne.s32.totalorder %s136, %s137
      %p146 = scmp.eq.s32.totalorder %s21, 0
      %p147 = por %p145, %p146
      %p148 = scmp.ne.s32.totalorder %s136, %s137
      %p149 = scmp.eq.s32.totalorder %s22, 1
      %p150 = por %p148, %p149
      %p152 = scmp.ne.s32.totalorder %s137, %s151
      %p153 = scmp.eq.s32.totalorder %s22, 0
      %p154 = por %p152, %p153
      %s156 = sadd.s32 %s155, 1
      %p159 = scmp.eq.s32.totalorder %s16, 1
      %p160 = scmp.ne.s32.totalorder %s155, %s157
      %p161 = scmp.eq.s32.totalorder %s16, 0
      %p162 = por %p160, %p161
      %p163 = scmp.ne.s32.totalorder %s155, %s157
      %p164 = scmp.eq.s32.totalorder %s21, 1
      %p165 = por %p163, %p164
      %p166 = scmp.ne.s32.totalorder %s157, %s158
      %p167 = scmp.eq.s32.totalorder %s21, 0
      %p168 = por %p166, %p167
      %p169 = scmp.ne.s32.totalorder %s157, %s158
      %p170 = scmp.eq.s32.totalorder %s22, 1
      %p171 = por %p169, %p170
      %p173 = scmp.ne.s32.totalorder %s158, %s172
      %p174 = scmp.eq.s32.totalorder %s22, 0
      %p175 = por %p173, %p174
      %s176 = ssub.s32 %s16, %s23
      %p177 = scmp.eq.s32.totalorder %s176, 0
      %s179 = sadd.s32 %s178, 1
      %s180 = scalar_select %p177, %s178, %s179
      %p183 = pneg %p177
      %p184 = scmp.eq.s32.totalorder %s16, 1
      %p185 = por %p183, %p184
      %p186 = scmp.ne.s32.totalorder %s178, %s181
      %p187 = scmp.eq.s32.totalorder %s16, 0
      %p188 = por %p186, %p187
      %p189 = scmp.ne.s32.totalorder %s178, %s181
      %p190 = scmp.eq.s32.totalorder %s21, 1
      %p191 = por %p189, %p190
      %p192 = scmp.ne.s32.totalorder %s181, %s182
      %p193 = scmp.eq.s32.totalorder %s21, 0
      %p194 = por %p192, %p193
      %p195 = scmp.ne.s32.totalorder %s181, %s182
      %p196 = scmp.eq.s32.totalorder %s22, 1
      %p197 = por %p195, %p196
      %p199 = scmp.ne.s32.totalorder %s182, %s198
      %p200 = scmp.eq.s32.totalorder %s22, 0
      %p201 = por %p199, %p200
      %p202 = scmp.le.s32.totalorder 1, %s16
      %p203 = scmp.lt.s32.totalorder %s16, 3
      %p204 = pnand %p202, %p203
      %p205 = pneg %p204
      // Predicated region
      $region9: #{forward.1} parent=5 // pred_check
        _
      $region10: #{forward.1} parent=5 // pred_check_branch
        %207 = sbr.rel (%p204) target = $region12
      $region11: #{forward.1} parent=5 // pred_region
        %s208 = ssub.s32 %s16, 1
        // Predicated region
        $region13: #{forward.1} parent=11 // pred_check
          %p209 = pneg %p63
        $region14: #{forward.1} parent=11 // pred_check_branch
          %211 = sbr.rel (%p209) target = $region16
        $region15: #{forward.1} parent=11 // pred_region
          _
        $region16: #{forward.1} parent=11 // pred_fallthru
          _
        // Predicated region
        $region17: #{forward.1} parent=11 // pred_check
          %p212 = pneg %p84
        $region18: #{forward.1} parent=11 // pred_check_branch
          %214 = sbr.rel (%p212) target = $region20
        $region19: #{forward.1} parent=11 // pred_region
          _
        $region20: #{forward.1} parent=11 // pred_fallthru
          _
        // Predicated region
        $region21: #{forward.1} parent=11 // pred_check
          %p215 = pneg %p105
        $region22: #{forward.1} parent=11 // pred_check_branch
          %217 = sbr.rel (%p215) target = $region24
        $region23: #{forward.1} parent=11 // pred_region
          _
        $region24: #{forward.1} parent=11 // pred_fallthru
          _
        // Predicated region
        $region25: #{forward.1} parent=11 // pred_check
          %p218 = pneg %p126
        $region26: #{forward.1} parent=11 // pred_check_branch
          %220 = sbr.rel (%p218) target = $region28
        $region27: #{forward.1} parent=11 // pred_region
          _
        $region28: #{forward.1} parent=11 // pred_fallthru
          _
        // Predicated region
        $region29: #{forward.1} parent=11 // pred_check
          %p221 = pneg %p147
        $region30: #{forward.1} parent=11 // pred_check_branch
          %223 = sbr.rel (%p221) target = $region32
        $region31: #{forward.1} parent=11 // pred_region
          _
        $region32: #{forward.1} parent=11 // pred_fallthru
          _
        // Predicated region
        $region33: #{forward.1} parent=11 // pred_check
          %p224 = pneg %p168
        $region34: #{forward.1} parent=11 // pred_check_branch
          %226 = sbr.rel (%p224) target = $region36
        $region35: #{forward.1} parent=11 // pred_region
          _
        $region36: #{forward.1} parent=11 // pred_fallthru
          _
      $region12: #{forward.1} parent=5 // pred_fallthru
        _
      %p227 = scmp.lt.s32.totalorder %s16, 2
      // Predicated region
      $region37: #{forward.1} parent=5 // pred_check
        %p228 = pneg %p227
      $region38: #{forward.1} parent=5 // pred_check_branch
        %230 = sbr.rel (%p228) target = $region40
      $region39: #{forward.1} parent=5 // pred_region
        // Predicated region
        $region41: #{forward.1} parent=39 // pred_check
          %p231 = pneg %p36
        $region42: #{forward.1} parent=39 // pred_check_branch
          %233 = sbr.rel (%p231) target = $region44
        $region43: #{forward.1} parent=39 // pred_region
          %p234 = scmp.lt.s32.totalorder %s16, 1
          %s235 = scalar_select %p234, %s16, 1
          %s236 = smul.addr %s235, 10
          %s237 = smul.addr %s236, 8
          %s238 = scalar_lea.vmem %s0, %s237
        $region44: #{forward.1} parent=39 // pred_fallthru
          _
      $region40: #{forward.1} parent=5 // pred_fallthru
        _
      %p239 = scmp.le.s32.totalorder 1, %s16
      %p240 = scmp.lt.s32.totalorder %s16, 3
      %p241 = pnand %p239, %p240
      %p242 = pneg %p241
      // Predicated region
      $region45: #{forward.1} parent=5 // pred_check
        _
      $region46: #{forward.1} parent=5 // pred_check_branch
        %244 = sbr.rel (%p241) target = $region48
      $region47: #{forward.1} parent=5 // pred_region
        %s245 = ssub.s32 %s16, 1
        %p246 = scmp.lt.s32.totalorder %s21, 1
        %s247 = scalar_select %p246, %s21, 1
        %s248 = smul.addr %s247, 10
        %s249 = smul.addr %s248, 8
        %s250 = scalar_lea.vmem %s0, %s249
        %p251 = pneg %p42
        %p252 = pneg %p39
        %p253 = pneg %p63
        %p254 = pneg %p60
        %p255 = pneg %p84
        %p256 = pneg %p81
        %p257 = pneg %p105
        %p258 = pneg %p102
        %p259 = pneg %p126
        %p260 = pneg %p123
        %p261 = pneg %p147
        %p262 = pneg %p144
        %p263 = pneg %p168
        %p264 = pneg %p165
        %p265 = pneg %p194
        %p266 = pneg %p191
        %s267 = sand.u32 %s181, 1
        %s268 = scalar_lea.sflag [#allocation3], %s267
        %s269 = sand.u32 %s181, 1
        %s270 = scalar_lea.vmem [#allocation2], %s269
        %p271 = scmp.lt.s32.totalorder %s21, 1
        %s272 = scalar_select %p271, %s21, 1
        %s273 = smul.addr %s272, 10
        %s274 = smul.addr %s273, 8
        %s275 = scalar_lea.vmem %s0, %s274
        %v277 = vld [vmem:[%s275] sm:$0xff]
        %v278 = vld [vmem:[%s275 + $0x8] sm:$0xff]
        %v279 = vld [vmem:[%s275 + $0x10] sm:$0xff]
        %v280 = vld [vmem:[%s275 + $0x18] sm:$0xff]
        %v281 = vld [vmem:[%s275 + $0x20] sm:$0xff]
        %v282 = vld [vmem:[%s275 + $0x28] sm:$0xff]
        %v283 = vld [vmem:[%s275 + $0x30] sm:$0xff]
        %v284 = vld [vmem:[%s275 + $0x38] sm:$0xff]
        %v285 = vld [vmem:[%s275 + $0x40] sm:$0xf]
        %v286 = vld [vmem:[%s275 + $0x48] sm:$0xf]
        %v287 = vpack.c.bf16 %v279, %v277
        %v288 = vpack.c.bf16 %v280, %v278
        %v289 = vpack.c.bf16 %v283, %v281
        %v290 = vpack.c.bf16 %v284, %v282
        %v291 = vpack.c.bf16 %v285, %v285
        %v292 = vpack.c.bf16 %v286, %v286
        %v294 = vshll.u32 %v287, 16
        %v296 = vrot.slane %v294, 2
        %v298 = vshll.u32 %v288, 16
        %v300 = vrot.slane %v298, 2
        %v305 = vrot.slane %v287, 3
        %v306 = vrot.slane %v288, 3
        %v307 = vrot.slane %v294, 5
        %v308 = vrot.slane %v298, 5
        %v313 = vrot.slane %v289, 6
        %v314 = vrot.slane %v290, 6
        %v316 = vshll.u32 %v289, 16
        %v319 = vshll.u32 %v290, 16
        %v323 = vrot.slane %v289, 1
        %v324 = vrot.slane %v290, 1
        %v325 = vrot.slane %v316, 3
        %v326 = vrot.slane %v319, 3
        %vm329 = vcmask 1040384
        %vm330 = vsmask.f32 256
        %vm331 = vmand %vm329, %vm330
        %v332 = vsel %vm331, %v287, %v296
        %v333 = vsel %vm331, %v288, %v300
        %vm334 = vcmask 1040384
        %v337 = vsel %vm334, %v332, %v305
        %v341 = vsel %vm334, %v333, %v306
        %vm343 = vcmask 1041408
        %vm344 = vsmask.f32 1280
        %vm345 = vmand %vm343, %vm344
        %v346 = vsel %vm345, %v337, %v307
        %v347 = vsel %vm345, %v341, %v308
        %vm348 = vcmask 1041408
        %v351 = vsel %vm348, %v346, %v313
        %v355 = vsel %vm348, %v347, %v314
        %vm357 = vcmask 1042432
        %vm358 = vsmask.f32 2304
        %vm359 = vmand %vm357, %vm358
        %v360 = vsel %vm359, %v351, %v316
        %v361 = vsel %vm359, %v355, %v319
        %vm362 = vcmask 1042432
        %v365 = vsel %vm362, %v360, %v323
        %v369 = vsel %vm362, %v361, %v324
        %vm371 = vcmask 1043456
        %vm372 = vsmask.f32 3328
        %vm373 = vmand %vm371, %vm372
        %v374 = vsel %vm373, %v365, %v325
        %v375 = vsel %vm373, %v369, %v326
        %v376 = vld [vmem:[%s1] sm:$0xff]
        %v377 = vld [vmem:[%s1 + $0x8] sm:$0xff]
        %v378 = vld [vmem:[%s1 + $0x10] sm:$0xff]
        %v379 = vld [vmem:[%s1 + $0x18] sm:$0xff]
        %v380 = vld [vmem:[%s1 + $0x20] sm:$0xff]
        %v381 = vld [vmem:[%s1 + $0x28] sm:$0xff]
        %v382 = vld [vmem:[%s1 + $0x30] sm:$0xff]
        %v383 = vld [vmem:[%s1 + $0x38] sm:$0xff]
        %v384 = vld [vmem:[%s1 + $0x40] sm:$0xff]
        %v385 = vld [vmem:[%s1 + $0x48] sm:$0xff]
        %v386 = vld [vmem:[%s1 + $0x50] sm:$0xff]
        %v387 = vld [vmem:[%s1 + $0x58] sm:$0xff]
        %v388 = vld [vmem:[%s1 + $0x60] sm:$0xff]
        %v389 = vld [vmem:[%s1 + $0x68] sm:$0xff]
        %v390 = vld [vmem:[%s1 + $0x70] sm:$0xff]
        %v391 = vld [vmem:[%s1 + $0x78] sm:$0xff]
        %v392 = vld [vmem:[%s1 + $0x80] sm:$0xff]
        %v393 = vld [vmem:[%s1 + $0x88] sm:$0xff]
        %v394 = vshrl.u32 %v287, 16
        %v396 = vshrl.u32 %v288, 16
        %v400 = vrot.slane %v287, 2
        %v401 = vrot.slane %v288, 2
        %v404 = vrot.slane %v394, 3
        %v405 = vrot.slane %v396, 3
        %v406 = vrot.slane %v287, 5
        %v407 = vrot.slane %v288, 5
        %v410 = vshrl.u32 %v289, 16
        %v412 = vrot.slane %v410, 6
        %v413 = vshrl.u32 %v290, 16
        %v415 = vrot.slane %v413, 6
        %v416 = vrot.slane %v410, 1
        %v417 = vrot.slane %v413, 1
        %v418 = vrot.slane %v289, 3
        %v419 = vrot.slane %v290, 3
        %v422 = vsel %vm331, %v394, %v400
        %v423 = vsel %vm331, %v396, %v401
        %v426 = vsel %vm334, %v422, %v404
        %v430 = vsel %vm334, %v423, %v405
        %v432 = vsel %vm345, %v426, %v406
        %v433 = vsel %vm345, %v430, %v407
        %v436 = vsel %vm348, %v432, %v412
        %v440 = vsel %vm348, %v433, %v415
        %v442 = vsel %vm359, %v436, %v289
        %v443 = vsel %vm359, %v440, %v290
        %v446 = vsel %vm362, %v442, %v416
        %v450 = vsel %vm362, %v443, %v417
        %v452 = vsel %vm373, %v446, %v418
        %v453 = vsel %vm373, %v450, %v419
        %s454 = scalar_lea.vmem %s1, 144
        %v455 = vld [vmem:[%s454] sm:$0xff]
        %v456 = vld [vmem:[%s454 + $0x8] sm:$0xff]
        %v457 = vld [vmem:[%s454 + $0x10] sm:$0xff]
        %v458 = vld [vmem:[%s454 + $0x18] sm:$0xff]
        %v459 = vld [vmem:[%s454 + $0x20] sm:$0xff]
        %v460 = vld [vmem:[%s454 + $0x28] sm:$0xff]
        %v461 = vld [vmem:[%s454 + $0x30] sm:$0xff]
        %v462 = vld [vmem:[%s454 + $0x38] sm:$0xff]
        %v463 = vld [vmem:[%s454 + $0x40] sm:$0xff]
        %v464 = vld [vmem:[%s454 + $0x48] sm:$0xff]
        %v465 = vld [vmem:[%s454 + $0x50] sm:$0xff]
        %v466 = vld [vmem:[%s454 + $0x58] sm:$0xff]
        %v467 = vld [vmem:[%s454 + $0x60] sm:$0xff]
        %v468 = vld [vmem:[%s454 + $0x68] sm:$0xff]
        %v469 = vld [vmem:[%s454 + $0x70] sm:$0xff]
        %v470 = vld [vmem:[%s454 + $0x78] sm:$0xff]
        %v471 = vld [vmem:[%s454 + $0x80] sm:$0xff]
        %v472 = vld [vmem:[%s454 + $0x88] sm:$0xff]
        %v491 = vunpack.c.l.b16 %v455
        %v492 = vunpack.c.h.b16 %v455
        %v493 = vunpack.c.l.b16 %v456
        %v494 = vunpack.c.h.b16 %v456
        %v495 = vunpack.c.l.b16 %v457
        %v496 = vunpack.c.h.b16 %v457
        %v497 = vunpack.c.l.b16 %v458
        %v498 = vunpack.c.h.b16 %v458
        %v499 = vunpack.c.l.b16 %v459
        %v500 = vunpack.c.h.b16 %v459
        %v501 = vunpack.c.l.b16 %v460
        %v502 = vunpack.c.h.b16 %v460
        %v503 = vunpack.c.l.b16 %v461
        %v504 = vunpack.c.h.b16 %v461
        %v505 = vunpack.c.l.b16 %v462
        %v506 = vunpack.c.h.b16 %v462
        %v507 = vunpack.c.l.b16 %v463
        %v508 = vunpack.c.h.b16 %v463
        %v509 = vunpack.c.l.b16 %v464
        %v510 = vunpack.c.h.b16 %v464
        %v511 = vunpack.c.l.b16 %v465
        %v512 = vunpack.c.h.b16 %v465
        %v513 = vunpack.c.l.b16 %v466
        %v514 = vunpack.c.h.b16 %v466
        %v515 = vunpack.c.l.b16 %v467
        %v516 = vunpack.c.h.b16 %v467
        %v517 = vunpack.c.l.b16 %v468
        %v518 = vunpack.c.h.b16 %v468
        %v519 = vunpack.c.l.b16 %v469
        %v520 = vunpack.c.h.b16 %v469
        %v521 = vunpack.c.l.b16 %v470
        %v522 = vunpack.c.h.b16 %v470
        %v523 = vunpack.c.l.b16 %v471
        %v524 = vunpack.c.h.b16 %v471
        %v525 = vunpack.c.l.b16 %v472
        %v526 = vunpack.c.h.b16 %v472
        %v527 = vpack.c.b16 %v493, %v491
        %v528 = vpack.c.b16 %v494, %v492
        %v529 = vpack.c.b16 %v497, %v495
        %v530 = vpack.c.b16 %v498, %v496
        %v531 = vpack.c.b16 %v501, %v499
        %v532 = vpack.c.b16 %v502, %v500
        %v533 = vpack.c.b16 %v505, %v503
        %v534 = vpack.c.b16 %v506, %v504
        %v535 = vpack.c.b16 %v509, %v507
        %v536 = vpack.c.b16 %v510, %v508
        %v537 = vpack.c.b16 %v513, %v511
        %v538 = vpack.c.b16 %v514, %v512
        %v539 = vpack.c.b16 %v517, %v515
        %v540 = vpack.c.b16 %v518, %v516
        %v541 = vpack.c.b16 %v521, %v519
        %v542 = vpack.c.b16 %v522, %v520
        %v543 = vpack.c.b16 %v525, %v523
        %v544 = vpack.c.b16 %v526, %v524
        %vm563 = vcmask 130048
        %v565 = vsel %vm563, %v453, 0
        %567 = vmatprep.subr.bf16.mxu0 %v528
        %568 = vmatpush1.bf16.msra.mxu0 %v527
        %569 = vmatprep.subr.bf16.mxu0 %v530
        %570 = vmatpush1.bf16.msra.mxu0 %v529
        %571 = vmatprep.subr.bf16.mxu0 %v532
        %572 = vmatpush1.bf16.msra.mxu0 %v531
        %573 = vmatprep.subr.bf16.mxu0 %v534
        %574 = vmatpush1.bf16.msra.mxu0 %v533
        %575 = vmatprep.subr.bf16.mxu0 %v536
        %576 = vmatpush1.bf16.msra.mxu0 %v535
        %577 = vmatprep.subr.bf16.mxu0 %v538
        %578 = vmatpush1.bf16.msra.mxu0 %v537
        %579 = vmatprep.subr.bf16.mxu0 %v540
        %580 = vmatpush1.bf16.msra.mxu0 %v539
        %581 = vmatprep.subr.bf16.mxu0 %v542
        %582 = vmatpush1.bf16.msra.mxu0 %v541
        %583 = vmatprep.subr.bf16.mxu0 %v544
        %584 = vmatpush1.bf16.msra.mxu0 %v543
        %585 = vmatprep.subr.bf16.mxu0 0
        %586 = vmatpush1.bf16.msra.mxu0 0
        %587 = vmatprep.subr.bf16.mxu0 0
        %588 = vmatpush1.bf16.msra.mxu0 0
        %589 = vmatprep.subr.bf16.mxu0 0
        %590 = vmatpush1.bf16.msra.mxu0 0
        %591 = vmatprep.subr.bf16.mxu0 0
        %592 = vmatpush1.bf16.msra.mxu0 0
        %593 = vmatprep.subr.bf16.mxu0 0
        %594 = vmatpush1.bf16.msra.mxu0 0
        %595 = vmatprep.subr.bf16.mxu0 0
        %596 = vmatpush1.bf16.msra.mxu0 0
        %597 = vmatprep.subr.bf16.mxu0 0
        %598 = vmatpush1.bf16.msra.mxu0 0
        %599 = vmatprep.mubr.bf16.mxu0 %v565
        %600 = vmatmul.mubr.bf16.gmra.mrb[0].mxu0 %v452
        %v601 = vpop.f32.mrb[0].mxu0
        %v602 = vadd.f32 0.0, %v601
        %v603 = vpop.f32.mrb[0].mxu0
        %v604 = vadd.f32 0.0, %v603
        %v605 = vpop.f32.mrb[0].mxu0
        %v606 = vpop.f32.mrb[0].mxu0
        %607 = vdwg.mxu0
        %v626 = vunpack.c.l.b16 %v376
        %v627 = vunpack.c.h.b16 %v376
        %v628 = vunpack.c.l.b16 %v377
        %v629 = vunpack.c.h.b16 %v377
        %v630 = vunpack.c.l.b16 %v378
        %v631 = vunpack.c.h.b16 %v378
        %v632 = vunpack.c.l.b16 %v379
        %v633 = vunpack.c.h.b16 %v379
        %v634 = vunpack.c.l.b16 %v380
        %v635 = vunpack.c.h.b16 %v380
        %v636 = vunpack.c.l.b16 %v381
        %v637 = vunpack.c.h.b16 %v381
        %v638 = vunpack.c.l.b16 %v382
        %v639 = vunpack.c.h.b16 %v382
        %v640 = vunpack.c.l.b16 %v383
        %v641 = vunpack.c.h.b16 %v383
        %v642 = vunpack.c.l.b16 %v384
        %v643 = vunpack.c.h.b16 %v384
        %v644 = vunpack.c.l.b16 %v385
        %v645 = vunpack.c.h.b16 %v385
        %v646 = vunpack.c.l.b16 %v386
        %v647 = vunpack.c.h.b16 %v386
        %v648 = vunpack.c.l.b16 %v387
        %v649 = vunpack.c.h.b16 %v387
        %v650 = vunpack.c.l.b16 %v388
        %v651 = vunpack.c.h.b16 %v388
        %v652 = vunpack.c.l.b16 %v389
        %v653 = vunpack.c.h.b16 %v389
        %v654 = vunpack.c.l.b16 %v390
        %v655 = vunpack.c.h.b16 %v390
        %v656 = vunpack.c.l.b16 %v391
        %v657 = vunpack.c.h.b16 %v391
        %v658 = vunpack.c.l.b16 %v392
        %v659 = vunpack.c.h.b16 %v392
        %v660 = vunpack.c.l.b16 %v393
        %v661 = vunpack.c.h.b16 %v393
        %v662 = vpack.c.b16 %v628, %v626
        %v663 = vpack.c.b16 %v629, %v627
        %v664 = vpack.c.b16 %v632, %v630
        %v665 = vpack.c.b16 %v633, %v631
        %v666 = vpack.c.b16 %v636, %v634
        %v667 = vpack.c.b16 %v637, %v635
        %v668 = vpack.c.b16 %v640, %v638
        %v669 = vpack.c.b16 %v641, %v639
        %v670 = vpack.c.b16 %v644, %v642
        %v671 = vpack.c.b16 %v645, %v643
        %v672 = vpack.c.b16 %v648, %v646
        %v673 = vpack.c.b16 %v649, %v647
        %v674 = vpack.c.b16 %v652, %v650
        %v675 = vpack.c.b16 %v653, %v651
        %v676 = vpack.c.b16 %v656, %v654
        %v677 = vpack.c.b16 %v657, %v655
        %v678 = vpack.c.b16 %v660, %v658
        %v679 = vpack.c.b16 %v661, %v659
        %v699 = vsel %vm563, %v375, 0
        %701 = vmatprep.subr.bf16.mxu0 %v663
        %702 = vmatpush1.bf16.msra.mxu0 %v662
        %703 = vmatprep.subr.bf16.mxu0 %v665
        %704 = vmatpush1.bf16.msra.mxu0 %v664
        %705 = vmatprep.subr.bf16.mxu0 %v667
        %706 = vmatpush1.bf16.msra.mxu0 %v666
        %707 = vmatprep.subr.bf16.mxu0 %v669
        %708 = vmatpush1.bf16.msra.mxu0 %v668
        %709 = vmatprep.subr.bf16.mxu0 %v671
        %710 = vmatpush1.bf16.msra.mxu0 %v670
        %711 = vmatprep.subr.bf16.mxu0 %v673
        %712 = vmatpush1.bf16.msra.mxu0 %v672
        %713 = vmatprep.subr.bf16.mxu0 %v675
        %714 = vmatpush1.bf16.msra.mxu0 %v674
        %715 = vmatprep.subr.bf16.mxu0 %v677
        %716 = vmatpush1.bf16.msra.mxu0 %v676
        %717 = vmatprep.subr.bf16.mxu0 %v679
        %718 = vmatpush1.bf16.msra.mxu0 %v678
        %719 = vmatprep.subr.bf16.mxu0 0
        %720 = vmatpush1.bf16.msra.mxu0 0
        %721 = vmatprep.subr.bf16.mxu0 0
        %722 = vmatpush1.bf16.msra.mxu0 0
        %723 = vmatprep.subr.bf16.mxu0 0
        %724 = vmatpush1.bf16.msra.mxu0 0
        %725 = vmatprep.subr.bf16.mxu0 0
        %726 = vmatpush1.bf16.msra.mxu0 0
        %727 = vmatprep.subr.bf16.mxu0 0
        %728 = vmatpush1.bf16.msra.mxu0 0
        %729 = vmatprep.subr.bf16.mxu0 0
        %730 = vmatpush1.bf16.msra.mxu0 0
        %731 = vmatprep.subr.bf16.mxu0 0
        %732 = vmatpush1.bf16.msra.mxu0 0
        %733 = vmatprep.mubr.bf16.mxu0 %v699
        %734 = vmatmul.mubr.bf16.gmra.mrb[0].mxu0 %v374
        %v735 = vpop.f32.mrb[0].mxu0
        %v736 = vadd.f32 %v602, %v735
        %v737 = vpop.f32.mrb[0].mxu0
        %v738 = vadd.f32 %v604, %v737
        %v739 = vpop.f32.mrb[0].mxu0
        %v740 = vpop.f32.mrb[0].mxu0
        %741 = vdwg.mxu0
        %v742 = vrot.slane %v287, 1
        %v743 = vrot.slane %v288, 1
        %v746 = vrot.slane %v294, 3
        %v747 = vrot.slane %v298, 3
        %v750 = vrot.slane %v287, 4
        %v751 = vrot.slane %v288, 4
        %v752 = vrot.slane %v294, 6
        %v753 = vrot.slane %v298, 6
        %v756 = vrot.slane %v289, 7
        %v757 = vrot.slane %v290, 7
        %v758 = vrot.slane %v316, 1
        %v759 = vrot.slane %v319, 1
        %v762 = vrot.slane %v289, 2
        %v763 = vrot.slane %v290, 2
        %v764 = vrot.slane %v316, 4
        %v765 = vrot.slane %v319, 4
        %v768 = vsel %vm331, %v742, %v746
        %v769 = vsel %vm331, %v743, %v747
        %v772 = vsel %vm334, %v768, %v750
        %v776 = vsel %vm334, %v769, %v751
        %v778 = vsel %vm345, %v772, %v752
        %v779 = vsel %vm345, %v776, %v753
        %v782 = vsel %vm348, %v778, %v756
        %v786 = vsel %vm348, %v779, %v757
        %v788 = vsel %vm359, %v782, %v758
        %v789 = vsel %vm359, %v786, %v759
        %v792 = vsel %vm362, %v788, %v762
        %v796 = vsel %vm362, %v789, %v763
        %v798 = vsel %vm373, %v792, %v764
        %v799 = vsel %vm373, %v796, %v765
        %s800 = scalar_lea.vmem %s1, 288
        %v801 = vld [vmem:[%s800] sm:$0xff]
        %v802 = vld [vmem:[%s800 + $0x8] sm:$0xff]
        %v803 = vld [vmem:[%s800 + $0x10] sm:$0xff]
        %v804 = vld [vmem:[%s800 + $0x18] sm:$0xff]
        %v805 = vld [vmem:[%s800 + $0x20] sm:$0xff]
        %v806 = vld [vmem:[%s800 + $0x28] sm:$0xff]
        %v807 = vld [vmem:[%s800 + $0x30] sm:$0xff]
        %v808 = vld [vmem:[%s800 + $0x38] sm:$0xff]
        %v809 = vld [vmem:[%s800 + $0x40] sm:$0xff]
        %v810 = vld [vmem:[%s800 + $0x48] sm:$0xff]
        %v811 = vld [vmem:[%s800 + $0x50] sm:$0xff]
        %v812 = vld [vmem:[%s800 + $0x58] sm:$0xff]
        %v813 = vld [vmem:[%s800 + $0x60] sm:$0xff]
        %v814 = vld [vmem:[%s800 + $0x68] sm:$0xff]
        %v815 = vld [vmem:[%s800 + $0x70] sm:$0xff]
        %v816 = vld [vmem:[%s800 + $0x78] sm:$0xff]
        %v817 = vld [vmem:[%s800 + $0x80] sm:$0xff]
        %v818 = vld [vmem:[%s800 + $0x88] sm:$0xff]
        %v837 = vunpack.c.l.b16 %v801
        %v838 = vunpack.c.h.b16 %v801
        %v839 = vunpack.c.l.b16 %v802
        %v840 = vunpack.c.h.b16 %v802
        %v841 = vunpack.c.l.b16 %v803
        %v842 = vunpack.c.h.b16 %v803
        %v843 = vunpack.c.l.b16 %v804
        %v844 = vunpack.c.h.b16 %v804
        %v845 = vunpack.c.l.b16 %v805
        %v846 = vunpack.c.h.b16 %v805
        %v847 = vunpack.c.l.b16 %v806
        %v848 = vunpack.c.h.b16 %v806
        %v849 = vunpack.c.l.b16 %v807
        %v850 = vunpack.c.h.b16 %v807
        %v851 = vunpack.c.l.b16 %v808
        %v852 = vunpack.c.h.b16 %v808
        %v853 = vunpack.c.l.b16 %v809
        %v854 = vunpack.c.h.b16 %v809
        %v855 = vunpack.c.l.b16 %v810
        %v856 = vunpack.c.h.b16 %v810
        %v857 = vunpack.c.l.b16 %v811
        %v858 = vunpack.c.h.b16 %v811
        %v859 = vunpack.c.l.b16 %v812
        %v860 = vunpack.c.h.b16 %v812
        %v861 = vunpack.c.l.b16 %v813
        %v862 = vunpack.c.h.b16 %v813
        %v863 = vunpack.c.l.b16 %v814
        %v864 = vunpack.c.h.b16 %v814
        %v865 = vunpack.c.l.b16 %v815
        %v866 = vunpack.c.h.b16 %v815
        %v867 = vunpack.c.l.b16 %v816
        %v868 = vunpack.c.h.b16 %v816
        %v869 = vunpack.c.l.b16 %v817
        %v870 = vunpack.c.h.b16 %v817
        %v871 = vunpack.c.l.b16 %v818
        %v872 = vunpack.c.h.b16 %v818
        %v873 = vpack.c.b16 %v839, %v837
        %v874 = vpack.c.b16 %v840, %v838
        %v875 = vpack.c.b16 %v843, %v841
        %v876 = vpack.c.b16 %v844, %v842
        %v877 = vpack.c.b16 %v847, %v845
        %v878 = vpack.c.b16 %v848, %v846
        %v879 = vpack.c.b16 %v851, %v849
        %v880 = vpack.c.b16 %v852, %v850
        %v881 = vpack.c.b16 %v855, %v853
        %v882 = vpack.c.b16 %v856, %v854
        %v883 = vpack.c.b16 %v859, %v857
        %v884 = vpack.c.b16 %v860, %v858
        %v885 = vpack.c.b16 %v863, %v861
        %v886 = vpack.c.b16 %v864, %v862
        %v887 = vpack.c.b16 %v867, %v865
        %v888 = vpack.c.b16 %v868, %v866
        %v889 = vpack.c.b16 %v871, %v869
        %v890 = vpack.c.b16 %v872, %v870
        %v910 = vsel %vm563, %v799, 0
        %912 = vmatprep.subr.bf16.mxu0 %v874
        %913 = vmatpush1.bf16.msra.mxu0 %v873
        %914 = vmatprep.subr.bf16.mxu0 %v876
        %915 = vmatpush1.bf16.msra.mxu0 %v875
        %916 = vmatprep.subr.bf16.mxu0 %v878
        %917 = vmatpush1.bf16.msra.mxu0 %v877
        %918 = vmatprep.subr.bf16.mxu0 %v880
        %919 = vmatpush1.bf16.msra.mxu0 %v879
        %920 = vmatprep.subr.bf16.mxu0 %v882
        %921 = vmatpush1.bf16.msra.mxu0 %v881
        %922 = vmatprep.subr.bf16.mxu0 %v884
        %923 = vmatpush1.bf16.msra.mxu0 %v883
        %924 = vmatprep.subr.bf16.mxu0 %v886
        %925 = vmatpush1.bf16.msra.mxu0 %v885
        %926 = vmatprep.subr.bf16.mxu0 %v888
        %927 = vmatpush1.bf16.msra.mxu0 %v887
        %928 = vmatprep.subr.bf16.mxu0 %v890
        %929 = vmatpush1.bf16.msra.mxu0 %v889
        %930 = vmatprep.subr.bf16.mxu0 0
        %931 = vmatpush1.bf16.msra.mxu0 0
        %932 = vmatprep.subr.bf16.mxu0 0
        %933 = vmatpush1.bf16.msra.mxu0 0
        %934 = vmatprep.subr.bf16.mxu0 0
        %935 = vmatpush1.bf16.msra.mxu0 0
        %936 = vmatprep.subr.bf16.mxu0 0
        %937 = vmatpush1.bf16.msra.mxu0 0
        %938 = vmatprep.subr.bf16.mxu0 0
        %939 = vmatpush1.bf16.msra.mxu0 0
        %940 = vmatprep.subr.bf16.mxu0 0
        %941 = vmatpush1.bf16.msra.mxu0 0
        %942 = vmatprep.subr.bf16.mxu0 0
        %943 = vmatpush1.bf16.msra.mxu0 0
        %944 = vmatprep.mubr.bf16.mxu0 %v910
        %945 = vmatmul.mubr.bf16.gmra.mrb[0].mxu0 %v798
        %v946 = vpop.f32.mrb[0].mxu0
        %v947 = vadd.f32 0.0, %v946
        %v948 = vpop.f32.mrb[0].mxu0
        %v949 = vadd.f32 0.0, %v948
        %v950 = vpop.f32.mrb[0].mxu0
        %v951 = vpop.f32.mrb[0].mxu0
        %952 = vdwg.mxu0
        %v953 = vadd.f32 %v736, %v947
        %v954 = vadd.f32 %v738, %v949
        %v955 = vrot.slane %v394, 1
        %v956 = vrot.slane %v396, 1
        %v961 = vrot.slane %v394, 4
        %v962 = vrot.slane %v396, 4
        %v963 = vrot.slane %v287, 6
        %v964 = vrot.slane %v288, 6
        %v967 = vrot.slane %v410, 7
        %v968 = vrot.slane %v413, 7
        %v971 = vrot.slane %v410, 2
        %v972 = vrot.slane %v413, 2
        %v973 = vrot.slane %v289, 4
        %v974 = vrot.slane %v290, 4
        %v977 = vsel %vm331, %v955, %v305
        %v978 = vsel %vm331, %v956, %v306
        %v981 = vsel %vm334, %v977, %v961
        %v985 = vsel %vm334, %v978, %v962
        %v987 = vsel %vm345, %v981, %v963
        %v988 = vsel %vm345, %v985, %v964
        %v991 = vsel %vm348, %v987, %v967
        %v995 = vsel %vm348, %v988, %v968
        %v997 = vsel %vm359, %v991, %v323
        %v998 = vsel %vm359, %v995, %v324
        %v1001 = vsel %vm362, %v997, %v971
        %v1005 = vsel %vm362, %v998, %v972
        %v1007 = vsel %vm373, %v1001, %v973
        %v1008 = vsel %vm373, %v1005, %v974
        %s1009 = scalar_lea.vmem %s1, 432
        %v1010 = vld [vmem:[%s1009] sm:$0xff]
        %v1011 = vld [vmem:[%s1009 + $0x8] sm:$0xff]
        %v1012 = vld [vmem:[%s1009 + $0x10] sm:$0xff]
        %v1013 = vld [vmem:[%s1009 + $0x18] sm:$0xff]
        %v1014 = vld [vmem:[%s1009 + $0x20] sm:$0xff]
        %v1015 = vld [vmem:[%s1009 + $0x28] sm:$0xff]
        %v1016 = vld [vmem:[%s1009 + $0x30] sm:$0xff]
        %v1017 = vld [vmem:[%s1009 + $0x38] sm:$0xff]
        %v1018 = vld [vmem:[%s1009 + $0x40] sm:$0xff]
        %v1019 = vld [vmem:[%s1009 + $0x48] sm:$0xff]
        %v1020 = vld [vmem:[%s1009 + $0x50] sm:$0xff]
        %v1021 = vld [vmem:[%s1009 + $0x58] sm:$0xff]
        %v1022 = vld [vmem:[%s1009 + $0x60] sm:$0xff]
        %v1023 = vld [vmem:[%s1009 + $0x68] sm:$0xff]
        %v1024 = vld [vmem:[%s1009 + $0x70] sm:$0xff]
        %v1025 = vld [vmem:[%s1009 + $0x78] sm:$0xff]
        %v1026 = vld [vmem:[%s1009 + $0x80] sm:$0xff]
        %v1027 = vld [vmem:[%s1009 + $0x88] sm:$0xff]
        %v1046 = vunpack.c.l.b16 %v1010
        %v1047 = vunpack.c.h.b16 %v1010
        %v1048 = vunpack.c.l.b16 %v1011
        %v1049 = vunpack.c.h.b16 %v1011
        %v1050 = vunpack.c.l.b16 %v1012
        %v1051 = vunpack.c.h.b16 %v1012
        %v1052 = vunpack.c.l.b16 %v1013
        %v1053 = vunpack.c.h.b16 %v1013
        %v1054 = vunpack.c.l.b16 %v1014
        %v1055 = vunpack.c.h.b16 %v1014
        %v1056 = vunpack.c.l.b16 %v1015
        %v1057 = vunpack.c.h.b16 %v1015
        %v1058 = vunpack.c.l.b16 %v1016
        %v1059 = vunpack.c.h.b16 %v1016
        %v1060 = vunpack.c.l.b16 %v1017
        %v1061 = vunpack.c.h.b16 %v1017
        %v1062 = vunpack.c.l.b16 %v1018
        %v1063 = vunpack.c.h.b16 %v1018
        %v1064 = vunpack.c.l.b16 %v1019
        %v1065 = vunpack.c.h.b16 %v1019
        %v1066 = vunpack.c.l.b16 %v1020
        %v1067 = vunpack.c.h.b16 %v1020
        %v1068 = vunpack.c.l.b16 %v1021
        %v1069 = vunpack.c.h.b16 %v1021
        %v1070 = vunpack.c.l.b16 %v1022
        %v1071 = vunpack.c.h.b16 %v1022
        %v1072 = vunpack.c.l.b16 %v1023
        %v1073 = vunpack.c.h.b16 %v1023
        %v1074 = vunpack.c.l.b16 %v1024
        %v1075 = vunpack.c.h.b16 %v1024
        %v1076 = vunpack.c.l.b16 %v1025
        %v1077 = vunpack.c.h.b16 %v1025
        %v1078 = vunpack.c.l.b16 %v1026
        %v1079 = vunpack.c.h.b16 %v1026
        %v1080 = vunpack.c.l.b16 %v1027
        %v1081 = vunpack.c.h.b16 %v1027
        %v1082 = vpack.c.b16 %v1048, %v1046
        %v1083 = vpack.c.b16 %v1049, %v1047
        %v1084 = vpack.c.b16 %v1052, %v1050
        %v1085 = vpack.c.b16 %v1053, %v1051
        %v1086 = vpack.c.b16 %v1056, %v1054
        %v1087 = vpack.c.b16 %v1057, %v1055
        %v1088 = vpack.c.b16 %v1060, %v1058
        %v1089 = vpack.c.b16 %v1061, %v1059
        %v1090 = vpack.c.b16 %v1064, %v1062
        %v1091 = vpack.c.b16 %v1065, %v1063
        %v1092 = vpack.c.b16 %v1068, %v1066
        %v1093 = vpack.c.b16 %v1069, %v1067
        %v1094 = vpack.c.b16 %v1072, %v1070
        %v1095 = vpack.c.b16 %v1073, %v1071
        %v1096 = vpack.c.b16 %v1076, %v1074
        %v1097 = vpack.c.b16 %v1077, %v1075
        %v1098 = vpack.c.b16 %v1080, %v1078
        %v1099 = vpack.c.b16 %v1081, %v1079
        %v1119 = vsel %vm563, %v1008, 0
        %1121 = vmatprep.subr.bf16.mxu0 %v1083
        %1122 = vmatpush1.bf16.msra.mxu0 %v1082
        %1123 = vmatprep.subr.bf16.mxu0 %v1085
        %1124 = vmatpush1.bf16.msra.mxu0 %v1084
        %1125 = vmatprep.subr.bf16.mxu0 %v1087
        %1126 = vmatpush1.bf16.msra.mxu0 %v1086
        %1127 = vmatprep.subr.bf16.mxu0 %v1089
        %1128 = vmatpush1.bf16.msra.mxu0 %v1088
        %1129 = vmatprep.subr.bf16.mxu0 %v1091
        %1130 = vmatpush1.bf16.msra.mxu0 %v1090
        %1131 = vmatprep.subr.bf16.mxu0 %v1093
        %1132 = vmatpush1.bf16.msra.mxu0 %v1092
        %1133 = vmatprep.subr.bf16.mxu0 %v1095
        %1134 = vmatpush1.bf16.msra.mxu0 %v1094
        %1135 = vmatprep.subr.bf16.mxu0 %v1097
        %1136 = vmatpush1.bf16.msra.mxu0 %v1096
        %1137 = vmatprep.subr.bf16.mxu0 %v1099
        %1138 = vmatpush1.bf16.msra.mxu0 %v1098
        %1139 = vmatprep.subr.bf16.mxu0 0
        %1140 = vmatpush1.bf16.msra.mxu0 0
        %1141 = vmatprep.subr.bf16.mxu0 0
        %1142 = vmatpush1.bf16.msra.mxu0 0
        %1143 = vmatprep.subr.bf16.mxu0 0
        %1144 = vmatpush1.bf16.msra.mxu0 0
        %1145 = vmatprep.subr.bf16.mxu0 0
        %1146 = vmatpush1.bf16.msra.mxu0 0
        %1147 = vmatprep.subr.bf16.mxu0 0
        %1148 = vmatpush1.bf16.msra.mxu0 0
        %1149 = vmatprep.subr.bf16.mxu0 0
        %1150 = vmatpush1.bf16.msra.mxu0 0
        %1151 = vmatprep.subr.bf16.mxu0 0
        %1152 = vmatpush1.bf16.msra.mxu0 0
        %1153 = vmatprep.mubr.bf16.mxu0 %v1119
        %1154 = vmatmul.mubr.bf16.gmra.mrb[0].mxu0 %v1007
        %v1155 = vpop.f32.mrb[0].mxu0
        %v1156 = vadd.f32 0.0, %v1155
        %v1157 = vpop.f32.mrb[0].mxu0
        %v1158 = vadd.f32 0.0, %v1157
        %v1159 = vpop.f32.mrb[0].mxu0
        %v1160 = vpop.f32.mrb[0].mxu0
        %1161 = vdwg.mxu0
        %v1162 = vadd.f32 %v953, %v1156
        %v1163 = vadd.f32 %v954, %v1158
        %v1164 = vrot.slane %v294, 4
        %v1165 = vrot.slane %v298, 4
        %v1168 = vrot.slane %v316, 7
        %v1169 = vrot.slane %v319, 7
        %v1172 = vrot.slane %v316, 2
        %v1173 = vrot.slane %v319, 2
        %v1177 = vshll.u32 %v291, 16
        %v1179 = vrot.slane %v1177, 5
        %v1181 = vshll.u32 %v292, 16
        %v1183 = vrot.slane %v1181, 5
        %v1186 = vsel %vm331, %v400, %v1164
        %v1187 = vsel %vm331, %v401, %v1165
        %v1190 = vsel %vm334, %v1186, %v406
        %v1194 = vsel %vm334, %v1187, %v407
        %v1196 = vsel %vm345, %v1190, %v1168
        %v1197 = vsel %vm345, %v1194, %v1169
        %v1199 = vsel %vm348, %v1196, %v289
        %v1202 = vsel %vm348, %v1197, %v290
        %v1204 = vsel %vm359, %v1199, %v1172
        %v1205 = vsel %vm359, %v1202, %v1173
        %v1208 = vsel %vm362, %v1204, %v418
        %v1212 = vsel %vm362, %v1205, %v419
        %v1214 = vsel %vm373, %v1208, %v1179
        %v1215 = vsel %vm373, %v1212, %v1183
        %s1216 = scalar_lea.vmem %s1, 576
        %v1217 = vld [vmem:[%s1216] sm:$0xff]
        %v1218 = vld [vmem:[%s1216 + $0x8] sm:$0xff]
        %v1219 = vld [vmem:[%s1216 + $0x10] sm:$0xff]
        %v1220 = vld [vmem:[%s1216 + $0x18] sm:$0xff]
        %v1221 = vld [vmem:[%s1216 + $0x20] sm:$0xff]
        %v1222 = vld [vmem:[%s1216 + $0x28] sm:$0xff]
        %v1223 = vld [vmem:[%s1216 + $0x30] sm:$0xff]
        %v1224 = vld [vmem:[%s1216 + $0x38] sm:$0xff]
        %v1225 = vld [vmem:[%s1216 + $0x40] sm:$0xff]
        %v1226 = vld [vmem:[%s1216 + $0x48] sm:$0xff]
        %v1227 = vld [vmem:[%s1216 + $0x50] sm:$0xff]
        %v1228 = vld [vmem:[%s1216 + $0x58] sm:$0xff]
        %v1229 = vld [vmem:[%s1216 + $0x60] sm:$0xff]
        %v1230 = vld [vmem:[%s1216 + $0x68] sm:$0xff]
        %v1231 = vld [vmem:[%s1216 + $0x70] sm:$0xff]
        %v1232 = vld [vmem:[%s1216 + $0x78] sm:$0xff]
        %v1233 = vld [vmem:[%s1216 + $0x80] sm:$0xff]
        %v1234 = vld [vmem:[%s1216 + $0x88] sm:$0xff]
        %v1253 = vunpack.c.l.b16 %v1217
        %v1254 = vunpack.c.h.b16 %v1217
        %v1255 = vunpack.c.l.b16 %v1218
        %v1256 = vunpack.c.h.b16 %v1218
        %v1257 = vunpack.c.l.b16 %v1219
        %v1258 = vunpack.c.h.b16 %v1219
        %v1259 = vunpack.c.l.b16 %v1220
        %v1260 = vunpack.c.h.b16 %v1220
        %v1261 = vunpack.c.l.b16 %v1221
        %v1262 = vunpack.c.h.b16 %v1221
        %v1263 = vunpack.c.l.b16 %v1222
        %v1264 = vunpack.c.h.b16 %v1222
        %v1265 = vunpack.c.l.b16 %v1223
        %v1266 = vunpack.c.h.b16 %v1223
        %v1267 = vunpack.c.l.b16 %v1224
        %v1268 = vunpack.c.h.b16 %v1224
        %v1269 = vunpack.c.l.b16 %v1225
        %v1270 = vunpack.c.h.b16 %v1225
        %v1271 = vunpack.c.l.b16 %v1226
        %v1272 = vunpack.c.h.b16 %v1226
        %v1273 = vunpack.c.l.b16 %v1227
        %v1274 = vunpack.c.h.b16 %v1227
        %v1275 = vunpack.c.l.b16 %v1228
        %v1276 = vunpack.c.h.b16 %v1228
        %v1277 = vunpack.c.l.b16 %v1229
        %v1278 = vunpack.c.h.b16 %v1229
        %v1279 = vunpack.c.l.b16 %v1230
        %v1280 = vunpack.c.h.b16 %v1230
        %v1281 = vunpack.c.l.b16 %v1231
        %v1282 = vunpack.c.h.b16 %v1231
        %v1283 = vunpack.c.l.b16 %v1232
        %v1284 = vunpack.c.h.b16 %v1232
        %v1285 = vunpack.c.l.b16 %v1233
        %v1286 = vunpack.c.h.b16 %v1233
        %v1287 = vunpack.c.l.b16 %v1234
        %v1288 = vunpack.c.h.b16 %v1234
        %v1289 = vpack.c.b16 %v1255, %v1253
        %v1290 = vpack.c.b16 %v1256, %v1254
        %v1291 = vpack.c.b16 %v1259, %v1257
        %v1292 = vpack.c.b16 %v1260, %v1258
        %v1293 = vpack.c.b16 %v1263, %v1261
        %v1294 = vpack.c.b16 %v1264, %v1262
        %v1295 = vpack.c.b16 %v1267, %v1265
        %v1296 = vpack.c.b16 %v1268, %v1266
        %v1297 = vpack.c.b16 %v1271, %v1269
        %v1298 = vpack.c.b16 %v1272, %v1270
        %v1299 = vpack.c.b16 %v1275, %v1273
        %v1300 = vpack.c.b16 %v1276, %v1274
        %v1301 = vpack.c.b16 %v1279, %v1277
        %v1302 = vpack.c.b16 %v1280, %v1278
        %v1303 = vpack.c.b16 %v1283, %v1281
        %v1304 = vpack.c.b16 %v1284, %v1282
        %v1305 = vpack.c.b16 %v1287, %v1285
        %v1306 = vpack.c.b16 %v1288, %v1286
        %v1326 = vsel %vm563, %v1215, 0
        %1328 = vmatprep.subr.bf16.mxu0 %v1290
        %1329 = vmatpush1.bf16.msra.mxu0 %v1289
        %1330 = vmatprep.subr.bf16.mxu0 %v1292
        %1331 = vmatpush1.bf16.msra.mxu0 %v1291
        %1332 = vmatprep.subr.bf16.mxu0 %v1294
        %1333 = vmatpush1.bf16.msra.mxu0 %v1293
        %1334 = vmatprep.subr.bf16.mxu0 %v1296
        %1335 = vmatpush1.bf16.msra.mxu0 %v1295
        %1336 = vmatprep.subr.bf16.mxu0 %v1298
        %1337 = vmatpush1.bf16.msra.mxu0 %v1297
        %1338 = vmatprep.subr.bf16.mxu0 %v1300
        %1339 = vmatpush1.bf16.msra.mxu0 %v1299
        %1340 = vmatprep.subr.bf16.mxu0 %v1302
        %1341 = vmatpush1.bf16.msra.mxu0 %v1301
        %1342 = vmatprep.subr.bf16.mxu0 %v1304
        %1343 = vmatpush1.bf16.msra.mxu0 %v1303
        %1344 = vmatprep.subr.bf16.mxu0 %v1306
        %1345 = vmatpush1.bf16.msra.mxu0 %v1305
        %1346 = vmatprep.subr.bf16.mxu0 0
        %1347 = vmatpush1.bf16.msra.mxu0 0
        %1348 = vmatprep.subr.bf16.mxu0 0
        %1349 = vmatpush1.bf16.msra.mxu0 0
        %1350 = vmatprep.subr.bf16.mxu0 0
        %1351 = vmatpush1.bf16.msra.mxu0 0
        %1352 = vmatprep.subr.bf16.mxu0 0
        %1353 = vmatpush1.bf16.msra.mxu0 0
        %1354 = vmatprep.subr.bf16.mxu0 0
        %1355 = vmatpush1.bf16.msra.mxu0 0
        %1356 = vmatprep.subr.bf16.mxu0 0
        %1357 = vmatpush1.bf16.msra.mxu0 0
        %1358 = vmatprep.subr.bf16.mxu0 0
        %1359 = vmatpush1.bf16.msra.mxu0 0
        %1360 = vmatprep.mubr.bf16.mxu0 %v1326
        %1361 = vmatmul.mubr.bf16.gmra.mrb[0].mxu0 %v1214
        %v1362 = vpop.f32.mrb[0].mxu0
        %v1363 = vadd.f32 0.0, %v1362
        %v1364 = vpop.f32.mrb[0].mxu0
        %v1365 = vadd.f32 0.0, %v1364
        %v1366 = vpop.f32.mrb[0].mxu0
        %v1367 = vpop.f32.mrb[0].mxu0
        %1368 = vdwg.mxu0
        %v1369 = vadd.f32 %v1162, %v1363
        %v1370 = vadd.f32 %v1163, %v1365
        %v1371 = vrot.slane %v394, 2
        %v1372 = vrot.slane %v396, 2
        %v1377 = vrot.slane %v394, 5
        %v1378 = vrot.slane %v396, 5
        %v1383 = vrot.slane %v410, 3
        %v1384 = vrot.slane %v413, 3
        %v1387 = vrot.slane %v291, 5
        %v1388 = vrot.slane %v292, 5
        %v1391 = vsel %vm331, %v1371, %v750
        %v1392 = vsel %vm331, %v1372, %v751
        %v1395 = vsel %vm334, %v1391, %v1377
        %v1399 = vsel %vm334, %v1392, %v1378
        %v1401 = vsel %vm345, %v1395, %v756
        %v1402 = vsel %vm345, %v1399, %v757
        %v1405 = vsel %vm348, %v1401, %v410
        %v1409 = vsel %vm348, %v1402, %v413
        %v1411 = vsel %vm359, %v1405, %v762
        %v1412 = vsel %vm359, %v1409, %v763
        %v1415 = vsel %vm362, %v1411, %v1383
        %v1419 = vsel %vm362, %v1412, %v1384
        %v1421 = vsel %vm373, %v1415, %v1387
        %v1422 = vsel %vm373, %v1419, %v1388
        %s1423 = scalar_lea.vmem %s1, 720
        %v1424 = vld [vmem:[%s1423] sm:$0xff]
        %v1425 = vld [vmem:[%s1423 + $0x8] sm:$0xff]
        %v1426 = vld [vmem:[%s1423 + $0x10] sm:$0xff]
        %v1427 = vld [vmem:[%s1423 + $0x18] sm:$0xff]
        %v1428 = vld [vmem:[%s1423 + $0x20] sm:$0xff]
        %v1429 = vld [vmem:[%s1423 + $0x28] sm:$0xff]
        %v1430 = vld [vmem:[%s1423 + $0x30] sm:$0xff]
        %v1431 = vld [vmem:[%s1423 + $0x38] sm:$0xff]
        %v1432 = vld [vmem:[%s1423 + $0x40] sm:$0xff]
        %v1433 = vld [vmem:[%s1423 + $0x48] sm:$0xff]
        %v1434 = vld [vmem:[%s1423 + $0x50] sm:$0xff]
        %v1435 = vld [vmem:[%s1423 + $0x58] sm:$0xff]
        %v1436 = vld [vmem:[%s1423 + $0x60] sm:$0xff]
        %v1437 = vld [vmem:[%s1423 + $0x68] sm:$0xff]
        %v1438 = vld [vmem:[%s1423 + $0x70] sm:$0xff]
        %v1439 = vld [vmem:[%s1423 + $0x78] sm:$0xff]
        %v1440 = vld [vmem:[%s1423 + $0x80] sm:$0xff]
        %v1441 = vld [vmem:[%s1423 + $0x88] sm:$0xff]
        %v1460 = vunpack.c.l.b16 %v1424
        %v1461 = vunpack.c.h.b16 %v1424
        %v1462 = vunpack.c.l.b16 %v1425
        %v1463 = vunpack.c.h.b16 %v1425
        %v1464 = vunpack.c.l.b16 %v1426
        %v1465 = vunpack.c.h.b16 %v1426
        %v1466 = vunpack.c.l.b16 %v1427
        %v1467 = vunpack.c.h.b16 %v1427
        %v1468 = vunpack.c.l.b16 %v1428
        %v1469 = vunpack.c.h.b16 %v1428
        %v1470 = vunpack.c.l.b16 %v1429
        %v1471 = vunpack.c.h.b16 %v1429
        %v1472 = vunpack.c.l.b16 %v1430
        %v1473 = vunpack.c.h.b16 %v1430
        %v1474 = vunpack.c.l.b16 %v1431
        %v1475 = vunpack.c.h.b16 %v1431
        %v1476 = vunpack.c.l.b16 %v1432
        %v1477 = vunpack.c.h.b16 %v1432
        %v1478 = vunpack.c.l.b16 %v1433
        %v1479 = vunpack.c.h.b16 %v1433
        %v1480 = vunpack.c.l.b16 %v1434
        %v1481 = vunpack.c.h.b16 %v1434
        %v1482 = vunpack.c.l.b16 %v1435
        %v1483 = vunpack.c.h.b16 %v1435
        %v1484 = vunpack.c.l.b16 %v1436
        %v1485 = vunpack.c.h.b16 %v1436
        %v1486 = vunpack.c.l.b16 %v1437
        %v1487 = vunpack.c.h.b16 %v1437
        %v1488 = vunpack.c.l.b16 %v1438
        %v1489 = vunpack.c.h.b16 %v1438
        %v1490 = vunpack.c.l.b16 %v1439
        %v1491 = vunpack.c.h.b16 %v1439
        %v1492 = vunpack.c.l.b16 %v1440
        %v1493 = vunpack.c.h.b16 %v1440
        %v1494 = vunpack.c.l.b16 %v1441
        %v1495 = vunpack.c.h.b16 %v1441
        %v1496 = vpack.c.b16 %v1462, %v1460
        %v1497 = vpack.c.b16 %v1463, %v1461
        %v1498 = vpack.c.b16 %v1466, %v1464
        %v1499 = vpack.c.b16 %v1467, %v1465
        %v1500 = vpack.c.b16 %v1470, %v1468
        %v1501 = vpack.c.b16 %v1471, %v1469
        %v1502 = vpack.c.b16 %v1474, %v1472
        %v1503 = vpack.c.b16 %v1475, %v1473
        %v1504 = vpack.c.b16 %v1478, %v1476
        %v1505 = vpack.c.b16 %v1479, %v1477
        %v1506 = vpack.c.b16 %v1482, %v1480
        %v1507 = vpack.c.b16 %v1483, %v1481
        %v1508 = vpack.c.b16 %v1486, %v1484
        %v1509 = vpack.c.b16 %v1487, %v1485
        %v1510 = vpack.c.b16 %v1490, %v1488
        %v1511 = vpack.c.b16 %v1491, %v1489
        %v1512 = vpack.c.b16 %v1494, %v1492
        %v1513 = vpack.c.b16 %v1495, %v1493
        %v1533 = vsel %vm563, %v1422, 0
        %1535 = vmatprep.subr.bf16.mxu0 %v1497
        %1536 = vmatpush1.bf16.msra.mxu0 %v1496
        %1537 = vmatprep.subr.bf16.mxu0 %v1499
        %1538 = vmatpush1.bf16.msra.mxu0 %v1498
        %1539 = vmatprep.subr.bf16.mxu0 %v1501
        %1540 = vmatpush1.bf16.msra.mxu0 %v1500
        %1541 = vmatprep.subr.bf16.mxu0 %v1503
        %1542 = vmatpush1.bf16.msra.mxu0 %v1502
        %1543 = vmatprep.subr.bf16.mxu0 %v1505
        %1544 = vmatpush1.bf16.msra.mxu0 %v1504
        %1545 = vmatprep.subr.bf16.mxu0 %v1507
        %1546 = vmatpush1.bf16.msra.mxu0 %v1506
        %1547 = vmatprep.subr.bf16.mxu0 %v1509
        %1548 = vmatpush1.bf16.msra.mxu0 %v1508
        %1549 = vmatprep.subr.bf16.mxu0 %v1511
        %1550 = vmatpush1.bf16.msra.mxu0 %v1510
        %1551 = vmatprep.subr.bf16.mxu0 %v1513
        %1552 = vmatpush1.bf16.msra.mxu0 %v1512
        %1553 = vmatprep.subr.bf16.mxu0 0
        %1554 = vmatpush1.bf16.msra.mxu0 0
        %1555 = vmatprep.subr.bf16.mxu0 0
        %1556 = vmatpush1.bf16.msra.mxu0 0
        %1557 = vmatprep.subr.bf16.mxu0 0
        %1558 = vmatpush1.bf16.msra.mxu0 0
        %1559 = vmatprep.subr.bf16.mxu0 0
        %1560 = vmatpush1.bf16.msra.mxu0 0
        %1561 = vmatprep.subr.bf16.mxu0 0
        %1562 = vmatpush1.bf16.msra.mxu0 0
        %1563 = vmatprep.subr.bf16.mxu0 0
        %1564 = vmatpush1.bf16.msra.mxu0 0
        %1565 = vmatprep.subr.bf16.mxu0 0
        %1566 = vmatpush1.bf16.msra.mxu0 0
        %1567 = vmatprep.mubr.bf16.mxu0 %v1533
        %1568 = vmatmul.mubr.bf16.gmra.mrb[0].mxu0 %v1421
        %v1569 = vpop.f32.mrb[0].mxu0
        %v1570 = vadd.f32 0.0, %v1569
        %v1571 = vpop.f32.mrb[0].mxu0
        %v1572 = vadd.f32 0.0, %v1571
        %v1573 = vpop.f32.mrb[0].mxu0
        %v1574 = vpop.f32.mrb[0].mxu0
        %1575 = vdwg.mxu0
        %v1576 = vadd.f32 %v1369, %v1570
        %v1577 = vadd.f32 %v1370, %v1572
        %v1578 = vrot.slane %v1177, 6
        %v1579 = vrot.slane %v1181, 6
        %v1582 = vsel %vm331, %v305, %v307
        %v1583 = vsel %vm331, %v306, %v308
        %v1586 = vsel %vm334, %v1582, %v963
        %v1590 = vsel %vm334, %v1583, %v964
        %v1592 = vsel %vm345, %v1586, %v316
        %v1593 = vsel %vm345, %v1590, %v319
        %v1595 = vsel %vm348, %v1592, %v323
        %v1598 = vsel %vm348, %v1593, %v324
        %v1600 = vsel %vm359, %v1595, %v325
        %v1601 = vsel %vm359, %v1598, %v326
        %v1604 = vsel %vm362, %v1600, %v973
        %v1608 = vsel %vm362, %v1601, %v974
        %v1610 = vsel %vm373, %v1604, %v1578
        %v1611 = vsel %vm373, %v1608, %v1579
        %s1612 = scalar_lea.vmem %s1, 864
        %v1613 = vld [vmem:[%s1612] sm:$0xff]
        %v1614 = vld [vmem:[%s1612 + $0x8] sm:$0xff]
        %v1615 = vld [vmem:[%s1612 + $0x10] sm:$0xff]
        %v1616 = vld [vmem:[%s1612 + $0x18] sm:$0xff]
        %v1617 = vld [vmem:[%s1612 + $0x20] sm:$0xff]
        %v1618 = vld [vmem:[%s1612 + $0x28] sm:$0xff]
        %v1619 = vld [vmem:[%s1612 + $0x30] sm:$0xff]
        %v1620 = vld [vmem:[%s1612 + $0x38] sm:$0xff]
        %v1621 = vld [vmem:[%s1612 + $0x40] sm:$0xff]
        %v1622 = vld [vmem:[%s1612 + $0x48] sm:$0xff]
        %v1623 = vld [vmem:[%s1612 + $0x50] sm:$0xff]
        %v1624 = vld [vmem:[%s1612 + $0x58] sm:$0xff]
        %v1625 = vld [vmem:[%s1612 + $0x60] sm:$0xff]
        %v1626 = vld [vmem:[%s1612 + $0x68] sm:$0xff]
        %v1627 = vld [vmem:[%s1612 + $0x70] sm:$0xff]
        %v1628 = vld [vmem:[%s1612 + $0x78] sm:$0xff]
        %v1629 = vld [vmem:[%s1612 + $0x80] sm:$0xff]
        %v1630 = vld [vmem:[%s1612 + $0x88] sm:$0xff]
        %v1649 = vunpack.c.l.b16 %v1613
        %v1650 = vunpack.c.h.b16 %v1613
        %v1651 = vunpack.c.l.b16 %v1614
        %v1652 = vunpack.c.h.b16 %v1614
        %v1653 = vunpack.c.l.b16 %v1615
        %v1654 = vunpack.c.h.b16 %v1615
        %v1655 = vunpack.c.l.b16 %v1616
        %v1656 = vunpack.c.h.b16 %v1616
        %v1657 = vunpack.c.l.b16 %v1617
        %v1658 = vunpack.c.h.b16 %v1617
        %v1659 = vunpack.c.l.b16 %v1618
        %v1660 = vunpack.c.h.b16 %v1618
        %v1661 = vunpack.c.l.b16 %v1619
        %v1662 = vunpack.c.h.b16 %v1619
        %v1663 = vunpack.c.l.b16 %v1620
        %v1664 = vunpack.c.h.b16 %v1620
        %v1665 = vunpack.c.l.b16 %v1621
        %v1666 = vunpack.c.h.b16 %v1621
        %v1667 = vunpack.c.l.b16 %v1622
        %v1668 = vunpack.c.h.b16 %v1622
        %v1669 = vunpack.c.l.b16 %v1623
        %v1670 = vunpack.c.h.b16 %v1623
        %v1671 = vunpack.c.l.b16 %v1624
        %v1672 = vunpack.c.h.b16 %v1624
        %v1673 = vunpack.c.l.b16 %v1625
        %v1674 = vunpack.c.h.b16 %v1625
        %v1675 = vunpack.c.l.b16 %v1626
        %v1676 = vunpack.c.h.b16 %v1626
        %v1677 = vunpack.c.l.b16 %v1627
        %v1678 = vunpack.c.h.b16 %v1627
        %v1679 = vunpack.c.l.b16 %v1628
        %v1680 = vunpack.c.h.b16 %v1628
        %v1681 = vunpack.c.l.b16 %v1629
        %v1682 = vunpack.c.h.b16 %v1629
        %v1683 = vunpack.c.l.b16 %v1630
        %v1684 = vunpack.c.h.b16 %v1630
        %v1685 = vpack.c.b16 %v1651, %v1649
        %v1686 = vpack.c.b16 %v1652, %v1650
        %v1687 = vpack.c.b16 %v1655, %v1653
        %v1688 = vpack.c.b16 %v1656, %v1654
        %v1689 = vpack.c.b16 %v1659, %v1657
        %v1690 = vpack.c.b16 %v1660, %v1658
        %v1691 = vpack.c.b16 %v1663, %v1661
        %v1692 = vpack.c.b16 %v1664, %v1662
        %v1693 = vpack.c.b16 %v1667, %v1665
        %v1694 = vpack.c.b16 %v1668, %v1666
        %v1695 = vpack.c.b16 %v1671, %v1669
        %v1696 = vpack.c.b16 %v1672, %v1670
        %v1697 = vpack.c.b16 %v1675, %v1673
        %v1698 = vpack.c.b16 %v1676, %v1674
        %v1699 = vpack.c.b16 %v1679, %v1677
        %v1700 = vpack.c.b16 %v1680, %v1678
        %v1701 = vpack.c.b16 %v1683, %v1681
        %v1702 = vpack.c.b16 %v1684, %v1682
        %v1722 = vsel %vm563, %v1611, 0
        %1724 = vmatprep.subr.bf16.mxu0 %v1686
        %1725 = vmatpush1.bf16.msra.mxu0 %v1685
        %1726 = vmatprep.subr.bf16.mxu0 %v1688
        %1727 = vmatpush1.bf16.msra.mxu0 %v1687
        %1728 = vmatprep.subr.bf16.mxu0 %v1690
        %1729 = vmatpush1.bf16.msra.mxu0 %v1689
        %1730 = vmatprep.subr.bf16.mxu0 %v1692
        %1731 = vmatpush1.bf16.msra.mxu0 %v1691
        %1732 = vmatprep.subr.bf16.mxu0 %v1694
        %1733 = vmatpush1.bf16.msra.mxu0 %v1693
        %1734 = vmatprep.subr.bf16.mxu0 %v1696
        %1735 = vmatpush1.bf16.msra.mxu0 %v1695
        %1736 = vmatprep.subr.bf16.mxu0 %v1698
        %1737 = vmatpush1.bf16.msra.mxu0 %v1697
        %1738 = vmatprep.subr.bf16.mxu0 %v1700
        %1739 = vmatpush1.bf16.msra.mxu0 %v1699
        %1740 = vmatprep.subr.bf16.mxu0 %v1702
        %1741 = vmatpush1.bf16.msra.mxu0 %v1701
        %1742 = vmatprep.subr.bf16.mxu0 0
        %1743 = vmatpush1.bf16.msra.mxu0 0
        %1744 = vmatprep.subr.bf16.mxu0 0
        %1745 = vmatpush1.bf16.msra.mxu0 0
        %1746 = vmatprep.subr.bf16.mxu0 0
        %1747 = vmatpush1.bf16.msra.mxu0 0
        %1748 = vmatprep.subr.bf16.mxu0 0
        %1749 = vmatpush1.bf16.msra.mxu0 0
        %1750 = vmatprep.subr.bf16.mxu0 0
        %1751 = vmatpush1.bf16.msra.mxu0 0
        %1752 = vmatprep.subr.bf16.mxu0 0
        %1753 = vmatpush1.bf16.msra.mxu0 0
        %1754 = vmatprep.subr.bf16.mxu0 0
        %1755 = vmatpush1.bf16.msra.mxu0 0
        %1756 = vmatprep.mubr.bf16.mxu0 %v1722
        %1757 = vmatmul.mubr.bf16.gmra.mrb[0].mxu0 %v1610
        %v1758 = vpop.f32.mrb[0].mxu0
        %v1759 = vadd.f32 0.0, %v1758
        %v1760 = vpop.f32.mrb[0].mxu0
        %v1761 = vadd.f32 0.0, %v1760
        %v1762 = vpop.f32.mrb[0].mxu0
        %v1763 = vpop.f32.mrb[0].mxu0
        %1764 = vdwg.mxu0
        %v1765 = vadd.f32 %v1576, %v1759
        %v1766 = vadd.f32 %v1577, %v1761
        %v1769 = vrot.slane %v394, 6
        %v1770 = vrot.slane %v396, 6
        %v1771 = vrot.slane %v410, 4
        %v1772 = vrot.slane %v413, 4
        %v1773 = vrot.slane %v291, 6
        %v1774 = vrot.slane %v292, 6
        %v1777 = vsel %vm331, %v404, %v406
        %v1778 = vsel %vm331, %v405, %v407
        %v1781 = vsel %vm334, %v1777, %v1769
        %v1785 = vsel %vm334, %v1778, %v1770
        %v1787 = vsel %vm345, %v1781, %v289
        %v1788 = vsel %vm345, %v1785, %v290
        %v1790 = vsel %vm348, %v1787, %v416
        %v1793 = vsel %vm348, %v1788, %v417
        %v1795 = vsel %vm359, %v1790, %v418
        %v1796 = vsel %vm359, %v1793, %v419
        %v1799 = vsel %vm362, %v1795, %v1771
        %v1803 = vsel %vm362, %v1796, %v1772
        %v1805 = vsel %vm373, %v1799, %v1773
        %v1806 = vsel %vm373, %v1803, %v1774
        %s1807 = scalar_lea.vmem %s1, 1008
        %v1808 = vld [vmem:[%s1807] sm:$0xff]
        %v1809 = vld [vmem:[%s1807 + $0x8] sm:$0xff]
        %v1810 = vld [vmem:[%s1807 + $0x10] sm:$0xff]
        %v1811 = vld [vmem:[%s1807 + $0x18] sm:$0xff]
        %v1812 = vld [vmem:[%s1807 + $0x20] sm:$0xff]
        %v1813 = vld [vmem:[%s1807 + $0x28] sm:$0xff]
        %v1814 = vld [vmem:[%s1807 + $0x30] sm:$0xff]
        %v1815 = vld [vmem:[%s1807 + $0x38] sm:$0xff]
        %v1816 = vld [vmem:[%s1807 + $0x40] sm:$0xff]
        %v1817 = vld [vmem:[%s1807 + $0x48] sm:$0xff]
        %v1818 = vld [vmem:[%s1807 + $0x50] sm:$0xff]
        %v1819 = vld [vmem:[%s1807 + $0x58] sm:$0xff]
        %v1820 = vld [vmem:[%s1807 + $0x60] sm:$0xff]
        %v1821 = vld [vmem:[%s1807 + $0x68] sm:$0xff]
        %v1822 = vld [vmem:[%s1807 + $0x70] sm:$0xff]
        %v1823 = vld [vmem:[%s1807 + $0x78] sm:$0xff]
        %v1824 = vld [vmem:[%s1807 + $0x80] sm:$0xff]
        %v1825 = vld [vmem:[%s1807 + $0x88] sm:$0xff]
        %v1844 = vunpack.c.l.b16 %v1808
        %v1845 = vunpack.c.h.b16 %v1808
        %v1846 = vunpack.c.l.b16 %v1809
        %v1847 = vunpack.c.h.b16 %v1809
        %v1848 = vunpack.c.l.b16 %v1810
        %v1849 = vunpack.c.h.b16 %v1810
        %v1850 = vunpack.c.l.b16 %v1811
        %v1851 = vunpack.c.h.b16 %v1811
        %v1852 = vunpack.c.l.b16 %v1812
        %v1853 = vunpack.c.h.b16 %v1812
        %v1854 = vunpack.c.l.b16 %v1813
        %v1855 = vunpack.c.h.b16 %v1813
        %v1856 = vunpack.c.l.b16 %v1814
        %v1857 = vunpack.c.h.b16 %v1814
        %v1858 = vunpack.c.l.b16 %v1815
        %v1859 = vunpack.c.h.b16 %v1815
        %v1860 = vunpack.c.l.b16 %v1816
        %v1861 = vunpack.c.h.b16 %v1816
        %v1862 = vunpack.c.l.b16 %v1817
        %v1863 = vunpack.c.h.b16 %v1817
        %v1864 = vunpack.c.l.b16 %v1818
        %v1865 = vunpack.c.h.b16 %v1818
        %v1866 = vunpack.c.l.b16 %v1819
        %v1867 = vunpack.c.h.b16 %v1819
        %v1868 = vunpack.c.l.b16 %v1820
        %v1869 = vunpack.c.h.b16 %v1820
        %v1870 = vunpack.c.l.b16 %v1821
        %v1871 = vunpack.c.h.b16 %v1821
        %v1872 = vunpack.c.l.b16 %v1822
        %v1873 = vunpack.c.h.b16 %v1822
        %v1874 = vunpack.c.l.b16 %v1823
        %v1875 = vunpack.c.h.b16 %v1823
        %v1876 = vunpack.c.l.b16 %v1824
        %v1877 = vunpack.c.h.b16 %v1824
        %v1878 = vunpack.c.l.b16 %v1825
        %v1879 = vunpack.c.h.b16 %v1825
        %v1880 = vpack.c.b16 %v1846, %v1844
        %v1881 = vpack.c.b16 %v1847, %v1845
        %v1882 = vpack.c.b16 %v1850, %v1848
        %v1883 = vpack.c.b16 %v1851, %v1849
        %v1884 = vpack.c.b16 %v1854, %v1852
        %v1885 = vpack.c.b16 %v1855, %v1853
        %v1886 = vpack.c.b16 %v1858, %v1856
        %v1887 = vpack.c.b16 %v1859, %v1857
        %v1888 = vpack.c.b16 %v1862, %v1860
        %v1889 = vpack.c.b16 %v1863, %v1861
        %v1890 = vpack.c.b16 %v1866, %v1864
        %v1891 = vpack.c.b16 %v1867, %v1865
        %v1892 = vpack.c.b16 %v1870, %v1868
        %v1893 = vpack.c.b16 %v1871, %v1869
        %v1894 = vpack.c.b16 %v1874, %v1872
        %v1895 = vpack.c.b16 %v1875, %v1873
        %v1896 = vpack.c.b16 %v1878, %v1876
        %v1897 = vpack.c.b16 %v1879, %v1877
        %v1917 = vsel %vm563, %v1806, 0
        %1919 = vmatprep.subr.bf16.mxu0 %v1881
        %1920 = vmatpush1.bf16.msra.mxu0 %v1880
        %1921 = vmatprep.subr.bf16.mxu0 %v1883
        %1922 = vmatpush1.bf16.msra.mxu0 %v1882
        %1923 = vmatprep.subr.bf16.mxu0 %v1885
        %1924 = vmatpush1.bf16.msra.mxu0 %v1884
        %1925 = vmatprep.subr.bf16.mxu0 %v1887
        %1926 = vmatpush1.bf16.msra.mxu0 %v1886
        %1927 = vmatprep.subr.bf16.mxu0 %v1889
        %1928 = vmatpush1.bf16.msra.mxu0 %v1888
        %1929 = vmatprep.subr.bf16.mxu0 %v1891
        %1930 = vmatpush1.bf16.msra.mxu0 %v1890
        %1931 = vmatprep.subr.bf16.mxu0 %v1893
        %1932 = vmatpush1.bf16.msra.mxu0 %v1892
        %1933 = vmatprep.subr.bf16.mxu0 %v1895
        %1934 = vmatpush1.bf16.msra.mxu0 %v1894
        %1935 = vmatprep.subr.bf16.mxu0 %v1897
        %1936 = vmatpush1.bf16.msra.mxu0 %v1896
        %1937 = vmatprep.subr.bf16.mxu0 0
        %1938 = vmatpush1.bf16.msra.mxu0 0
        %1939 = vmatprep.subr.bf16.mxu0 0
        %1940 = vmatpush1.bf16.msra.mxu0 0
        %1941 = vmatprep.subr.bf16.mxu0 0
        %1942 = vmatpush1.bf16.msra.mxu0 0
        %1943 = vmatprep.subr.bf16.mxu0 0
        %1944 = vmatpush1.bf16.msra.mxu0 0
        %1945 = vmatprep.subr.bf16.mxu0 0
        %1946 = vmatpush1.bf16.msra.mxu0 0
        %1947 = vmatprep.subr.bf16.mxu0 0
        %1948 = vmatpush1.bf16.msra.mxu0 0
        %1949 = vmatprep.subr.bf16.mxu0 0
        %1950 = vmatpush1.bf16.msra.mxu0 0
        %1951 = vmatprep.mubr.bf16.mxu0 %v1917
        %1952 = vmatmul.mubr.bf16.gmra.mrb[0].mxu0 %v1805
        %v1953 = vpop.f32.mrb[0].mxu0
        %v1954 = vadd.f32 0.0, %v1953
        %v1955 = vpop.f32.mrb[0].mxu0
        %v1956 = vadd.f32 0.0, %v1955
        %v1957 = vpop.f32.mrb[0].mxu0
        %v1958 = vpop.f32.mrb[0].mxu0
        %1959 = vdwg.mxu0
        %v1960 = vadd.f32 %v1765, %v1954
        %v1961 = vadd.f32 %v1766, %v1956
        %v1962 = vld [vmem:[%s2] sm:$0x3]
        %v1964 = vlaneseq
        %v1965 = vshrl.u32 %v1964, 7
        %v1966 = vsub.s32 0, %v1965
        %v1967 = vrot.slane %v1962, %v1966
        %v1968 = vlaneseq
        %v1969 = vshrl.u32 %v1968, 7
        %v1970 = vsub.s32 1, %v1969
        %v1971 = vrot.slane %v1962, %v1970
        %v1974 = vadd.f32 %v1960, %v1967
        %v1975 = vadd.f32 %v1961, %v1971
        %v1976 = vmax.f32 %v1974, 0.0
        %v1977 = vmax.f32 %v1975, 0.0
        %v1978 = vpack.c.bf16 %v1976, %v1976
        %v1979 = vpack.c.bf16 %v1977, %v1977
        %v1981 = vshll.u32 %v1978, 16
        %v1983 = vrot.slane %v1981, 1
        %v1985 = vshll.u32 %v1979, 16
        %v1987 = vrot.slane %v1985, 1
        %v1992 = vrot.slane %v1978, 1
        %v1993 = vrot.slane %v1979, 1
        %v1994 = vsel %vm331, %v1978, %v1983
        %v1995 = vsel %vm331, %v1979, %v1987
        %v1998 = vsel %vm334, %v1994, %v1992
        %v2002 = vsel %vm334, %v1995, %v1993
        %v2004 = vld [vmem:[%s3] sm:$0xff]
        %v2005 = vld [vmem:[%s3 + $0x8] sm:$0xff]
        %v2006 = vld [vmem:[%s3 + $0x10] sm:$0xff]
        %v2007 = vld [vmem:[%s3 + $0x18] sm:$0xff]
        %v2008 = vld [vmem:[%s3 + $0x20] sm:$0xff]
        %v2009 = vld [vmem:[%s3 + $0x28] sm:$0xff]
        %v2010 = vld [vmem:[%s3 + $0x30] sm:$0xff]
        %v2011 = vld [vmem:[%s3 + $0x38] sm:$0xff]
        %v2012 = vld [vmem:[%s3 + $0x40] sm:$0xff]
        %v2013 = vld [vmem:[%s3 + $0x48] sm:$0xff]
        %v2014 = vld [vmem:[%s3 + $0x50] sm:$0xff]
        %v2015 = vld [vmem:[%s3 + $0x58] sm:$0xff]
        %v2016 = vld [vmem:[%s3 + $0x60] sm:$0xff]
        %v2017 = vld [vmem:[%s3 + $0x68] sm:$0xff]
        %v2018 = vld [vmem:[%s3 + $0x70] sm:$0xff]
        %v2019 = vld [vmem:[%s3 + $0x78] sm:$0xff]
        %v2020 = vld [vmem:[%s3 + $0x80] sm:$0xff]
        %v2021 = vld [vmem:[%s3 + $0x88] sm:$0xff]
        %v2022 = vld [vmem:[%s3 + $0x90] sm:$0xff]
        %v2023 = vld [vmem:[%s3 + $0x98] sm:$0xff]
        %v2024 = vld [vmem:[%s3 + $0xa0] sm:$0xff]
        %v2025 = vld [vmem:[%s3 + $0xa8] sm:$0xff]
        %v2026 = vld [vmem:[%s3 + $0xb0] sm:$0xff]
        %v2027 = vld [vmem:[%s3 + $0xb8] sm:$0xff]
        %v2028 = vld [vmem:[%s3 + $0xc0] sm:$0xff]
        %v2029 = vld [vmem:[%s3 + $0xc8] sm:$0xff]
        %v2030 = vld [vmem:[%s3 + $0xd0] sm:$0xff]
        %v2031 = vld [vmem:[%s3 + $0xd8] sm:$0xff]
        %v2032 = vld [vmem:[%s3 + $0xe0] sm:$0xff]
        %v2033 = vld [vmem:[%s3 + $0xe8] sm:$0xff]
        %v2034 = vld [vmem:[%s3 + $0xf0] sm:$0xff]
        %v2035 = vld [vmem:[%s3 + $0xf8] sm:$0xff]
        %v2036 = vshrl.u32 %v1978, 16
        %v2038 = vshrl.u32 %v1979, 16
        %v2044 = vrot.slane %v2036, 1
        %v2045 = vrot.slane %v2038, 1
        %v2046 = vsel %vm331, %v2036, %v1992
        %v2047 = vsel %vm331, %v2038, %v1993
        %v2050 = vsel %vm334, %v2046, %v2044
        %v2054 = vsel %vm334, %v2047, %v2045
        %s2056 = scalar_lea.vmem %s3, 256
        %v2057 = vld [vmem:[%s2056] sm:$0xff]
        %v2058 = vld [vmem:[%s2056 + $0x8] sm:$0xff]
        %v2059 = vld [vmem:[%s2056 + $0x10] sm:$0xff]
        %v2060 = vld [vmem:[%s2056 + $0x18] sm:$0xff]
        %v2061 = vld [vmem:[%s2056 + $0x20] sm:$0xff]
        %v2062 = vld [vmem:[%s2056 + $0x28] sm:$0xff]
        %v2063 = vld [vmem:[%s2056 + $0x30] sm:$0xff]
        %v2064 = vld [vmem:[%s2056 + $0x38] sm:$0xff]
        %v2065 = vld [vmem:[%s2056 + $0x40] sm:$0xff]
        %v2066 = vld [vmem:[%s2056 + $0x48] sm:$0xff]
        %v2067 = vld [vmem:[%s2056 + $0x50] sm:$0xff]
        %v2068 = vld [vmem:[%s2056 + $0x58] sm:$0xff]
        %v2069 = vld [vmem:[%s2056 + $0x60] sm:$0xff]
        %v2070 = vld [vmem:[%s2056 + $0x68] sm:$0xff]
        %v2071 = vld [vmem:[%s2056 + $0x70] sm:$0xff]
        %v2072 = vld [vmem:[%s2056 + $0x78] sm:$0xff]
        %v2073 = vld [vmem:[%s2056 + $0x80] sm:$0xff]
        %v2074 = vld [vmem:[%s2056 + $0x88] sm:$0xff]
        %v2075 = vld [vmem:[%s2056 + $0x90] sm:$0xff]
        %v2076 = vld [vmem:[%s2056 + $0x98] sm:$0xff]
        %v2077 = vld [vmem:[%s2056 + $0xa0] sm:$0xff]
        %v2078 = vld [vmem:[%s2056 + $0xa8] sm:$0xff]
        %v2079 = vld [vmem:[%s2056 + $0xb0] sm:$0xff]
        %v2080 = vld [vmem:[%s2056 + $0xb8] sm:$0xff]
        %v2081 = vld [vmem:[%s2056 + $0xc0] sm:$0xff]
        %v2082 = vld [vmem:[%s2056 + $0xc8] sm:$0xff]
        %v2083 = vld [vmem:[%s2056 + $0xd0] sm:$0xff]
        %v2084 = vld [vmem:[%s2056 + $0xd8] sm:$0xff]
        %v2085 = vld [vmem:[%s2056 + $0xe0] sm:$0xff]
        %v2086 = vld [vmem:[%s2056 + $0xe8] sm:$0xff]
        %v2087 = vld [vmem:[%s2056 + $0xf0] sm:$0xff]
        %v2088 = vld [vmem:[%s2056 + $0xf8] sm:$0xff]
        %v2121 = vunpack.c.l.b16 %v2057
        %v2122 = vunpack.c.h.b16 %v2057
        %v2123 = vunpack.c.l.b16 %v2058
        %v2124 = vunpack.c.h.b16 %v2058
        %v2125 = vunpack.c.l.b16 %v2059
        %v2126 = vunpack.c.h.b16 %v2059
        %v2127 = vunpack.c.l.b16 %v2060
        %v2128 = vunpack.c.h.b16 %v2060
        %v2129 = vunpack.c.l.b16 %v2061
        %v2130 = vunpack.c.h.b16 %v2061
        %v2131 = vunpack.c.l.b16 %v2062
        %v2132 = vunpack.c.h.b16 %v2062
        %v2133 = vunpack.c.l.b16 %v2063
        %v2134 = vunpack.c.h.b16 %v2063
        %v2135 = vunpack.c.l.b16 %v2064
        %v2136 = vunpack.c.h.b16 %v2064
        %v2137 = vunpack.c.l.b16 %v2065
        %v2138 = vunpack.c.h.b16 %v2065
        %v2139 = vunpack.c.l.b16 %v2066
        %v2140 = vunpack.c.h.b16 %v2066
        %v2141 = vunpack.c.l.b16 %v2067
        %v2142 = vunpack.c.h.b16 %v2067
        %v2143 = vunpack.c.l.b16 %v2068
        %v2144 = vunpack.c.h.b16 %v2068
        %v2145 = vunpack.c.l.b16 %v2069
        %v2146 = vunpack.c.h.b16 %v2069
        %v2147 = vunpack.c.l.b16 %v2070
        %v2148 = vunpack.c.h.b16 %v2070
        %v2149 = vunpack.c.l.b16 %v2071
        %v2150 = vunpack.c.h.b16 %v2071
        %v2151 = vunpack.c.l.b16 %v2072
        %v2152 = vunpack.c.h.b16 %v2072
        %v2153 = vunpack.c.l.b16 %v2073
        %v2154 = vunpack.c.h.b16 %v2073
        %v2155 = vunpack.c.l.b16 %v2074
        %v2156 = vunpack.c.h.b16 %v2074
        %v2157 = vunpack.c.l.b16 %v2075
        %v2158 = vunpack.c.h.b16 %v2075
        %v2159 = vunpack.c.l.b16 %v2076
        %v2160 = vunpack.c.h.b16 %v2076
        %v2161 = vunpack.c.l.b16 %v2077
        %v2162 = vunpack.c.h.b16 %v2077
        %v2163 = vunpack.c.l.b16 %v2078
        %v2164 = vunpack.c.h.b16 %v2078
        %v2165 = vunpack.c.l.b16 %v2079
        %v2166 = vunpack.c.h.b16 %v2079
        %v2167 = vunpack.c.l.b16 %v2080
        %v2168 = vunpack.c.h.b16 %v2080
        %v2169 = vunpack.c.l.b16 %v2081
        %v2170 = vunpack.c.h.b16 %v2081
        %v2171 = vunpack.c.l.b16 %v2082
        %v2172 = vunpack.c.h.b16 %v2082
        %v2173 = vunpack.c.l.b16 %v2083
        %v2174 = vunpack.c.h.b16 %v2083
        %v2175 = vunpack.c.l.b16 %v2084
        %v2176 = vunpack.c.h.b16 %v2084
        %v2177 = vunpack.c.l.b16 %v2085
        %v2178 = vunpack.c.h.b16 %v2085
        %v2179 = vunpack.c.l.b16 %v2086
        %v2180 = vunpack.c.h.b16 %v2086
        %v2181 = vunpack.c.l.b16 %v2087
        %v2182 = vunpack.c.h.b16 %v2087
        %v2183 = vunpack.c.l.b16 %v2088
        %v2184 = vunpack.c.h.b16 %v2088
        %v2185 = vpack.c.b16 %v2123, %v2121
        %v2186 = vpack.c.b16 %v2124, %v2122
        %v2187 = vpack.c.b16 %v2127, %v2125
        %v2188 = vpack.c.b16 %v2128, %v2126
        %v2189 = vpack.c.b16 %v2131, %v2129
        %v2190 = vpack.c.b16 %v2132, %v2130
        %v2191 = vpack.c.b16 %v2135, %v2133
        %v2192 = vpack.c.b16 %v2136, %v2134
        %v2193 = vpack.c.b16 %v2139, %v2137
        %v2194 = vpack.c.b16 %v2140, %v2138
        %v2195 = vpack.c.b16 %v2143, %v2141
        %v2196 = vpack.c.b16 %v2144, %v2142
        %v2197 = vpack.c.b16 %v2147, %v2145
        %v2198 = vpack.c.b16 %v2148, %v2146
        %v2199 = vpack.c.b16 %v2151, %v2149
        %v2200 = vpack.c.b16 %v2152, %v2150
        %v2201 = vpack.c.b16 %v2155, %v2153
        %v2202 = vpack.c.b16 %v2156, %v2154
        %v2203 = vpack.c.b16 %v2159, %v2157
        %v2204 = vpack.c.b16 %v2160, %v2158
        %v2205 = vpack.c.b16 %v2163, %v2161
        %v2206 = vpack.c.b16 %v2164, %v2162
        %v2207 = vpack.c.b16 %v2167, %v2165
        %v2208 = vpack.c.b16 %v2168, %v2166
        %v2209 = vpack.c.b16 %v2171, %v2169
        %v2210 = vpack.c.b16 %v2172, %v2170
        %v2211 = vpack.c.b16 %v2175, %v2173
        %v2212 = vpack.c.b16 %v2176, %v2174
        %v2213 = vpack.c.b16 %v2179, %v2177
        %v2214 = vpack.c.b16 %v2180, %v2178
        %v2215 = vpack.c.b16 %v2183, %v2181
        %v2216 = vpack.c.b16 %v2184, %v2182
        %2249 = vmatprep.subr.bf16.mxu0 %v2186
        %2250 = vmatpush1.bf16.msra.mxu0 %v2185
        %2251 = vmatprep.subr.bf16.mxu0 %v2188
        %2252 = vmatpush1.bf16.msra.mxu0 %v2187
        %2253 = vmatprep.subr.bf16.mxu0 %v2190
        %2254 = vmatpush1.bf16.msra.mxu0 %v2189
        %2255 = vmatprep.subr.bf16.mxu0 %v2192
        %2256 = vmatpush1.bf16.msra.mxu0 %v2191
        %2257 = vmatprep.subr.bf16.mxu0 %v2194
        %2258 = vmatpush1.bf16.msra.mxu0 %v2193
        %2259 = vmatprep.subr.bf16.mxu0 %v2196
        %2260 = vmatpush1.bf16.msra.mxu0 %v2195
        %2261 = vmatprep.subr.bf16.mxu0 %v2198
        %2262 = vmatpush1.bf16.msra.mxu0 %v2197
        %2263 = vmatprep.subr.bf16.mxu0 %v2200
        %2264 = vmatpush1.bf16.msra.mxu0 %v2199
        %2265 = vmatprep.subr.bf16.mxu0 %v2202
        %2266 = vmatpush1.bf16.msra.mxu0 %v2201
        %2267 = vmatprep.subr.bf16.mxu0 %v2204
        %2268 = vmatpush1.bf16.msra.mxu0 %v2203
        %2269 = vmatprep.subr.bf16.mxu0 %v2206
        %2270 = vmatpush1.bf16.msra.mxu0 %v2205
        %2271 = vmatprep.subr.bf16.mxu0 %v2208
        %2272 = vmatpush1.bf16.msra.mxu0 %v2207
        %2273 = vmatprep.subr.bf16.mxu0 %v2210
        %2274 = vmatpush1.bf16.msra.mxu0 %v2209
        %2275 = vmatprep.subr.bf16.mxu0 %v2212
        %2276 = vmatpush1.bf16.msra.mxu0 %v2211
        %2277 = vmatprep.subr.bf16.mxu0 %v2214
        %2278 = vmatpush1.bf16.msra.mxu0 %v2213
        %2279 = vmatprep.subr.bf16.mxu0 %v2216
        %2280 = vmatpush1.bf16.msra.mxu0 %v2215
        %2281 = vmatprep.mubr.bf16.mxu0 %v2054
        %2282 = vmatmul.mubr.bf16.gmra.mrb[0].mxu0 %v2050
        %v2283 = vpop.f32.mrb[0].mxu0
        %v2284 = vadd.f32 0.0, %v2283
        %v2285 = vpop.f32.mrb[0].mxu0
        %v2286 = vadd.f32 0.0, %v2285
        %v2287 = vpop.f32.mrb[0].mxu0
        %v2288 = vpop.f32.mrb[0].mxu0
        %2289 = vdwg.mxu0
        %v2322 = vunpack.c.l.b16 %v2004
        %v2323 = vunpack.c.h.b16 %v2004
        %v2324 = vunpack.c.l.b16 %v2005
        %v2325 = vunpack.c.h.b16 %v2005
        %v2326 = vunpack.c.l.b16 %v2006
        %v2327 = vunpack.c.h.b16 %v2006
        %v2328 = vunpack.c.l.b16 %v2007
        %v2329 = vunpack.c.h.b16 %v2007
        %v2330 = vunpack.c.l.b16 %v2008
        %v2331 = vunpack.c.h.b16 %v2008
        %v2332 = vunpack.c.l.b16 %v2009
        %v2333 = vunpack.c.h.b16 %v2009
        %v2334 = vunpack.c.l.b16 %v2010
        %v2335 = vunpack.c.h.b16 %v2010
        %v2336 = vunpack.c.l.b16 %v2011
        %v2337 = vunpack.c.h.b16 %v2011
        %v2338 = vunpack.c.l.b16 %v2012
        %v2339 = vunpack.c.h.b16 %v2012
        %v2340 = vunpack.c.l.b16 %v2013
        %v2341 = vunpack.c.h.b16 %v2013
        %v2342 = vunpack.c.l.b16 %v2014
        %v2343 = vunpack.c.h.b16 %v2014
        %v2344 = vunpack.c.l.b16 %v2015
        %v2345 = vunpack.c.h.b16 %v2015
        %v2346 = vunpack.c.l.b16 %v2016
        %v2347 = vunpack.c.h.b16 %v2016
        %v2348 = vunpack.c.l.b16 %v2017
        %v2349 = vunpack.c.h.b16 %v2017
        %v2350 = vunpack.c.l.b16 %v2018
        %v2351 = vunpack.c.h.b16 %v2018
        %v2352 = vunpack.c.l.b16 %v2019
        %v2353 = vunpack.c.h.b16 %v2019
        %v2354 = vunpack.c.l.b16 %v2020
        %v2355 = vunpack.c.h.b16 %v2020
        %v2356 = vunpack.c.l.b16 %v2021
        %v2357 = vunpack.c.h.b16 %v2021
        %v2358 = vunpack.c.l.b16 %v2022
        %v2359 = vunpack.c.h.b16 %v2022
        %v2360 = vunpack.c.l.b16 %v2023
        %v2361 = vunpack.c.h.b16 %v2023
        %v2362 = vunpack.c.l.b16 %v2024
        %v2363 = vunpack.c.h.b16 %v2024
        %v2364 = vunpack.c.l.b16 %v2025
        %v2365 = vunpack.c.h.b16 %v2025
        %v2366 = vunpack.c.l.b16 %v2026
        %v2367 = vunpack.c.h.b16 %v2026
        %v2368 = vunpack.c.l.b16 %v2027
        %v2369 = vunpack.c.h.b16 %v2027
        %v2370 = vunpack.c.l.b16 %v2028
        %v2371 = vunpack.c.h.b16 %v2028
        %v2372 = vunpack.c.l.b16 %v2029
        %v2373 = vunpack.c.h.b16 %v2029
        %v2374 = vunpack.c.l.b16 %v2030
        %v2375 = vunpack.c.h.b16 %v2030
        %v2376 = vunpack.c.l.b16 %v2031
        %v2377 = vunpack.c.h.b16 %v2031
        %v2378 = vunpack.c.l.b16 %v2032
        %v2379 = vunpack.c.h.b16 %v2032
        %v2380 = vunpack.c.l.b16 %v2033
        %v2381 = vunpack.c.h.b16 %v2033
        %v2382 = vunpack.c.l.b16 %v2034
        %v2383 = vunpack.c.h.b16 %v2034
        %v2384 = vunpack.c.l.b16 %v2035
        %v2385 = vunpack.c.h.b16 %v2035
        %v2386 = vpack.c.b16 %v2324, %v2322
        %v2387 = vpack.c.b16 %v2325, %v2323
        %v2388 = vpack.c.b16 %v2328, %v2326
        %v2389 = vpack.c.b16 %v2329, %v2327
        %v2390 = vpack.c.b16 %v2332, %v2330
        %v2391 = vpack.c.b16 %v2333, %v2331
        %v2392 = vpack.c.b16 %v2336, %v2334
        %v2393 = vpack.c.b16 %v2337, %v2335
        %v2394 = vpack.c.b16 %v2340, %v2338
        %v2395 = vpack.c.b16 %v2341, %v2339
        %v2396 = vpack.c.b16 %v2344, %v2342
        %v2397 = vpack.c.b16 %v2345, %v2343
        %v2398 = vpack.c.b16 %v2348, %v2346
        %v2399 = vpack.c.b16 %v2349, %v2347
        %v2400 = vpack.c.b16 %v2352, %v2350
        %v2401 = vpack.c.b16 %v2353, %v2351
        %v2402 = vpack.c.b16 %v2356, %v2354
        %v2403 = vpack.c.b16 %v2357, %v2355
        %v2404 = vpack.c.b16 %v2360, %v2358
        %v2405 = vpack.c.b16 %v2361, %v2359
        %v2406 = vpack.c.b16 %v2364, %v2362
        %v2407 = vpack.c.b16 %v2365, %v2363
        %v2408 = vpack.c.b16 %v2368, %v2366
        %v2409 = vpack.c.b16 %v2369, %v2367
        %v2410 = vpack.c.b16 %v2372, %v2370
        %v2411 = vpack.c.b16 %v2373, %v2371
        %v2412 = vpack.c.b16 %v2376, %v2374
        %v2413 = vpack.c.b16 %v2377, %v2375
        %v2414 = vpack.c.b16 %v2380, %v2378
        %v2415 = vpack.c.b16 %v2381, %v2379
        %v2416 = vpack.c.b16 %v2384, %v2382
        %v2417 = vpack.c.b16 %v2385, %v2383
        %2450 = vmatprep.subr.bf16.mxu0 %v2387
        %2451 = vmatpush1.bf16.msra.mxu0 %v2386
        %2452 = vmatprep.subr.bf16.mxu0 %v2389
        %2453 = vmatpush1.bf16.msra.mxu0 %v2388
        %2454 = vmatprep.subr.bf16.mxu0 %v2391
        %2455 = vmatpush1.bf16.msra.mxu0 %v2390
        %2456 = vmatprep.subr.bf16.mxu0 %v2393
        %2457 = vmatpush1.bf16.msra.mxu0 %v2392
        %2458 = vmatprep.subr.bf16.mxu0 %v2395
        %2459 = vmatpush1.bf16.msra.mxu0 %v2394
        %2460 = vmatprep.subr.bf16.mxu0 %v2397
        %2461 = vmatpush1.bf16.msra.mxu0 %v2396
        %2462 = vmatprep.subr.bf16.mxu0 %v2399
        %2463 = vmatpush1.bf16.msra.mxu0 %v2398
        %2464 = vmatprep.subr.bf16.mxu0 %v2401
        %2465 = vmatpush1.bf16.msra.mxu0 %v2400
        %2466 = vmatprep.subr.bf16.mxu0 %v2403
        %2467 = vmatpush1.bf16.msra.mxu0 %v2402
        %2468 = vmatprep.subr.bf16.mxu0 %v2405
        %2469 = vmatpush1.bf16.msra.mxu0 %v2404
        %2470 = vmatprep.subr.bf16.mxu0 %v2407
        %2471 = vmatpush1.bf16.msra.mxu0 %v2406
        %2472 = vmatprep.subr.bf16.mxu0 %v2409
        %2473 = vmatpush1.bf16.msra.mxu0 %v2408
        %2474 = vmatprep.subr.bf16.mxu0 %v2411
        %2475 = vmatpush1.bf16.msra.mxu0 %v2410
        %2476 = vmatprep.subr.bf16.mxu0 %v2413
        %2477 = vmatpush1.bf16.msra.mxu0 %v2412
        %2478 = vmatprep.subr.bf16.mxu0 %v2415
        %2479 = vmatpush1.bf16.msra.mxu0 %v2414
        %2480 = vmatprep.subr.bf16.mxu0 %v2417
        %2481 = vmatpush1.bf16.msra.mxu0 %v2416
        %2482 = vmatprep.mubr.bf16.mxu0 %v2002
        %2483 = vmatmul.mubr.bf16.gmra.mrb[0].mxu0 %v1998
        %v2484 = vpop.f32.mrb[0].mxu0
        %v2485 = vadd.f32 %v2284, %v2484
        %v2486 = vpop.f32.mrb[0].mxu0
        %v2487 = vadd.f32 %v2286, %v2486
        %v2488 = vpop.f32.mrb[0].mxu0
        %v2489 = vpop.f32.mrb[0].mxu0
        %2490 = vdwg.mxu0
        %v2491 = vrot.slane %v1981, 2
        %v2492 = vrot.slane %v1985, 2
        %v2495 = vrot.slane %v1978, 2
        %v2496 = vrot.slane %v1979, 2
        %v2497 = vsel %vm331, %v1992, %v2491
        %v2498 = vsel %vm331, %v1993, %v2492
        %v2501 = vsel %vm334, %v2497, %v2495
        %v2505 = vsel %vm334, %v2498, %v2496
        %s2507 = scalar_lea.vmem %s3, 512
        %v2508 = vld [vmem:[%s2507] sm:$0xff]
        %v2509 = vld [vmem:[%s2507 + $0x8] sm:$0xff]
        %v2510 = vld [vmem:[%s2507 + $0x10] sm:$0xff]
        %v2511 = vld [vmem:[%s2507 + $0x18] sm:$0xff]
        %v2512 = vld [vmem:[%s2507 + $0x20] sm:$0xff]
        %v2513 = vld [vmem:[%s2507 + $0x28] sm:$0xff]
        %v2514 = vld [vmem:[%s2507 + $0x30] sm:$0xff]
        %v2515 = vld [vmem:[%s2507 + $0x38] sm:$0xff]
        %v2516 = vld [vmem:[%s2507 + $0x40] sm:$0xff]
        %v2517 = vld [vmem:[%s2507 + $0x48] sm:$0xff]
        %v2518 = vld [vmem:[%s2507 + $0x50] sm:$0xff]
        %v2519 = vld [vmem:[%s2507 + $0x58] sm:$0xff]
        %v2520 = vld [vmem:[%s2507 + $0x60] sm:$0xff]
        %v2521 = vld [vmem:[%s2507 + $0x68] sm:$0xff]
        %v2522 = vld [vmem:[%s2507 + $0x70] sm:$0xff]
        %v2523 = vld [vmem:[%s2507 + $0x78] sm:$0xff]
        %v2524 = vld [vmem:[%s2507 + $0x80] sm:$0xff]
        %v2525 = vld [vmem:[%s2507 + $0x88] sm:$0xff]
        %v2526 = vld [vmem:[%s2507 + $0x90] sm:$0xff]
        %v2527 = vld [vmem:[%s2507 + $0x98] sm:$0xff]
        %v2528 = vld [vmem:[%s2507 + $0xa0] sm:$0xff]
        %v2529 = vld [vmem:[%s2507 + $0xa8] sm:$0xff]
        %v2530 = vld [vmem:[%s2507 + $0xb0] sm:$0xff]
        %v2531 = vld [vmem:[%s2507 + $0xb8] sm:$0xff]
        %v2532 = vld [vmem:[%s2507 + $0xc0] sm:$0xff]
        %v2533 = vld [vmem:[%s2507 + $0xc8] sm:$0xff]
        %v2534 = vld [vmem:[%s2507 + $0xd0] sm:$0xff]
        %v2535 = vld [vmem:[%s2507 + $0xd8] sm:$0xff]
        %v2536 = vld [vmem:[%s2507 + $0xe0] sm:$0xff]
        %v2537 = vld [vmem:[%s2507 + $0xe8] sm:$0xff]
        %v2538 = vld [vmem:[%s2507 + $0xf0] sm:$0xff]
        %v2539 = vld [vmem:[%s2507 + $0xf8] sm:$0xff]
        %v2572 = vunpack.c.l.b16 %v2508
        %v2573 = vunpack.c.h.b16 %v2508
        %v2574 = vunpack.c.l.b16 %v2509
        %v2575 = vunpack.c.h.b16 %v2509
        %v2576 = vunpack.c.l.b16 %v2510
        %v2577 = vunpack.c.h.b16 %v2510
        %v2578 = vunpack.c.l.b16 %v2511
        %v2579 = vunpack.c.h.b16 %v2511
        %v2580 = vunpack.c.l.b16 %v2512
        %v2581 = vunpack.c.h.b16 %v2512
        %v2582 = vunpack.c.l.b16 %v2513
        %v2583 = vunpack.c.h.b16 %v2513
        %v2584 = vunpack.c.l.b16 %v2514
        %v2585 = vunpack.c.h.b16 %v2514
        %v2586 = vunpack.c.l.b16 %v2515
        %v2587 = vunpack.c.h.b16 %v2515
        %v2588 = vunpack.c.l.b16 %v2516
        %v2589 = vunpack.c.h.b16 %v2516
        %v2590 = vunpack.c.l.b16 %v2517
        %v2591 = vunpack.c.h.b16 %v2517
        %v2592 = vunpack.c.l.b16 %v2518
        %v2593 = vunpack.c.h.b16 %v2518
        %v2594 = vunpack.c.l.b16 %v2519
        %v2595 = vunpack.c.h.b16 %v2519
        %v2596 = vunpack.c.l.b16 %v2520
        %v2597 = vunpack.c.h.b16 %v2520
        %v2598 = vunpack.c.l.b16 %v2521
        %v2599 = vunpack.c.h.b16 %v2521
        %v2600 = vunpack.c.l.b16 %v2522
        %v2601 = vunpack.c.h.b16 %v2522
        %v2602 = vunpack.c.l.b16 %v2523
        %v2603 = vunpack.c.h.b16 %v2523
        %v2604 = vunpack.c.l.b16 %v2524
        %v2605 = vunpack.c.h.b16 %v2524
        %v2606 = vunpack.c.l.b16 %v2525
        %v2607 = vunpack.c.h.b16 %v2525
        %v2608 = vunpack.c.l.b16 %v2526
        %v2609 = vunpack.c.h.b16 %v2526
        %v2610 = vunpack.c.l.b16 %v2527
        %v2611 = vunpack.c.h.b16 %v2527
        %v2612 = vunpack.c.l.b16 %v2528
        %v2613 = vunpack.c.h.b16 %v2528
        %v2614 = vunpack.c.l.b16 %v2529
        %v2615 = vunpack.c.h.b16 %v2529
        %v2616 = vunpack.c.l.b16 %v2530
        %v2617 = vunpack.c.h.b16 %v2530
        %v2618 = vunpack.c.l.b16 %v2531
        %v2619 = vunpack.c.h.b16 %v2531
        %v2620 = vunpack.c.l.b16 %v2532
        %v2621 = vunpack.c.h.b16 %v2532
        %v2622 = vunpack.c.l.b16 %v2533
        %v2623 = vunpack.c.h.b16 %v2533
        %v2624 = vunpack.c.l.b16 %v2534
        %v2625 = vunpack.c.h.b16 %v2534
        %v2626 = vunpack.c.l.b16 %v2535
        %v2627 = vunpack.c.h.b16 %v2535
        %v2628 = vunpack.c.l.b16 %v2536
        %v2629 = vunpack.c.h.b16 %v2536
        %v2630 = vunpack.c.l.b16 %v2537
        %v2631 = vunpack.c.h.b16 %v2537
        %v2632 = vunpack.c.l.b16 %v2538
        %v2633 = vunpack.c.h.b16 %v2538
        %v2634 = vunpack.c.l.b16 %v2539
        %v2635 = vunpack.c.h.b16 %v2539
        %v2636 = vpack.c.b16 %v2574, %v2572
        %v2637 = vpack.c.b16 %v2575, %v2573
        %v2638 = vpack.c.b16 %v2578, %v2576
        %v2639 = vpack.c.b16 %v2579, %v2577
        %v2640 = vpack.c.b16 %v2582, %v2580
        %v2641 = vpack.c.b16 %v2583, %v2581
        %v2642 = vpack.c.b16 %v2586, %v2584
        %v2643 = vpack.c.b16 %v2587, %v2585
        %v2644 = vpack.c.b16 %v2590, %v2588
        %v2645 = vpack.c.b16 %v2591, %v2589
        %v2646 = vpack.c.b16 %v2594, %v2592
        %v2647 = vpack.c.b16 %v2595, %v2593
        %v2648 = vpack.c.b16 %v2598, %v2596
        %v2649 = vpack.c.b16 %v2599, %v2597
        %v2650 = vpack.c.b16 %v2602, %v2600
        %v2651 = vpack.c.b16 %v2603, %v2601
        %v2652 = vpack.c.b16 %v2606, %v2604
        %v2653 = vpack.c.b16 %v2607, %v2605
        %v2654 = vpack.c.b16 %v2610, %v2608
        %v2655 = vpack.c.b16 %v2611, %v2609
        %v2656 = vpack.c.b16 %v2614, %v2612
        %v2657 = vpack.c.b16 %v2615, %v2613
        %v2658 = vpack.c.b16 %v2618, %v2616
        %v2659 = vpack.c.b16 %v2619, %v2617
        %v2660 = vpack.c.b16 %v2622, %v2620
        %v2661 = vpack.c.b16 %v2623, %v2621
        %v2662 = vpack.c.b16 %v2626, %v2624
        %v2663 = vpack.c.b16 %v2627, %v2625
        %v2664 = vpack.c.b16 %v2630, %v2628
        %v2665 = vpack.c.b16 %v2631, %v2629
        %v2666 = vpack.c.b16 %v2634, %v2632
        %v2667 = vpack.c.b16 %v2635, %v2633
        %2700 = vmatprep.subr.bf16.mxu0 %v2637
        %2701 = vmatpush1.bf16.msra.mxu0 %v2636
        %2702 = vmatprep.subr.bf16.mxu0 %v2639
        %2703 = vmatpush1.bf16.msra.mxu0 %v2638
        %2704 = vmatprep.subr.bf16.mxu0 %v2641
        %2705 = vmatpush1.bf16.msra.mxu0 %v2640
        %2706 = vmatprep.subr.bf16.mxu0 %v2643
        %2707 = vmatpush1.bf16.msra.mxu0 %v2642
        %2708 = vmatprep.subr.bf16.mxu0 %v2645
        %2709 = vmatpush1.bf16.msra.mxu0 %v2644
        %2710 = vmatprep.subr.bf16.mxu0 %v2647
        %2711 = vmatpush1.bf16.msra.mxu0 %v2646
        %2712 = vmatprep.subr.bf16.mxu0 %v2649
        %2713 = vmatpush1.bf16.msra.mxu0 %v2648
        %2714 = vmatprep.subr.bf16.mxu0 %v2651
        %2715 = vmatpush1.bf16.msra.mxu0 %v2650
        %2716 = vmatprep.subr.bf16.mxu0 %v2653
        %2717 = vmatpush1.bf16.msra.mxu0 %v2652
        %2718 = vmatprep.subr.bf16.mxu0 %v2655
        %2719 = vmatpush1.bf16.msra.mxu0 %v2654
        %2720 = vmatprep.subr.bf16.mxu0 %v2657
        %2721 = vmatpush1.bf16.msra.mxu0 %v2656
        %2722 = vmatprep.subr.bf16.mxu0 %v2659
        %2723 = vmatpush1.bf16.msra.mxu0 %v2658
        %2724 = vmatprep.subr.bf16.mxu0 %v2661
        %2725 = vmatpush1.bf16.msra.mxu0 %v2660
        %2726 = vmatprep.subr.bf16.mxu0 %v2663
        %2727 = vmatpush1.bf16.msra.mxu0 %v2662
        %2728 = vmatprep.subr.bf16.mxu0 %v2665
        %2729 = vmatpush1.bf16.msra.mxu0 %v2664
        %2730 = vmatprep.subr.bf16.mxu0 %v2667
        %2731 = vmatpush1.bf16.msra.mxu0 %v2666
        %2732 = vmatprep.mubr.bf16.mxu0 %v2505
        %2733 = vmatmul.mubr.bf16.gmra.mrb[0].mxu0 %v2501
        %v2734 = vpop.f32.mrb[0].mxu0
        %v2735 = vadd.f32 0.0, %v2734
        %v2736 = vpop.f32.mrb[0].mxu0
        %v2737 = vadd.f32 0.0, %v2736
        %v2738 = vpop.f32.mrb[0].mxu0
        %v2739 = vpop.f32.mrb[0].mxu0
        %2740 = vdwg.mxu0
        %v2741 = vadd.f32 %v2485, %v2735
        %v2742 = vadd.f32 %v2487, %v2737
        %v2747 = vrot.slane %v2036, 2
        %v2748 = vrot.slane %v2038, 2
        %v2749 = vsel %vm331, %v2044, %v2495
        %v2750 = vsel %vm331, %v2045, %v2496
        %v2753 = vsel %vm334, %v2749, %v2747
        %v2757 = vsel %vm334, %v2750, %v2748
        %s2759 = scalar_lea.vmem %s3, 768
        %v2760 = vld [vmem:[%s2759] sm:$0xff]
        %v2761 = vld [vmem:[%s2759 + $0x8] sm:$0xff]
        %v2762 = vld [vmem:[%s2759 + $0x10] sm:$0xff]
        %v2763 = vld [vmem:[%s2759 + $0x18] sm:$0xff]
        %v2764 = vld [vmem:[%s2759 + $0x20] sm:$0xff]
        %v2765 = vld [vmem:[%s2759 + $0x28] sm:$0xff]
        %v2766 = vld [vmem:[%s2759 + $0x30] sm:$0xff]
        %v2767 = vld [vmem:[%s2759 + $0x38] sm:$0xff]
        %v2768 = vld [vmem:[%s2759 + $0x40] sm:$0xff]
        %v2769 = vld [vmem:[%s2759 + $0x48] sm:$0xff]
        %v2770 = vld [vmem:[%s2759 + $0x50] sm:$0xff]
        %v2771 = vld [vmem:[%s2759 + $0x58] sm:$0xff]
        %v2772 = vld [vmem:[%s2759 + $0x60] sm:$0xff]
        %v2773 = vld [vmem:[%s2759 + $0x68] sm:$0xff]
        %v2774 = vld [vmem:[%s2759 + $0x70] sm:$0xff]
        %v2775 = vld [vmem:[%s2759 + $0x78] sm:$0xff]
        %v2776 = vld [vmem:[%s2759 + $0x80] sm:$0xff]
        %v2777 = vld [vmem:[%s2759 + $0x88] sm:$0xff]
        %v2778 = vld [vmem:[%s2759 + $0x90] sm:$0xff]
        %v2779 = vld [vmem:[%s2759 + $0x98] sm:$0xff]
        %v2780 = vld [vmem:[%s2759 + $0xa0] sm:$0xff]
        %v2781 = vld [vmem:[%s2759 + $0xa8] sm:$0xff]
        %v2782 = vld [vmem:[%s2759 + $0xb0] sm:$0xff]
        %v2783 = vld [vmem:[%s2759 + $0xb8] sm:$0xff]
        %v2784 = vld [vmem:[%s2759 + $0xc0] sm:$0xff]
        %v2785 = vld [vmem:[%s2759 + $0xc8] sm:$0xff]
        %v2786 = vld [vmem:[%s2759 + $0xd0] sm:$0xff]
        %v2787 = vld [vmem:[%s2759 + $0xd8] sm:$0xff]
        %v2788 = vld [vmem:[%s2759 + $0xe0] sm:$0xff]
        %v2789 = vld [vmem:[%s2759 + $0xe8] sm:$0xff]
        %v2790 = vld [vmem:[%s2759 + $0xf0] sm:$0xff]
        %v2791 = vld [vmem:[%s2759 + $0xf8] sm:$0xff]
        %v2824 = vunpack.c.l.b16 %v2760
        %v2825 = vunpack.c.h.b16 %v2760
        %v2826 = vunpack.c.l.b16 %v2761
        %v2827 = vunpack.c.h.b16 %v2761
        %v2828 = vunpack.c.l.b16 %v2762
        %v2829 = vunpack.c.h.b16 %v2762
        %v2830 = vunpack.c.l.b16 %v2763
        %v2831 = vunpack.c.h.b16 %v2763
        %v2832 = vunpack.c.l.b16 %v2764
        %v2833 = vunpack.c.h.b16 %v2764
        %v2834 = vunpack.c.l.b16 %v2765
        %v2835 = vunpack.c.h.b16 %v2765
        %v2836 = vunpack.c.l.b16 %v2766
        %v2837 = vunpack.c.h.b16 %v2766
        %v2838 = vunpack.c.l.b16 %v2767
        %v2839 = vunpack.c.h.b16 %v2767
        %v2840 = vunpack.c.l.b16 %v2768
        %v2841 = vunpack.c.h.b16 %v2768
        %v2842 = vunpack.c.l.b16 %v2769
        %v2843 = vunpack.c.h.b16 %v2769
        %v2844 = vunpack.c.l.b16 %v2770
        %v2845 = vunpack.c.h.b16 %v2770
        %v2846 = vunpack.c.l.b16 %v2771
        %v2847 = vunpack.c.h.b16 %v2771
        %v2848 = vunpack.c.l.b16 %v2772
        %v2849 = vunpack.c.h.b16 %v2772
        %v2850 = vunpack.c.l.b16 %v2773
        %v2851 = vunpack.c.h.b16 %v2773
        %v2852 = vunpack.c.l.b16 %v2774
        %v2853 = vunpack.c.h.b16 %v2774
        %v2854 = vunpack.c.l.b16 %v2775
        %v2855 = vunpack.c.h.b16 %v2775
        %v2856 = vunpack.c.l.b16 %v2776
        %v2857 = vunpack.c.h.b16 %v2776
        %v2858 = vunpack.c.l.b16 %v2777
        %v2859 = vunpack.c.h.b16 %v2777
        %v2860 = vunpack.c.l.b16 %v2778
        %v2861 = vunpack.c.h.b16 %v2778
        %v2862 = vunpack.c.l.b16 %v2779
        %v2863 = vunpack.c.h.b16 %v2779
        %v2864 = vunpack.c.l.b16 %v2780
        %v2865 = vunpack.c.h.b16 %v2780
        %v2866 = vunpack.c.l.b16 %v2781
        %v2867 = vunpack.c.h.b16 %v2781
        %v2868 = vunpack.c.l.b16 %v2782
        %v2869 = vunpack.c.h.b16 %v2782
        %v2870 = vunpack.c.l.b16 %v2783
        %v2871 = vunpack.c.h.b16 %v2783
        %v2872 = vunpack.c.l.b16 %v2784
        %v2873 = vunpack.c.h.b16 %v2784
        %v2874 = vunpack.c.l.b16 %v2785
        %v2875 = vunpack.c.h.b16 %v2785
        %v2876 = vunpack.c.l.b16 %v2786
        %v2877 = vunpack.c.h.b16 %v2786
        %v2878 = vunpack.c.l.b16 %v2787
        %v2879 = vunpack.c.h.b16 %v2787
        %v2880 = vunpack.c.l.b16 %v2788
        %v2881 = vunpack.c.h.b16 %v2788
        %v2882 = vunpack.c.l.b16 %v2789
        %v2883 = vunpack.c.h.b16 %v2789
        %v2884 = vunpack.c.l.b16 %v2790
        %v2885 = vunpack.c.h.b16 %v2790
        %v2886 = vunpack.c.l.b16 %v2791
        %v2887 = vunpack.c.h.b16 %v2791
        %v2888 = vpack.c.b16 %v2826, %v2824
        %v2889 = vpack.c.b16 %v2827, %v2825
        %v2890 = vpack.c.b16 %v2830, %v2828
        %v2891 = vpack.c.b16 %v2831, %v2829
        %v2892 = vpack.c.b16 %v2834, %v2832
        %v2893 = vpack.c.b16 %v2835, %v2833
        %v2894 = vpack.c.b16 %v2838, %v2836
        %v2895 = vpack.c.b16 %v2839, %v2837
        %v2896 = vpack.c.b16 %v2842, %v2840
        %v2897 = vpack.c.b16 %v2843, %v2841
        %v2898 = vpack.c.b16 %v2846, %v2844
        %v2899 = vpack.c.b16 %v2847, %v2845
        %v2900 = vpack.c.b16 %v2850, %v2848
        %v2901 = vpack.c.b16 %v2851, %v2849
        %v2902 = vpack.c.b16 %v2854, %v2852
        %v2903 = vpack.c.b16 %v2855, %v2853
        %v2904 = vpack.c.b16 %v2858, %v2856
        %v2905 = vpack.c.b16 %v2859, %v2857
        %v2906 = vpack.c.b16 %v2862, %v2860
        %v2907 = vpack.c.b16 %v2863, %v2861
        %v2908 = vpack.c.b16 %v2866, %v2864
        %v2909 = vpack.c.b16 %v2867, %v2865
        %v2910 = vpack.c.b16 %v2870, %v2868
        %v2911 = vpack.c.b16 %v2871, %v2869
        %v2912 = vpack.c.b16 %v2874, %v2872
        %v2913 = vpack.c.b16 %v2875, %v2873
        %v2914 = vpack.c.b16 %v2878, %v2876
        %v2915 = vpack.c.b16 %v2879, %v2877
        %v2916 = vpack.c.b16 %v2882, %v2880
        %v2917 = vpack.c.b16 %v2883, %v2881
        %v2918 = vpack.c.b16 %v2886, %v2884
        %v2919 = vpack.c.b16 %v2887, %v2885
        %2952 = vmatprep.subr.bf16.mxu0 %v2889
        %2953 = vmatpush1.bf16.msra.mxu0 %v2888
        %2954 = vmatprep.subr.bf16.mxu0 %v2891
        %2955 = vmatpush1.bf16.msra.mxu0 %v2890
        %2956 = vmatprep.subr.bf16.mxu0 %v2893
        %2957 = vmatpush1.bf16.msra.mxu0 %v2892
        %2958 = vmatprep.subr.bf16.mxu0 %v2895
        %2959 = vmatpush1.bf16.msra.mxu0 %v2894
        %2960 = vmatprep.subr.bf16.mxu0 %v2897
        %2961 = vmatpush1.bf16.msra.mxu0 %v2896
        %2962 = vmatprep.subr.bf16.mxu0 %v2899
        %2963 = vmatpush1.bf16.msra.mxu0 %v2898
        %2964 = vmatprep.subr.bf16.mxu0 %v2901
        %2965 = vmatpush1.bf16.msra.mxu0 %v2900
        %2966 = vmatprep.subr.bf16.mxu0 %v2903
        %2967 = vmatpush1.bf16.msra.mxu0 %v2902
        %2968 = vmatprep.subr.bf16.mxu0 %v2905
        %2969 = vmatpush1.bf16.msra.mxu0 %v2904
        %2970 = vmatprep.subr.bf16.mxu0 %v2907
        %2971 = vmatpush1.bf16.msra.mxu0 %v2906
        %2972 = vmatprep.subr.bf16.mxu0 %v2909
        %2973 = vmatpush1.bf16.msra.mxu0 %v2908
        %2974 = vmatprep.subr.bf16.mxu0 %v2911
        %2975 = vmatpush1.bf16.msra.mxu0 %v2910
        %2976 = vmatprep.subr.bf16.mxu0 %v2913
        %2977 = vmatpush1.bf16.msra.mxu0 %v2912
        %2978 = vmatprep.subr.bf16.mxu0 %v2915
        %2979 = vmatpush1.bf16.msra.mxu0 %v2914
        %2980 = vmatprep.subr.bf16.mxu0 %v2917
        %2981 = vmatpush1.bf16.msra.mxu0 %v2916
        %2982 = vmatprep.subr.bf16.mxu0 %v2919
        %2983 = vmatpush1.bf16.msra.mxu0 %v2918
        %2984 = vmatprep.mubr.bf16.mxu0 %v2757
        %2985 = vmatmul.mubr.bf16.gmra.mrb[0].mxu0 %v2753
        %v2986 = vpop.f32.mrb[0].mxu0
        %v2987 = vadd.f32 0.0, %v2986
        %v2988 = vpop.f32.mrb[0].mxu0
        %v2989 = vadd.f32 0.0, %v2988
        %v2990 = vpop.f32.mrb[0].mxu0
        %v2991 = vpop.f32.mrb[0].mxu0
        %2992 = vdwg.mxu0
        %v2993 = vadd.f32 %v2741, %v2987
        %v2994 = vadd.f32 %v2742, %v2989
        %v2995 = vld [vmem:[%s4] sm:$0x3]
        %v2997 = vlaneseq
        %v2998 = vshrl.u32 %v2997, 7
        %v2999 = vsub.s32 0, %v2998
        %v3000 = vrot.slane %v2995, %v2999
        %v3001 = vlaneseq
        %v3002 = vshrl.u32 %v3001, 7
        %v3003 = vsub.s32 1, %v3002
        %v3004 = vrot.slane %v2995, %v3003
        %v3007 = vadd.f32 %v2993, %v3000
        %v3008 = vadd.f32 %v2994, %v3004
        %v3009 = vmax.f32 %v3007, 0.0
        %v3010 = vmax.f32 %v3008, 0.0
        %v3011 = vpack.c.bf16 %v3009, %v3009
        %v3012 = vpack.c.bf16 %v3010, %v3010
        %v3013 = vld [vmem:[%s5] sm:$0xf]
        %v3014 = vld [vmem:[%s5 + $0x4] sm:$0xf]
        %v3015 = vld [vmem:[%s5 + $0x8] sm:$0xf]
        %v3016 = vld [vmem:[%s5 + $0xc] sm:$0xf]
        %v3017 = vld [vmem:[%s5 + $0x10] sm:$0xf]
        %v3018 = vld [vmem:[%s5 + $0x14] sm:$0xf]
        %v3019 = vld [vmem:[%s5 + $0x18] sm:$0xf]
        %v3020 = vld [vmem:[%s5 + $0x1c] sm:$0xf]
        %v3021 = vld [vmem:[%s5 + $0x20] sm:$0xf]
        %v3022 = vld [vmem:[%s5 + $0x24] sm:$0xf]
        %v3023 = vld [vmem:[%s5 + $0x28] sm:$0xf]
        %v3024 = vld [vmem:[%s5 + $0x2c] sm:$0xf]
        %v3025 = vld [vmem:[%s5 + $0x30] sm:$0xf]
        %v3026 = vld [vmem:[%s5 + $0x34] sm:$0xf]
        %v3027 = vld [vmem:[%s5 + $0x38] sm:$0xf]
        %v3028 = vld [vmem:[%s5 + $0x3c] sm:$0xf]
        %v3029 = vld [vmem:[%s5 + $0x40] sm:$0xf]
        %v3030 = vld [vmem:[%s5 + $0x44] sm:$0xf]
        %v3031 = vld [vmem:[%s5 + $0x48] sm:$0xf]
        %v3032 = vld [vmem:[%s5 + $0x4c] sm:$0xf]
        %v3033 = vld [vmem:[%s5 + $0x50] sm:$0xf]
        %v3034 = vld [vmem:[%s5 + $0x54] sm:$0xf]
        %v3035 = vld [vmem:[%s5 + $0x58] sm:$0xf]
        %v3036 = vld [vmem:[%s5 + $0x5c] sm:$0xf]
        %s3037 = scalar_lea.vmem %s5, 96
        %v3038 = vld [vmem:[%s3037] sm:$0xf]
        %v3039 = vld [vmem:[%s3037 + $0x4] sm:$0xf]
        %v3040 = vld [vmem:[%s3037 + $0x8] sm:$0xf]
        %v3041 = vld [vmem:[%s3037 + $0xc] sm:$0xf]
        %v3042 = vld [vmem:[%s3037 + $0x10] sm:$0xf]
        %v3043 = vld [vmem:[%s3037 + $0x14] sm:$0xf]
        %v3044 = vld [vmem:[%s3037 + $0x18] sm:$0xf]
        %v3045 = vld [vmem:[%s3037 + $0x1c] sm:$0xf]
        %v3046 = vld [vmem:[%s3037 + $0x20] sm:$0xf]
        %v3047 = vld [vmem:[%s3037 + $0x24] sm:$0xf]
        %v3048 = vld [vmem:[%s3037 + $0x28] sm:$0xf]
        %v3049 = vld [vmem:[%s3037 + $0x2c] sm:$0xf]
        %v3050 = vld [vmem:[%s3037 + $0x30] sm:$0xf]
        %v3051 = vld [vmem:[%s3037 + $0x34] sm:$0xf]
        %v3052 = vld [vmem:[%s3037 + $0x38] sm:$0xf]
        %v3053 = vld [vmem:[%s3037 + $0x3c] sm:$0xf]
        %v3054 = vld [vmem:[%s3037 + $0x40] sm:$0xf]
        %v3055 = vld [vmem:[%s3037 + $0x44] sm:$0xf]
        %v3056 = vld [vmem:[%s3037 + $0x48] sm:$0xf]
        %v3057 = vld [vmem:[%s3037 + $0x4c] sm:$0xf]
        %v3058 = vld [vmem:[%s3037 + $0x50] sm:$0xf]
        %v3059 = vld [vmem:[%s3037 + $0x54] sm:$0xf]
        %v3060 = vld [vmem:[%s3037 + $0x58] sm:$0xf]
        %v3061 = vld [vmem:[%s3037 + $0x5c] sm:$0xf]
        %v3063 = vshrl.u32 %v3011, 16
        %v3066 = vshrl.u32 %v3012, 16
        %v3093 = vunpack.c.l.b16 %v3038
        %v3094 = vunpack.c.l.b16 %v3039
        %v3095 = vunpack.c.l.b16 %v3040
        %v3096 = vunpack.c.l.b16 %v3041
        %v3097 = vunpack.c.l.b16 %v3042
        %v3098 = vunpack.c.l.b16 %v3043
        %v3099 = vunpack.c.l.b16 %v3044
        %v3100 = vunpack.c.l.b16 %v3045
        %v3101 = vunpack.c.l.b16 %v3046
        %v3102 = vunpack.c.l.b16 %v3047
        %v3103 = vunpack.c.l.b16 %v3048
        %v3104 = vunpack.c.l.b16 %v3049
        %v3105 = vunpack.c.l.b16 %v3050
        %v3106 = vunpack.c.l.b16 %v3051
        %v3107 = vunpack.c.l.b16 %v3052
        %v3108 = vunpack.c.l.b16 %v3053
        %v3109 = vunpack.c.l.b16 %v3054
        %v3110 = vunpack.c.l.b16 %v3055
        %v3111 = vunpack.c.l.b16 %v3056
        %v3112 = vunpack.c.l.b16 %v3057
        %v3113 = vunpack.c.l.b16 %v3058
        %v3114 = vunpack.c.l.b16 %v3059
        %v3115 = vunpack.c.l.b16 %v3060
        %v3116 = vunpack.c.l.b16 %v3061
        %v3117 = vpack.c.b16 %v3094, %v3093
        %v3118 = vpack.c.b16 %v3096, %v3095
        %v3119 = vpack.c.b16 %v3098, %v3097
        %v3120 = vpack.c.b16 %v3100, %v3099
        %v3121 = vpack.c.b16 %v3102, %v3101
        %v3122 = vpack.c.b16 %v3104, %v3103
        %v3123 = vpack.c.b16 %v3106, %v3105
        %v3124 = vpack.c.b16 %v3108, %v3107
        %v3125 = vpack.c.b16 %v3110, %v3109
        %v3126 = vpack.c.b16 %v3112, %v3111
        %v3127 = vpack.c.b16 %v3114, %v3113
        %v3128 = vpack.c.b16 %v3116, %v3115
        %vm3141 = vcmask 523264
        %v3143 = vsel %vm3141, %v3066, 0
        %3145 = vmatprep.subr.bf16.mxu0 0
        %3146 = vmatpush1.bf16.msra.mxu0 %v3117
        %3147 = vmatprep.subr.bf16.mxu0 0
        %3148 = vmatpush1.bf16.msra.mxu0 %v3118
        %3149 = vmatprep.subr.bf16.mxu0 0
        %3150 = vmatpush1.bf16.msra.mxu0 %v3119
        %3151 = vmatprep.subr.bf16.mxu0 0
        %3152 = vmatpush1.bf16.msra.mxu0 %v3120
        %3153 = vmatprep.subr.bf16.mxu0 0
        %3154 = vmatpush1.bf16.msra.mxu0 %v3121
        %3155 = vmatprep.subr.bf16.mxu0 0
        %3156 = vmatpush1.bf16.msra.mxu0 %v3122
        %3157 = vmatprep.subr.bf16.mxu0 0
        %3158 = vmatpush1.bf16.msra.mxu0 %v3123
        %3159 = vmatprep.subr.bf16.mxu0 0
        %3160 = vmatpush1.bf16.msra.mxu0 %v3124
        %3161 = vmatprep.subr.bf16.mxu0 0
        %3162 = vmatpush1.bf16.msra.mxu0 %v3125
        %3163 = vmatprep.subr.bf16.mxu0 0
        %3164 = vmatpush1.bf16.msra.mxu0 %v3126
        %3165 = vmatprep.subr.bf16.mxu0 0
        %3166 = vmatpush1.bf16.msra.mxu0 %v3127
        %3167 = vmatprep.subr.bf16.mxu0 0
        %3168 = vmatpush1.bf16.msra.mxu0 %v3128
        %3169 = vmatprep.subr.bf16.mxu0 0
        %3170 = vmatpush1.bf16.msra.mxu0 0
        %3171 = vmatprep.subr.bf16.mxu0 0
        %3172 = vmatpush1.bf16.msra.mxu0 0
        %3173 = vmatprep.subr.bf16.mxu0 0
        %3174 = vmatpush1.bf16.msra.mxu0 0
        %3175 = vmatprep.subr.bf16.mxu0 0
        %3176 = vmatpush1.bf16.msra.mxu0 0
        %3177 = vmatprep.mubr.bf16.mxu0 %v3143
        %3178 = vmatmul.mubr.bf16.gmra.mrb[0].mxu0 %v3063
        %v3179 = vpop.f32.mrb[0].mxu0
        %v3180 = vadd.f32 0.0, %v3179
        %v3181 = vpop.f32.mrb[0].mxu0
        %v3182 = vpop.f32.mrb[0].mxu0
        %v3183 = vpop.f32.mrb[0].mxu0
        %3184 = vdwg.mxu0
        %v3209 = vunpack.c.l.b16 %v3013
        %v3210 = vunpack.c.l.b16 %v3014
        %v3211 = vunpack.c.l.b16 %v3015
        %v3212 = vunpack.c.l.b16 %v3016
        %v3213 = vunpack.c.l.b16 %v3017
        %v3214 = vunpack.c.l.b16 %v3018
        %v3215 = vunpack.c.l.b16 %v3019
        %v3216 = vunpack.c.l.b16 %v3020
        %v3217 = vunpack.c.l.b16 %v3021
        %v3218 = vunpack.c.l.b16 %v3022
        %v3219 = vunpack.c.l.b16 %v3023
        %v3220 = vunpack.c.l.b16 %v3024
        %v3221 = vunpack.c.l.b16 %v3025
        %v3222 = vunpack.c.l.b16 %v3026
        %v3223 = vunpack.c.l.b16 %v3027
        %v3224 = vunpack.c.l.b16 %v3028
        %v3225 = vunpack.c.l.b16 %v3029
        %v3226 = vunpack.c.l.b16 %v3030
        %v3227 = vunpack.c.l.b16 %v3031
        %v3228 = vunpack.c.l.b16 %v3032
        %v3229 = vunpack.c.l.b16 %v3033
        %v3230 = vunpack.c.l.b16 %v3034
        %v3231 = vunpack.c.l.b16 %v3035
        %v3232 = vunpack.c.l.b16 %v3036
        %v3233 = vpack.c.b16 %v3210, %v3209
        %v3234 = vpack.c.b16 %v3212, %v3211
        %v3235 = vpack.c.b16 %v3214, %v3213
        %v3236 = vpack.c.b16 %v3216, %v3215
        %v3237 = vpack.c.b16 %v3218, %v3217
        %v3238 = vpack.c.b16 %v3220, %v3219
        %v3239 = vpack.c.b16 %v3222, %v3221
        %v3240 = vpack.c.b16 %v3224, %v3223
        %v3241 = vpack.c.b16 %v3226, %v3225
        %v3242 = vpack.c.b16 %v3228, %v3227
        %v3243 = vpack.c.b16 %v3230, %v3229
        %v3244 = vpack.c.b16 %v3232, %v3231
        %v3257 = vsel %vm3141, %v3012, 0
        %3259 = vmatprep.subr.bf16.mxu0 0
        %3260 = vmatpush1.bf16.msra.mxu0 %v3233
        %3261 = vmatprep.subr.bf16.mxu0 0
        %3262 = vmatpush1.bf16.msra.mxu0 %v3234
        %3263 = vmatprep.subr.bf16.mxu0 0
        %3264 = vmatpush1.bf16.msra.mxu0 %v3235
        %3265 = vmatprep.subr.bf16.mxu0 0
        %3266 = vmatpush1.bf16.msra.mxu0 %v3236
        %3267 = vmatprep.subr.bf16.mxu0 0
        %3268 = vmatpush1.bf16.msra.mxu0 %v3237
        %3269 = vmatprep.subr.bf16.mxu0 0
        %3270 = vmatpush1.bf16.msra.mxu0 %v3238
        %3271 = vmatprep.subr.bf16.mxu0 0
        %3272 = vmatpush1.bf16.msra.mxu0 %v3239
        %3273 = vmatprep.subr.bf16.mxu0 0
        %3274 = vmatpush1.bf16.msra.mxu0 %v3240
        %3275 = vmatprep.subr.bf16.mxu0 0
        %3276 = vmatpush1.bf16.msra.mxu0 %v3241
        %3277 = vmatprep.subr.bf16.mxu0 0
        %3278 = vmatpush1.bf16.msra.mxu0 %v3242
        %3279 = vmatprep.subr.bf16.mxu0 0
        %3280 = vmatpush1.bf16.msra.mxu0 %v3243
        %3281 = vmatprep.subr.bf16.mxu0 0
        %3282 = vmatpush1.bf16.msra.mxu0 %v3244
        %3283 = vmatprep.subr.bf16.mxu0 0
        %3284 = vmatpush1.bf16.msra.mxu0 0
        %3285 = vmatprep.subr.bf16.mxu0 0
        %3286 = vmatpush1.bf16.msra.mxu0 0
        %3287 = vmatprep.subr.bf16.mxu0 0
        %3288 = vmatpush1.bf16.msra.mxu0 0
        %3289 = vmatprep.subr.bf16.mxu0 0
        %3290 = vmatpush1.bf16.msra.mxu0 0
        %3291 = vmatprep.mubr.bf16.mxu0 %v3257
        %3292 = vmatmul.mubr.bf16.gmra.mrb[0].mxu0 %v3011
        %v3293 = vpop.f32.mrb[0].mxu0
        %v3294 = vadd.f32 %v3180, %v3293
        %v3295 = vpop.f32.mrb[0].mxu0
        %v3296 = vpop.f32.mrb[0].mxu0
        %v3297 = vpop.f32.mrb[0].mxu0
        %3298 = vdwg.mxu0
        %s3299 = scalar_lea.vmem %s5, 192
        %v3300 = vld [vmem:[%s3299] sm:$0xf]
        %v3301 = vld [vmem:[%s3299 + $0x4] sm:$0xf]
        %v3302 = vld [vmem:[%s3299 + $0x8] sm:$0xf]
        %v3303 = vld [vmem:[%s3299 + $0xc] sm:$0xf]
        %v3304 = vld [vmem:[%s3299 + $0x10] sm:$0xf]
        %v3305 = vld [vmem:[%s3299 + $0x14] sm:$0xf]
        %v3306 = vld [vmem:[%s3299 + $0x18] sm:$0xf]
        %v3307 = vld [vmem:[%s3299 + $0x1c] sm:$0xf]
        %v3308 = vld [vmem:[%s3299 + $0x20] sm:$0xf]
        %v3309 = vld [vmem:[%s3299 + $0x24] sm:$0xf]
        %v3310 = vld [vmem:[%s3299 + $0x28] sm:$0xf]
        %v3311 = vld [vmem:[%s3299 + $0x2c] sm:$0xf]
        %v3312 = vld [vmem:[%s3299 + $0x30] sm:$0xf]
        %v3313 = vld [vmem:[%s3299 + $0x34] sm:$0xf]
        %v3314 = vld [vmem:[%s3299 + $0x38] sm:$0xf]
        %v3315 = vld [vmem:[%s3299 + $0x3c] sm:$0xf]
        %v3316 = vld [vmem:[%s3299 + $0x40] sm:$0xf]
        %v3317 = vld [vmem:[%s3299 + $0x44] sm:$0xf]
        %v3318 = vld [vmem:[%s3299 + $0x48] sm:$0xf]
        %v3319 = vld [vmem:[%s3299 + $0x4c] sm:$0xf]
        %v3320 = vld [vmem:[%s3299 + $0x50] sm:$0xf]
        %v3321 = vld [vmem:[%s3299 + $0x54] sm:$0xf]
        %v3322 = vld [vmem:[%s3299 + $0x58] sm:$0xf]
        %v3323 = vld [vmem:[%s3299 + $0x5c] sm:$0xf]
        %v3326 = vrot.slane %v3011, 1
        %v3327 = vrot.slane %v3012, 1
        %v3353 = vunpack.c.l.b16 %v3300
        %v3354 = vunpack.c.l.b16 %v3301
        %v3355 = vunpack.c.l.b16 %v3302
        %v3356 = vunpack.c.l.b16 %v3303
        %v3357 = vunpack.c.l.b16 %v3304
        %v3358 = vunpack.c.l.b16 %v3305
        %v3359 = vunpack.c.l.b16 %v3306
        %v3360 = vunpack.c.l.b16 %v3307
        %v3361 = vunpack.c.l.b16 %v3308
        %v3362 = vunpack.c.l.b16 %v3309
        %v3363 = vunpack.c.l.b16 %v3310
        %v3364 = vunpack.c.l.b16 %v3311
        %v3365 = vunpack.c.l.b16 %v3312
        %v3366 = vunpack.c.l.b16 %v3313
        %v3367 = vunpack.c.l.b16 %v3314
        %v3368 = vunpack.c.l.b16 %v3315
        %v3369 = vunpack.c.l.b16 %v3316
        %v3370 = vunpack.c.l.b16 %v3317
        %v3371 = vunpack.c.l.b16 %v3318
        %v3372 = vunpack.c.l.b16 %v3319
        %v3373 = vunpack.c.l.b16 %v3320
        %v3374 = vunpack.c.l.b16 %v3321
        %v3375 = vunpack.c.l.b16 %v3322
        %v3376 = vunpack.c.l.b16 %v3323
        %v3377 = vpack.c.b16 %v3354, %v3353
        %v3378 = vpack.c.b16 %v3356, %v3355
        %v3379 = vpack.c.b16 %v3358, %v3357
        %v3380 = vpack.c.b16 %v3360, %v3359
        %v3381 = vpack.c.b16 %v3362, %v3361
        %v3382 = vpack.c.b16 %v3364, %v3363
        %v3383 = vpack.c.b16 %v3366, %v3365
        %v3384 = vpack.c.b16 %v3368, %v3367
        %v3385 = vpack.c.b16 %v3370, %v3369
        %v3386 = vpack.c.b16 %v3372, %v3371
        %v3387 = vpack.c.b16 %v3374, %v3373
        %v3388 = vpack.c.b16 %v3376, %v3375
        %v3402 = vsel %vm3141, %v3327, 0
        %3404 = vmatprep.subr.bf16.mxu0 0
        %3405 = vmatpush1.bf16.msra.mxu0 %v3377
        %3406 = vmatprep.subr.bf16.mxu0 0
        %3407 = vmatpush1.bf16.msra.mxu0 %v3378
        %3408 = vmatprep.subr.bf16.mxu0 0
        %3409 = vmatpush1.bf16.msra.mxu0 %v3379
        %3410 = vmatprep.subr.bf16.mxu0 0
        %3411 = vmatpush1.bf16.msra.mxu0 %v3380
        %3412 = vmatprep.subr.bf16.mxu0 0
        %3413 = vmatpush1.bf16.msra.mxu0 %v3381
        %3414 = vmatprep.subr.bf16.mxu0 0
        %3415 = vmatpush1.bf16.msra.mxu0 %v3382
        %3416 = vmatprep.subr.bf16.mxu0 0
        %3417 = vmatpush1.bf16.msra.mxu0 %v3383
        %3418 = vmatprep.subr.bf16.mxu0 0
        %3419 = vmatpush1.bf16.msra.mxu0 %v3384
        %3420 = vmatprep.subr.bf16.mxu0 0
        %3421 = vmatpush1.bf16.msra.mxu0 %v3385
        %3422 = vmatprep.subr.bf16.mxu0 0
        %3423 = vmatpush1.bf16.msra.mxu0 %v3386
        %3424 = vmatprep.subr.bf16.mxu0 0
        %3425 = vmatpush1.bf16.msra.mxu0 %v3387
        %3426 = vmatprep.subr.bf16.mxu0 0
        %3427 = vmatpush1.bf16.msra.mxu0 %v3388
        %3428 = vmatprep.subr.bf16.mxu0 0
        %3429 = vmatpush1.bf16.msra.mxu0 0
        %3430 = vmatprep.subr.bf16.mxu0 0
        %3431 = vmatpush1.bf16.msra.mxu0 0
        %3432 = vmatprep.subr.bf16.mxu0 0
        %3433 = vmatpush1.bf16.msra.mxu0 0
        %3434 = vmatprep.subr.bf16.mxu0 0
        %3435 = vmatpush1.bf16.msra.mxu0 0
        %3436 = vmatprep.mubr.bf16.mxu0 %v3402
        %3437 = vmatmul.mubr.bf16.gmra.mrb[0].mxu0 %v3326
        %v3438 = vpop.f32.mrb[0].mxu0
        %v3439 = vadd.f32 0.0, %v3438
        %v3440 = vpop.f32.mrb[0].mxu0
        %v3441 = vpop.f32.mrb[0].mxu0
        %v3442 = vpop.f32.mrb[0].mxu0
        %3443 = vdwg.mxu0
        %v3444 = vadd.f32 %v3294, %v3439
        %v3445 = vld [vmem:[%s6] sm:$0x1]
        %v3446 = vadd.f32 %v3444, %v3445
        %v3447 = vmax.f32 %v3446, 0.0
        %vm3448 = vcmask 516096
        %3449 = vst.msk [vmem:[%s270] sm:$0x1] %vm3448, %v3447
        %s3450 = sand.u32 %s181, 1
        %s3451 = scalar_lea.sflag [#allocation3], %s3450
        %s3452 = sand.u32 %s181, 1
        %s3453 = scalar_lea.vmem [#allocation2], %s3452
        // Predicated region
        $region49: #{forward.1} parent=47 // pred_check
          %p3454 = pneg %p191
        $region50: #{forward.1} parent=47 // pred_check_branch
          %3456 = sbr.rel (%p3454) target = $region52
        $region51: #{forward.1} parent=47 // pred_region
          %s3458 = ssub.s32 16, 16
          %3459 = vsyncadd %s3451, %s3458
          %s3460 = smul.addr %s21, 16
          %s3461 = scalar_lea.hbm %s7, %s3460
          %s3463 = sshll.u32 %s3453, 4
          %s3464 = int_to_ptr.vmem [resolvable:$true] %s3463
          %3466 = dma.vmem_to_hbm [thread:$0]  %s3464, 16, %s3461, %s3451
        $region52: #{forward.1} parent=47 // pred_fallthru
          _
      $region48: #{forward.1} parent=5 // pred_fallthru
        _
      %p3467 = scmp.le.s32.totalorder 2, %s16
      // Predicated region
      $region53: #{forward.1} parent=5 // pred_check
        %p3468 = pneg %p3467
      $region54: #{forward.1} parent=5 // pred_check_branch
        %3470 = sbr.rel (%p3468) target = $region56
      $region55: #{forward.1} parent=5 // pred_region
        %s3471 = ssub.s32 %s16, 2
        // Predicated region
        $region57: #{forward.1} parent=55 // pred_check
          %p3472 = pneg %p197
        $region58: #{forward.1} parent=55 // pred_check_branch
          %3474 = sbr.rel (%p3472) target = $region60
        $region59: #{forward.1} parent=55 // pred_region
          %s3475 = sand.u32 %s182, 1
          %s3476 = scalar_lea.sflag [#allocation3], %s3475
          %s3477 = sand.u32 %s182, 1
          %s3478 = scalar_lea.vmem [#allocation2], %s3477
          %3479 = dma.done %s3476, 16
        $region60: #{forward.1} parent=55 // pred_fallthru
          _
      $region56: #{forward.1} parent=5 // pred_fallthru
        _
    $region6: #{forward.1} parent=1 // loop_footer
      %s20 = sadd.s32 1, %s16
    $region7: #{forward.1} parent=1 // loop_footer_branch
      %15 = sbr.rel target = $region3
    $region8: #{forward.1} parent=1 // loop_exit
      _
    %3480 = vsyncpa [#allocation3], 1
    %s3481 = scalar_lea.sflag [#allocation3], 1
    %3482 = vsyncpa %s3481, 1

</llo_original>
